<compile_context>
chip_gen: v7x
topology: tpu7x:2x2x1
jax: 0.10.0
libtpu: 0.0.40
codegen_flags: <defaults>
</compile_context>

<pallas_src>
import jax
import jax.numpy as jnp
from jax.experimental import pallas as pl
from jax.experimental.pallas import tpu as pltpu


def _pos_emb_kernel(x_ref, w1_ref, w2_ref, consts_ref, o_ref):
    # x_ref:      (1, C_in, TN)  channel-major point tile, f32
    # w1_ref:     (F, C_in)      conv1 weight with BN scale folded in, f32
    # w2_ref:     (F, F)         conv2 weight (bf16 or f32)
    # consts_ref: (F, 2)         col 0: folded BN shift (+conv1 bias), col 1: conv2 bias
    # o_ref:      (1, F, TN)     output tile, feature-major (PyTorch NCL layout)
    x = x_ref[0]                                            # (C_in, TN) f32
    c_in = x.shape[0]

    # Conv1d(C_in -> F, k=1) on the VPU: K=3 is >95% padding on a systolic
    # K-pass, so do C_in broadcast FMAs in f32 instead (keeps layer 1 exact).
    h = w1_ref[:, 0:1] * x[0:1, :]                          # (F, TN)
    for c in range(1, c_in):                                # static unroll, C_in small
        h = h + w1_ref[:, c:c + 1] * x[c:c + 1, :]
    # Folded BN shift (includes conv1 bias) + ReLU.
    h = jnp.maximum(h + consts_ref[:, 0:1], 0.0)

    # Conv1d(F -> F, k=1) on the MXU + bias; f32 accumulate / epilogue.
    y = jnp.dot(w2_ref[...], h.astype(w2_ref.dtype),
                preferred_element_type=jnp.float32)
    y = y + consts_ref[:, 1:2]

    o_ref[0] = y.astype(o_ref.dtype)


def position_embedding_learned(xyz, params, *, tile_n=2048,
                               use_bf16_matmul=True, out_dtype=jnp.float32):
    """xyz: (B, N, C_in). Returns (B, F, N) matching the PyTorch module output."""
    B, N, C_in = xyz.shape
    w1, b1, gamma, beta, mean, var, eps, w2, b2 = (
        params["w1"], params["b1"], params["bn_gamma"], params["bn_beta"],
        params["bn_mean"], params["bn_var"], params["bn_eps"],
        params["w2"], params["b2"],
    )
    F = w1.shape[0]
    compute_dtype = jnp.bfloat16 if use_bf16_matmul else jnp.float32

    # Fold conv1 bias + BatchNorm (eval mode) into the weight and a per-channel shift.
    scale = (gamma / jnp.sqrt(var + eps)).astype(jnp.float32)              # (F,)
    shift = ((b1 - mean) * scale + beta).astype(jnp.float32)               # (F,)
    w1s = w1.astype(jnp.float32) * scale[:, None]                          # (F, C_in) f32
    w2c = w2.astype(compute_dtype)                                         # (F, F)
    consts = jnp.stack([shift, b2.astype(jnp.float32)], axis=1)            # (F, 2)

    # Channel-major input layout (same transpose the PyTorch module performs);
    # the input is only C_in*4 bytes/point — a tiny fraction of HBM traffic.
    # TODO(synk): fold this transpose into the kernel (read (1, tile_n, C_in)
    # blocks and consume channels on the VPU) if the extra launch ever matters.
    x_nc = jnp.transpose(xyz.astype(jnp.float32), (0, 2, 1))               # (B, C_in, N)

    # Lane-dense tiling along N; the ragged final block (if any) is masked by
    # Pallas on store — no input pad, no post-kernel slice.
    tile_n = max(128, (int(tile_n) // 128) * 128)
    tile_n = min(tile_n, pl.cdiv(N, 128) * 128)
    n_tiles = pl.cdiv(N, tile_n)

    out_itemsize = jnp.dtype(out_dtype).itemsize
    cost = pl.CostEstimate(
        flops=2 * B * N * F * (F + C_in),
        transcendentals=0,
        bytes_accessed=int(B * F * N * out_itemsize            # output store
                           + B * N * C_in * 4                  # input tile reads
                           + w1s.size * 4 + consts.size * 4
                           + w2c.size * jnp.dtype(compute_dtype).itemsize),
    )

    cp_kwargs = dict(dimension_semantics=("parallel", "parallel"))
    if tile_n >= 4096:
        # Explicit headroom for very large tiles (stays within v7x physical VMEM).
        cp_kwargs["vmem_limit_bytes"] = 48 * 1024 * 1024

    out = pl.pallas_call(
        _pos_emb_kernel,
        out_shape=jax.ShapeDtypeStruct((B, F, N), out_dtype),
        grid_spec=pltpu.PrefetchScalarGridSpec(
            num_scalar_prefetch=0,
            grid=(B, n_tiles),
            in_specs=[
                pl.BlockSpec((1, C_in, tile_n), lambda b, j: (b, 0, j)),  # x tile
                pl.BlockSpec((F, C_in), lambda b, j: (0, 0)),             # W1 (BN folded, f32)
                pl.BlockSpec((F, F), lambda b, j: (0, 0)),                # W2
                pl.BlockSpec((F, 2), lambda b, j: (0, 0)),                # shift | b2
            ],
            out_specs=pl.BlockSpec((1, F, tile_n), lambda b, j: (b, 0, j)),
        ),
        compiler_params=pltpu.CompilerParams(**cp_kwargs),
        cost_estimate=cost,
    )(x_nc, w1s, w2c, consts)
    return out


def _reference(xyz, params):
    """Pure-JAX reference of the module forward (BN in eval mode)."""
    hi = jax.lax.Precision.HIGHEST
    x = xyz.astype(jnp.float32)                                        # (B, N, C_in)
    h = jnp.einsum("bnc,fc->bnf", x, params["w1"], precision=hi) + params["b1"]
    h = (h - params["bn_mean"]) / jnp.sqrt(params["bn_var"] + params["bn_eps"])
    h = h * params["bn_gamma"] + params["bn_beta"]
    h = jnp.maximum(h, 0.0)
    y = jnp.einsum("bnf,gf->bng", h, params["w2"], precision=hi) + params["b2"]
    return jnp.transpose(y, (0, 2, 1))                                 # (B, F, N)


if __name__ == "__main__":
    # Shapes consistent with the module defaults: 3-D point coords,
    # num_pos_feats=256 hidden dim (lane-dense), small B/N for the demo.
    B, N, C_in, F = 2, 1024, 3, 256

    key = jax.random.PRNGKey(0)
    keys = jax.random.split(key, 9)

    params = {
        "w1": jax.random.normal(keys[0], (F, C_in), jnp.float32) * 0.1,
        "b1": jax.random.normal(keys[1], (F,), jnp.float32) * 0.05,
        "bn_gamma": 1.0 + 0.1 * jax.random.normal(keys[2], (F,), jnp.float32),
        "bn_beta": 0.05 * jax.random.normal(keys[3], (F,), jnp.float32),
        "bn_mean": 0.02 * jax.random.normal(keys[4], (F,), jnp.float32),
        "bn_var": 1.0 + 0.1 * jnp.abs(jax.random.normal(keys[5], (F,), jnp.float32)),
        "bn_eps": jnp.float32(1e-5),
        "w2": jax.random.normal(keys[6], (F, F), jnp.float32) * 0.1,
        "b2": jax.random.normal(keys[7], (F,), jnp.float32) * 0.05,
    }

    xyz = jax.random.normal(keys[8], (B, N, C_in), jnp.float32)
    ref = _reference(xyz, params)

    # Fast path: f32 VPU conv1, bf16 MXU conv2 (f32 accumulate), f32 output.
    out = position_embedding_learned(xyz, params)
    out = jax.block_until_ready(out)
    assert out.shape == (B, F, N), out.shape
    err_bf16 = float(jnp.max(jnp.abs(out - ref)))
    assert err_bf16 < 3e-2, err_bf16

    # Strict f32 path on a ragged N (exercises the masked final block — no pad,
    # no post-kernel slice).
    N2 = 600
    xyz2 = xyz[:, :N2, :]
    ref2 = _reference(xyz2, params)
    out2 = position_embedding_learned(xyz2, params, tile_n=512, use_bf16_matmul=False)
    out2 = jax.block_until_ready(out2)
    assert out2.shape == (B, F, N2), out2.shape
    err_f32 = float(jnp.max(jnp.abs(out2 - ref2)))
    assert err_f32 < 5e-3, err_f32   # K=256 contraction; headroom for MXU pass modes

    print("KERNEL_OK")
</pallas_src>

<mosaic_0001>
module attributes {stable_mosaic.version = 11 : i64} {
  func.func @_pos_emb_kernel(%arg0: i32, %arg1: i32, %arg2: memref<1x3x1024xf32, #tpu.memory_space<vmem>>, %arg3: memref<256x3xf32, #tpu.memory_space<vmem>>, %arg4: memref<256x256xbf16, #tpu.memory_space<vmem>>, %arg5: memref<256x2xf32, #tpu.memory_space<vmem>>, %arg6: memref<1x256x1024xf32, #tpu.memory_space<vmem>>) attributes {dimension_semantics = [#tpu.dimension_semantics<parallel>, #tpu.dimension_semantics<parallel>], iteration_bounds = array<i64: 2, 1>, scalar_prefetch = 0 : i64, scratch_operands = 0 : i64, tpu.core_type = #tpu.core_type<tc>, window_params = [{transform_indices = @transform_0, window_bounds = array<i64: 1, 3, 1024>}, {pipeline_mode = #tpu.pipeline_mode<synchronous>, transform_indices = @transform_1, window_bounds = array<i64: 256, 3>}, {pipeline_mode = #tpu.pipeline_mode<synchronous>, transform_indices = @transform_2, window_bounds = array<i64: 256, 256>}, {pipeline_mode = #tpu.pipeline_mode<synchronous>, transform_indices = @transform_3, window_bounds = array<i64: 256, 2>}, {transform_indices = @transform_4, window_bounds = array<i64: 1, 256, 1024>}]} {
    %c0 = arith.constant 0 : index
    %c0_0 = arith.constant 0 : index
    %c0_1 = arith.constant 0 : index
    %0 = vector.load %arg2[%c0, %c0_0, %c0_1] : memref<1x3x1024xf32, #tpu.memory_space<vmem>>, vector<1x3x1024xf32>
    %1 = vector.shape_cast %0 : vector<1x3x1024xf32> to vector<3x1024xf32>
    %c0_2 = arith.constant 0 : index
    %c0_3 = arith.constant 0 : index
    %2 = vector.load %arg3[%c0_2, %c0_3] : memref<256x3xf32, #tpu.memory_space<vmem>>, vector<256x1xf32>
    %3 = vector.extract_strided_slice %1 {offsets = [0, 0], sizes = [1, 1024], strides = [1, 1]} : vector<3x1024xf32> to vector<1x1024xf32>
    %4 = vector.broadcast %2 : vector<256x1xf32> to vector<256x1024xf32>
    %5 = vector.broadcast %3 : vector<1x1024xf32> to vector<256x1024xf32>
    %6 = arith.mulf %4, %5 : vector<256x1024xf32>
    %c0_4 = arith.constant 0 : index
    %c1 = arith.constant 1 : index
    %7 = vector.load %arg3[%c0_4, %c1] : memref<256x3xf32, #tpu.memory_space<vmem>>, vector<256x1xf32>
    %8 = vector.extract_strided_slice %1 {offsets = [1, 0], sizes = [1, 1024], strides = [1, 1]} : vector<3x1024xf32> to vector<1x1024xf32>
    %9 = vector.broadcast %7 : vector<256x1xf32> to vector<256x1024xf32>
    %10 = vector.broadcast %8 : vector<1x1024xf32> to vector<256x1024xf32>
    %11 = arith.mulf %9, %10 : vector<256x1024xf32>
    %12 = arith.addf %6, %11 : vector<256x1024xf32>
    %c0_5 = arith.constant 0 : index
    %c2 = arith.constant 2 : index
    %13 = vector.load %arg3[%c0_5, %c2] : memref<256x3xf32, #tpu.memory_space<vmem>>, vector<256x1xf32>
    %14 = vector.extract_strided_slice %1 {offsets = [2, 0], sizes = [1, 1024], strides = [1, 1]} : vector<3x1024xf32> to vector<1x1024xf32>
    %15 = vector.broadcast %13 : vector<256x1xf32> to vector<256x1024xf32>
    %16 = vector.broadcast %14 : vector<1x1024xf32> to vector<256x1024xf32>
    %17 = arith.mulf %15, %16 : vector<256x1024xf32>
    %18 = arith.addf %12, %17 : vector<256x1024xf32>
    %c0_6 = arith.constant 0 : index
    %c0_7 = arith.constant 0 : index
    %19 = vector.load %arg5[%c0_6, %c0_7] : memref<256x2xf32, #tpu.memory_space<vmem>>, vector<256x1xf32>
    %20 = vector.broadcast %19 : vector<256x1xf32> to vector<256x1024xf32>
    %21 = arith.addf %18, %20 : vector<256x1024xf32>
    %cst = arith.constant 0.000000e+00 : f32
    %22 = vector.broadcast %cst : f32 to vector<256x1024xf32>
    %23 = arith.maximumf %21, %22 : vector<256x1024xf32>
    %c0_8 = arith.constant 0 : index
    %c0_9 = arith.constant 0 : index
    %24 = vector.load %arg4[%c0_8, %c0_9] : memref<256x256xbf16, #tpu.memory_space<vmem>>, vector<256x256xbf16>
    %25 = arith.truncf %23 : vector<256x1024xf32> to vector<256x1024xbf16>
    %cst_10 = arith.constant dense<0.000000e+00> : vector<256x1024xf32>
    %26 = tpu.matmul %24, %25, %cst_10 {dimension_numbers = #tpu.dot_dimension_numbers<[1], [0], [0], [1], [0, 0, 1, 1], [], []>} : vector<256x256xbf16>, vector<256x1024xbf16>, vector<256x1024xf32> -> vector<256x1024xf32>
    %c0_11 = arith.constant 0 : index
    %c1_12 = arith.constant 1 : index
    %27 = vector.load %arg5[%c0_11, %c1_12] : memref<256x2xf32, #tpu.memory_space<vmem>>, vector<256x1xf32>
    %28 = vector.broadcast %27 : vector<256x1xf32> to vector<256x1024xf32>
    %29 = arith.addf %26, %28 : vector<256x1024xf32>
    %c0_13 = arith.constant 0 : index
    %c0_14 = arith.constant 0 : index
    %c0_15 = arith.constant 0 : index
    %30 = vector.load %arg6[%c0_13, %c0_14, %c0_15] : memref<1x256x1024xf32, #tpu.memory_space<vmem>>, vector<1x256x1024xf32>
    %31 = vector.shape_cast %30 : vector<1x256x1024xf32> to vector<256x1024xf32>
    %32 = vector.shape_cast %29 : vector<256x1024xf32> to vector<1x256x1024xf32>
    tpu.vector_store %arg6[%c0_13, %c0_14, %c0_15], %32 {strides = array<i32>} : memref<1x256x1024xf32, #tpu.memory_space<vmem>>, vector<1x256x1024xf32>,
    return
  }
  func.func @transform_0(%arg0: i32, %arg1: i32) -> (i32, i32, i32) {
    %c0_i32 = arith.constant 0 : i32
    %c0_i32_0 = arith.constant 0 : i32
    return %arg0, %c0_i32, %arg1 : i32, i32, i32
  }
  func.func @transform_1(%arg0: i32, %arg1: i32) -> (i32, i32) {
    %c0_i32 = arith.constant 0 : i32
    %c0_i32_0 = arith.constant 0 : i32
    %c0_i32_1 = arith.constant 0 : i32
    return %c0_i32, %c0_i32_0 : i32, i32
  }
  func.func @transform_2(%arg0: i32, %arg1: i32) -> (i32, i32) {
    %c0_i32 = arith.constant 0 : i32
    %c0_i32_0 = arith.constant 0 : i32
    %c0_i32_1 = arith.constant 0 : i32
    return %c0_i32, %c0_i32_0 : i32, i32
  }
  func.func @transform_3(%arg0: i32, %arg1: i32) -> (i32, i32) {
    %c0_i32 = arith.constant 0 : i32
    %c0_i32_0 = arith.constant 0 : i32
    %c0_i32_1 = arith.constant 0 : i32
    return %c0_i32, %c0_i32_0 : i32, i32
  }
  func.func @transform_4(%arg0: i32, %arg1: i32) -> (i32, i32, i32) {
    %c0_i32 = arith.constant 0 : i32
    %c0_i32_0 = arith.constant 0 : i32
    return %arg0, %c0_i32, %arg1 : i32, i32, i32
  }
}

</mosaic_0001>

<llo_original>
// kernel: tpu_custom_call.1
$region0: #{tpu_custom_call.1}
  #allocation0 [shape = 'u32[]', space=smem, size = 0x4, offset = 0x4, fixed_abs, tag = 'smem constant byte address 0x4 - core index']
  #allocation1 [shape = 'u32[144,128]{1,0:T(1,128)}', space=vmem, size = 0x12000, scoped, tag = 'internal scratch']
  %s0 = inlined_call_operand.vmem [shape: f32[2,3,1024], index: 0, kind: input, shape index: {}]
  %s1 = inlined_call_operand.vmem [shape: f32[256,3], index: 1, kind: input, shape index: {}]
  %s2 = inlined_call_operand.hbm [shape: bf16[256,256], index: 2, kind: input, shape index: {}]
  %s3 = inlined_call_operand.vmem [shape: f32[256,2], index: 3, kind: input, shape index: {}]
  %s4 = inlined_call_operand.hbm [shape: f32[2,256,1024], index: 4, kind: output, shape index: {}]
  %s5 = sld [smem:[#allocation0]]
  $region53: #{tpu_custom_call.1} parent=0
    _
  %s7 = ssub.s32 1, %s5
  %s8 = scalar_select 0, %s7, %s5
  $region1: #{tpu_custom_call.1} parent=0
    #allocation2 [shape = 'u8[131072]{0}', space=vmem, size = 0x20000, scoped, tag = 'input window, operand 2, single buffered']
    #allocation3 [shape = 's32[2]{0}', space=sflag, size = 0x8, scoped, tag = 'scoped memory for tpu_custom_call.1']
    #allocation4 [shape = 's32[2]{0}', space=sflag, size = 0x8, scoped, tag = 'scoped memory for tpu_custom_call.1']
    #allocation5 [shape = 'u8[2097152]{0}', space=vmem, size = 0x200000, scoped, tag = 'output window, operand 0']
    %9 = vsyncpa [#allocation3], 0
    %10 = vsyncpa [#allocation4], 0
    %s11 = scalar_lea.sflag [#allocation4], 1
    %12 = vsyncpa %s11, 0
    loop: start=0, step=1, limit=4
    $region2: #{tpu_custom_call.1} parent=1 // loop_pre_header
      _
    $region3: #{tpu_custom_call.1} parent=1 // loop_header
      %s14 = sphi 0, %s18
      %p15 = scmp.ge.s32.totalorder %s14, 4
      %s21 = sphi 0, %s33
      %s22 = sphi 0, %s29
      %s23 = sphi 0, %s21
      %s24 = sphi 0, %s22
      %s25 = sphi 0, %s23
      %s26 = sphi 0, %s24
      %s38 = sphi 0, %s40
      %s41 = sphi 0, %s38
      %s42 = sphi 0, %s41
      %s58 = sphi 0, %s42
      %s62 = sphi 0, %s62
      %s64 = sphi 0, %s62
      %s65 = sphi 0, %s64
      %s79 = sphi 0, %s65
      %s83 = sphi 0, %s83
      %s85 = sphi 0, %s83
      %s86 = sphi 0, %s85
      %s100 = sphi 0, %s86
      %s104 = sphi 0, %s104
      %s106 = sphi 0, %s104
      %s107 = sphi 0, %s106
      %s121 = sphi 0, %s107
      %s129 = sphi 0, %s131
      %s132 = sphi 0, %s129
      %s133 = sphi 0, %s132
      %s149 = sphi 0, %s133
    $region4: #{tpu_custom_call.1} parent=1 // loop_header_branch
      %17 = sbr.rel (%p15) target = $region8
    $region5: #{tpu_custom_call.1} parent=1 // loop_body
      %s19 = ssub.s32 %s14, 1
      %s20 = ssub.s32 %s14, 2
      %s27 = sadd.s32 1, %s22
      %p28 = scmp.ge.s32.totalorder %s27, 1
      %s29 = scalar_select %p28, 0, %s27
      %s30 = sadd.s32 1, %s21
      %s31 = scalar_select %p28, %s30, %s21
      %p32 = scmp.ge.s32.totalorder %s31, 2
      %s33 = scalar_select %p32, 0, %s31
      %s34 = ssub.s32 %s21, %s33
      %s35 = ssub.s32 %s22, %s29
      %s36 = sor.u32 %s34, %s35
      %p37 = scmp.eq.s32.totalorder %s36, 0
      %s39 = sadd.s32 %s38, 1
      %s40 = scalar_select %p37, %s38, %s39
      %p43 = pneg %p37
      %p44 = scmp.eq.s32.totalorder %s14, 1
      %p45 = por %p43, %p44
      %p46 = scmp.ne.s32.totalorder %s38, %s41
      %p47 = scmp.eq.s32.totalorder %s14, 0
      %p48 = por %p46, %p47
      %p49 = scmp.ne.s32.totalorder %s38, %s41
      %p50 = scmp.eq.s32.totalorder %s19, 1
      %p51 = por %p49, %p50
      %p52 = scmp.ne.s32.totalorder %s41, %s42
      %p53 = scmp.eq.s32.totalorder %s19, 0
      %p54 = por %p52, %p53
      %p55 = scmp.ne.s32.totalorder %s41, %s42
      %p56 = scmp.eq.s32.totalorder %s20, 1
      %p57 = por %p55, %p56
      %p59 = scmp.ne.s32.totalorder %s42, %s58
      %p60 = scmp.eq.s32.totalorder %s20, 0
      %p61 = por %p59, %p60
      %s63 = sadd.s32 %s62, 1
      %p66 = scmp.eq.s32.totalorder %s14, 1
      %p67 = scmp.ne.s32.totalorder %s62, %s64
      %p68 = scmp.eq.s32.totalorder %s14, 0
      %p69 = por %p67, %p68
      %p70 = scmp.ne.s32.totalorder %s62, %s64
      %p71 = scmp.eq.s32.totalorder %s19, 1
      %p72 = por %p70, %p71
      %p73 = scmp.ne.s32.totalorder %s64, %s65
      %p74 = scmp.eq.s32.totalorder %s19, 0
      %p75 = por %p73, %p74
      %p76 = scmp.ne.s32.totalorder %s64, %s65
      %p77 = scmp.eq.s32.totalorder %s20, 1
      %p78 = por %p76, %p77
      %p80 = scmp.ne.s32.totalorder %s65, %s79
      %p81 = scmp.eq.s32.totalorder %s20, 0
      %p82 = por %p80, %p81
      %s84 = sadd.s32 %s83, 1
      %p87 = scmp.eq.s32.totalorder %s14, 1
      %p88 = scmp.ne.s32.totalorder %s83, %s85
      %p89 = scmp.eq.s32.totalorder %s14, 0
      %p90 = por %p88, %p89
      %p91 = scmp.ne.s32.totalorder %s83, %s85
      %p92 = scmp.eq.s32.totalorder %s19, 1
      %p93 = por %p91, %p92
      %p94 = scmp.ne.s32.totalorder %s85, %s86
      %p95 = scmp.eq.s32.totalorder %s19, 0
      %p96 = por %p94, %p95
      %p97 = scmp.ne.s32.totalorder %s85, %s86
      %p98 = scmp.eq.s32.totalorder %s20, 1
      %p99 = por %p97, %p98
      %p101 = scmp.ne.s32.totalorder %s86, %s100
      %p102 = scmp.eq.s32.totalorder %s20, 0
      %p103 = por %p101, %p102
      %s105 = sadd.s32 %s104, 1
      %p108 = scmp.eq.s32.totalorder %s14, 1
      %p109 = scmp.ne.s32.totalorder %s104, %s106
      %p110 = scmp.eq.s32.totalorder %s14, 0
      %p111 = por %p109, %p110
      %p112 = scmp.ne.s32.totalorder %s104, %s106
      %p113 = scmp.eq.s32.totalorder %s19, 1
      %p114 = por %p112, %p113
      %p115 = scmp.ne.s32.totalorder %s106, %s107
      %p116 = scmp.eq.s32.totalorder %s19, 0
      %p117 = por %p115, %p116
      %p118 = scmp.ne.s32.totalorder %s106, %s107
      %p119 = scmp.eq.s32.totalorder %s20, 1
      %p120 = por %p118, %p119
      %p122 = scmp.ne.s32.totalorder %s107, %s121
      %p123 = scmp.eq.s32.totalorder %s20, 0
      %p124 = por %p122, %p123
      %s125 = ssub.s32 %s21, %s33
      %s126 = ssub.s32 %s22, %s29
      %s127 = sor.u32 %s125, %s126
      %p128 = scmp.eq.s32.totalorder %s127, 0
      %s130 = sadd.s32 %s129, 1
      %s131 = scalar_select %p128, %s129, %s130
      %p134 = pneg %p128
      %p135 = scmp.eq.s32.totalorder %s14, 1
      %p136 = por %p134, %p135
      %p137 = scmp.ne.s32.totalorder %s129, %s132
      %p138 = scmp.eq.s32.totalorder %s14, 0
      %p139 = por %p137, %p138
      %p140 = scmp.ne.s32.totalorder %s129, %s132
      %p141 = scmp.eq.s32.totalorder %s19, 1
      %p142 = por %p140, %p141
      %p143 = scmp.ne.s32.totalorder %s132, %s133
      %p144 = scmp.eq.s32.totalorder %s19, 0
      %p145 = por %p143, %p144
      %p146 = scmp.ne.s32.totalorder %s132, %s133
      %p147 = scmp.eq.s32.totalorder %s20, 1
      %p148 = por %p146, %p147
      %p150 = scmp.ne.s32.totalorder %s133, %s149
      %p151 = scmp.eq.s32.totalorder %s20, 0
      %p152 = por %p150, %p151
      %p153 = scmp.le.s32.totalorder 1, %s14
      %p154 = scmp.lt.s32.totalorder %s14, 3
      %p155 = pnand %p153, %p154
      %p156 = pneg %p155
      // Predicated region
      $region9: #{tpu_custom_call.1} parent=5 // pred_check
        _
      $region10: #{tpu_custom_call.1} parent=5 // pred_check_branch
        %158 = sbr.rel (%p155) target = $region12
      $region11: #{tpu_custom_call.1} parent=5 // pred_region
        %s159 = ssub.s32 %s14, 1
        // Predicated region
        $region13: #{tpu_custom_call.1} parent=11 // pred_check
          %p160 = pneg %p75
        $region14: #{tpu_custom_call.1} parent=11 // pred_check_branch
          %162 = sbr.rel (%p160) target = $region16
        $region15: #{tpu_custom_call.1} parent=11 // pred_region
          _
        $region16: #{tpu_custom_call.1} parent=11 // pred_fallthru
          _
        // Predicated region
        $region17: #{tpu_custom_call.1} parent=11 // pred_check
          %p163 = pneg %p96
        $region18: #{tpu_custom_call.1} parent=11 // pred_check_branch
          %165 = sbr.rel (%p163) target = $region20
        $region19: #{tpu_custom_call.1} parent=11 // pred_region
          %s167 = ssub.s32 4096, 4096
          %168 = vsyncadd [#allocation3], %s167
          %s169 = sshll.u32 [#allocation2], 4
          %s170 = int_to_ptr.vmem [resolvable:$true] %s169
          %175 = dma.hbm_to_vmem [thread:$0]  %s2, 4096, %s170, [#allocation3], 128, 128, 8
        $region20: #{tpu_custom_call.1} parent=11 // pred_fallthru
          _
        // Predicated region
        $region21: #{tpu_custom_call.1} parent=11 // pred_check
          %p176 = pneg %p117
        $region22: #{tpu_custom_call.1} parent=11 // pred_check_branch
          %178 = sbr.rel (%p176) target = $region24
        $region23: #{tpu_custom_call.1} parent=11 // pred_region
          _
        $region24: #{tpu_custom_call.1} parent=11 // pred_fallthru
          _
      $region12: #{tpu_custom_call.1} parent=5 // pred_fallthru
        _
      %p179 = scmp.lt.s32.totalorder %s14, 2
      // Predicated region
      $region25: #{tpu_custom_call.1} parent=5 // pred_check
        %p180 = pneg %p179
      $region26: #{tpu_custom_call.1} parent=5 // pred_check_branch
        %182 = sbr.rel (%p180) target = $region28
      $region27: #{tpu_custom_call.1} parent=5 // pred_region
        // Predicated region
        $region29: #{tpu_custom_call.1} parent=27 // pred_check
          %p183 = pneg %p48
        $region30: #{tpu_custom_call.1} parent=27 // pred_check_branch
          %185 = sbr.rel (%p183) target = $region32
        $region31: #{tpu_custom_call.1} parent=27 // pred_region
          %s186 = smul.u32 8, %s22
          %p187 = scmp.lt.s32.totalorder %s21, 1
          %s188 = scalar_select %p187, %s21, 1
          %p189 = scmp.lt.s32.totalorder %s186, 7
          %s190 = scalar_select %p189, %s186, 7
          %s191 = smul.addr %s188, 8
          %s192 = sadd.s32 %s190, %s191
          %s193 = smul.addr %s192, 4
          %s194 = scalar_lea.vmem %s0, %s193
          %s195 = smul.u32 8, %s22
        $region32: #{tpu_custom_call.1} parent=27 // pred_fallthru
          _
      $region28: #{tpu_custom_call.1} parent=5 // pred_fallthru
        _
      %p196 = scmp.le.s32.totalorder 1, %s14
      %p197 = scmp.lt.s32.totalorder %s14, 3
      %p198 = pnand %p196, %p197
      %p199 = pneg %p198
      // Predicated region
      $region33: #{tpu_custom_call.1} parent=5 // pred_check
        _
      $region34: #{tpu_custom_call.1} parent=5 // pred_check_branch
        %201 = sbr.rel (%p198) target = $region36
      $region35: #{tpu_custom_call.1} parent=5 // pred_region
        %s202 = ssub.s32 %s14, 1
        // Predicated region
        $region37: #{tpu_custom_call.1} parent=35 // pred_check
          %p203 = pneg %p96
        $region38: #{tpu_custom_call.1} parent=35 // pred_check_branch
          %205 = sbr.rel (%p203) target = $region40
        $region39: #{tpu_custom_call.1} parent=35 // pred_region
          %206 = dma.done [#allocation3], 4096
        $region40: #{tpu_custom_call.1} parent=35 // pred_fallthru
          _
        %s207 = smul.u32 8, %s24
        %p208 = scmp.lt.s32.totalorder %s23, 1
        %s209 = scalar_select %p208, %s23, 1
        %p210 = scmp.lt.s32.totalorder %s207, 7
        %s211 = scalar_select %p210, %s207, 7
        %s212 = smul.addr %s209, 8
        %s213 = sadd.s32 %s211, %s212
        %s214 = smul.addr %s213, 4
        %s215 = scalar_lea.vmem %s0, %s214
        %p216 = pneg %p54
        %p217 = pneg %p51
        %p218 = pneg %p75
        %p219 = pneg %p72
        %p220 = pneg %p96
        %p221 = pneg %p93
        %p222 = pneg %p117
        %p223 = pneg %p114
        %p224 = pneg %p145
        %p225 = pneg %p142
        %s226 = sand.u32 %s132, 1
        %s227 = scalar_lea.sflag [#allocation4], %s226
        %s228 = sand.u32 %s132, 1
        %s229 = smul.addr %s228, 2048
        %s230 = scalar_lea.vmem [#allocation5], %s229
        %s231 = smul.u32 8, %s24
        %p232 = scmp.lt.s32.totalorder %s23, 1
        %s233 = scalar_select %p232, %s23, 1
        %p234 = scmp.lt.s32.totalorder %s231, 7
        %s235 = scalar_select %p234, %s231, 7
        %s236 = smul.addr %s233, 8
        %s237 = sadd.s32 %s235, %s236
        %s238 = smul.addr %s237, 4
        %s239 = scalar_lea.vmem %s0, %s238
        %s240 = smul.u32 8, %s24
        %s241 = smul.u32 8, %s24
        %v242 = vld [vmem:[%s239] sm:$0x77]
        %v243 = vld [vmem:[%s239 + $0x8] sm:$0x77]
        %v244 = vld [vmem:[%s239 + $0x10] sm:$0x77]
        %v245 = vld [vmem:[%s239 + $0x18] sm:$0x77]
        %v246 = vld [vmem:[%s1] sm:$0xff]
        %v247 = vld [vmem:[%s1 + $0x8] sm:$0xff]
        %v248 = vld [vmem:[%s1 + $0x10] sm:$0xff]
        %v249 = vld [vmem:[%s1 + $0x18] sm:$0xff]
        %v250 = vld [vmem:[%s1 + $0x20] sm:$0xff]
        %v251 = vld [vmem:[%s1 + $0x28] sm:$0xff]
        %v252 = vld [vmem:[%s1 + $0x30] sm:$0xff]
        %v253 = vld [vmem:[%s1 + $0x38] sm:$0xff]
        %v254 = vld [vmem:[%s1 + $0x40] sm:$0xff]
        %v255 = vld [vmem:[%s1 + $0x48] sm:$0xff]
        %v256 = vld [vmem:[%s1 + $0x50] sm:$0xff]
        %v257 = vld [vmem:[%s1 + $0x58] sm:$0xff]
        %v258 = vld [vmem:[%s1 + $0x60] sm:$0xff]
        %v259 = vld [vmem:[%s1 + $0x68] sm:$0xff]
        %v260 = vld [vmem:[%s1 + $0x70] sm:$0xff]
        %v261 = vld [vmem:[%s1 + $0x78] sm:$0xff]
        %v262 = vld [vmem:[%s1 + $0x80] sm:$0xff]
        %v263 = vld [vmem:[%s1 + $0x88] sm:$0xff]
        %v264 = vld [vmem:[%s1 + $0x90] sm:$0xff]
        %v265 = vld [vmem:[%s1 + $0x98] sm:$0xff]
        %v266 = vld [vmem:[%s1 + $0xa0] sm:$0xff]
        %v267 = vld [vmem:[%s1 + $0xa8] sm:$0xff]
        %v268 = vld [vmem:[%s1 + $0xb0] sm:$0xff]
        %v269 = vld [vmem:[%s1 + $0xb8] sm:$0xff]
        %v270 = vld [vmem:[%s1 + $0xc0] sm:$0xff]
        %v271 = vld [vmem:[%s1 + $0xc8] sm:$0xff]
        %v272 = vld [vmem:[%s1 + $0xd0] sm:$0xff]
        %v273 = vld [vmem:[%s1 + $0xd8] sm:$0xff]
        %v274 = vld [vmem:[%s1 + $0xe0] sm:$0xff]
        %v275 = vld [vmem:[%s1 + $0xe8] sm:$0xff]
        %v276 = vld [vmem:[%s1 + $0xf0] sm:$0xff]
        %v277 = vld [vmem:[%s1 + $0xf8] sm:$0xff]
        %279 = vset.pattern.permute.xlu0 0
        %280 = vperm.xlu0 %279, %v246
        %v281 = vpop.permute.xlu0 %280
        %284 = vset.pattern.permute.xlu0 0
        %285 = vperm.xlu0 %284, %v247
        %v286 = vpop.permute.xlu0 %285
        %289 = vset.pattern.permute.xlu0 0
        %290 = vperm.xlu0 %289, %v248
        %v291 = vpop.permute.xlu0 %290
        %294 = vset.pattern.permute.xlu0 0
        %295 = vperm.xlu0 %294, %v249
        %v296 = vpop.permute.xlu0 %295
        %299 = vset.pattern.permute.xlu0 0
        %300 = vperm.xlu0 %299, %v250
        %v301 = vpop.permute.xlu0 %300
        %304 = vset.pattern.permute.xlu0 0
        %305 = vperm.xlu0 %304, %v251
        %v306 = vpop.permute.xlu0 %305
        %309 = vset.pattern.permute.xlu0 0
        %310 = vperm.xlu0 %309, %v252
        %v311 = vpop.permute.xlu0 %310
        %314 = vset.pattern.permute.xlu0 0
        %315 = vperm.xlu0 %314, %v253
        %v316 = vpop.permute.xlu0 %315
        %319 = vset.pattern.permute.xlu0 0
        %320 = vperm.xlu0 %319, %v254
        %v321 = vpop.permute.xlu0 %320
        %324 = vset.pattern.permute.xlu0 0
        %325 = vperm.xlu0 %324, %v255
        %v326 = vpop.permute.xlu0 %325
        %329 = vset.pattern.permute.xlu0 0
        %330 = vperm.xlu0 %329, %v256
        %v331 = vpop.permute.xlu0 %330
        %334 = vset.pattern.permute.xlu0 0
        %335 = vperm.xlu0 %334, %v257
        %v336 = vpop.permute.xlu0 %335
        %339 = vset.pattern.permute.xlu0 0
        %340 = vperm.xlu0 %339, %v258
        %v341 = vpop.permute.xlu0 %340
        %344 = vset.pattern.permute.xlu0 0
        %345 = vperm.xlu0 %344, %v259
        %v346 = vpop.permute.xlu0 %345
        %349 = vset.pattern.permute.xlu0 0
        %350 = vperm.xlu0 %349, %v260
        %v351 = vpop.permute.xlu0 %350
        %354 = vset.pattern.permute.xlu0 0
        %355 = vperm.xlu0 %354, %v261
        %v356 = vpop.permute.xlu0 %355
        %359 = vset.pattern.permute.xlu0 0
        %360 = vperm.xlu0 %359, %v262
        %v361 = vpop.permute.xlu0 %360
        %364 = vset.pattern.permute.xlu0 0
        %365 = vperm.xlu0 %364, %v263
        %v366 = vpop.permute.xlu0 %365
        %369 = vset.pattern.permute.xlu0 0
        %370 = vperm.xlu0 %369, %v264
        %v371 = vpop.permute.xlu0 %370
        %374 = vset.pattern.permute.xlu0 0
        %375 = vperm.xlu0 %374, %v265
        %v376 = vpop.permute.xlu0 %375
        %379 = vset.pattern.permute.xlu0 0
        %380 = vperm.xlu0 %379, %v266
        %v381 = vpop.permute.xlu0 %380
        %384 = vset.pattern.permute.xlu0 0
        %385 = vperm.xlu0 %384, %v267
        %v386 = vpop.permute.xlu0 %385
        %389 = vset.pattern.permute.xlu0 0
        %390 = vperm.xlu0 %389, %v268
        %v391 = vpop.permute.xlu0 %390
        %394 = vset.pattern.permute.xlu0 0
        %395 = vperm.xlu0 %394, %v269
        %v396 = vpop.permute.xlu0 %395
        %399 = vset.pattern.permute.xlu0 0
        %400 = vperm.xlu0 %399, %v270
        %v401 = vpop.permute.xlu0 %400
        %404 = vset.pattern.permute.xlu0 0
        %405 = vperm.xlu0 %404, %v271
        %v406 = vpop.permute.xlu0 %405
        %409 = vset.pattern.permute.xlu0 0
        %410 = vperm.xlu0 %409, %v272
        %v411 = vpop.permute.xlu0 %410
        %414 = vset.pattern.permute.xlu0 0
        %415 = vperm.xlu0 %414, %v273
        %v416 = vpop.permute.xlu0 %415
        %419 = vset.pattern.permute.xlu0 0
        %420 = vperm.xlu0 %419, %v274
        %v421 = vpop.permute.xlu0 %420
        %424 = vset.pattern.permute.xlu0 0
        %425 = vperm.xlu0 %424, %v275
        %v426 = vpop.permute.xlu0 %425
        %429 = vset.pattern.permute.xlu0 0
        %430 = vperm.xlu0 %429, %v276
        %v431 = vpop.permute.xlu0 %430
        %434 = vset.pattern.permute.xlu0 0
        %435 = vperm.xlu0 %434, %v277
        %v436 = vpop.permute.xlu0 %435
        %v442 = vlaneseq
        %v443 = vshrl.u32 %v442, 7
        %v444 = vsub.s32 0, %v443
        %v445 = vrot.slane %v242, %v444
        %v446 = vlaneseq
        %v447 = vshrl.u32 %v446, 7
        %v448 = vsub.s32 4, %v447
        %v449 = vrot.slane %v242, %v448
        %v450 = vlaneseq
        %v451 = vshrl.u32 %v450, 7
        %v452 = vsub.s32 0, %v451
        %v453 = vrot.slane %v243, %v452
        %v454 = vlaneseq
        %v455 = vshrl.u32 %v454, 7
        %v456 = vsub.s32 4, %v455
        %v457 = vrot.slane %v243, %v456
        %v458 = vlaneseq
        %v459 = vshrl.u32 %v458, 7
        %v460 = vsub.s32 0, %v459
        %v461 = vrot.slane %v244, %v460
        %v462 = vlaneseq
        %v463 = vshrl.u32 %v462, 7
        %v464 = vsub.s32 4, %v463
        %v465 = vrot.slane %v244, %v464
        %v466 = vlaneseq
        %v467 = vshrl.u32 %v466, 7
        %v468 = vsub.s32 0, %v467
        %v469 = vrot.slane %v245, %v468
        %v470 = vlaneseq
        %v471 = vshrl.u32 %v470, 7
        %v472 = vsub.s32 4, %v471
        %v473 = vrot.slane %v245, %v472
        %v482 = vlaneseq
        %v483 = vshrl.u32 %v482, 7
        %v484 = vsub.s32 0, %v483
        %v485 = vrot.slane %v445, %v484
        %v486 = vlaneseq
        %v487 = vshrl.u32 %v486, 7
        %v488 = vsub.s32 0, %v487
        %v489 = vrot.slane %v449, %v488
        %v490 = vlaneseq
        %v491 = vshrl.u32 %v490, 7
        %v492 = vsub.s32 0, %v491
        %v493 = vrot.slane %v453, %v492
        %v494 = vlaneseq
        %v495 = vshrl.u32 %v494, 7
        %v496 = vsub.s32 0, %v495
        %v497 = vrot.slane %v457, %v496
        %v498 = vlaneseq
        %v499 = vshrl.u32 %v498, 7
        %v500 = vsub.s32 0, %v499
        %v501 = vrot.slane %v461, %v500
        %v502 = vlaneseq
        %v503 = vshrl.u32 %v502, 7
        %v504 = vsub.s32 0, %v503
        %v505 = vrot.slane %v465, %v504
        %v506 = vlaneseq
        %v507 = vshrl.u32 %v506, 7
        %v508 = vsub.s32 0, %v507
        %v509 = vrot.slane %v469, %v508
        %v510 = vlaneseq
        %v511 = vshrl.u32 %v510, 7
        %v512 = vsub.s32 0, %v511
        %v513 = vrot.slane %v473, %v512
        %v514 = vmul.f32 %v281, %v485
        %v515 = vmul.f32 %v281, %v489
        %v516 = vmul.f32 %v281, %v493
        %v517 = vmul.f32 %v281, %v497
        %v518 = vmul.f32 %v281, %v501
        %v519 = vmul.f32 %v281, %v505
        %v520 = vmul.f32 %v281, %v509
        %v521 = vmul.f32 %v281, %v513
        %v522 = vmul.f32 %v286, %v485
        %v523 = vmul.f32 %v286, %v489
        %v524 = vmul.f32 %v286, %v493
        %v525 = vmul.f32 %v286, %v497
        %v526 = vmul.f32 %v286, %v501
        %v527 = vmul.f32 %v286, %v505
        %v528 = vmul.f32 %v286, %v509
        %v529 = vmul.f32 %v286, %v513
        %v530 = vmul.f32 %v291, %v485
        %v531 = vmul.f32 %v291, %v489
        %v532 = vmul.f32 %v291, %v493
        %v533 = vmul.f32 %v291, %v497
        %v534 = vmul.f32 %v291, %v501
        %v535 = vmul.f32 %v291, %v505
        %v536 = vmul.f32 %v291, %v509
        %v537 = vmul.f32 %v291, %v513
        %v538 = vmul.f32 %v296, %v485
        %v539 = vmul.f32 %v296, %v489
        %v540 = vmul.f32 %v296, %v493
        %v541 = vmul.f32 %v296, %v497
        %v542 = vmul.f32 %v296, %v501
        %v543 = vmul.f32 %v296, %v505
        %v544 = vmul.f32 %v296, %v509
        %v545 = vmul.f32 %v296, %v513
        %v546 = vmul.f32 %v301, %v485
        %v547 = vmul.f32 %v301, %v489
        %v548 = vmul.f32 %v301, %v493
        %v549 = vmul.f32 %v301, %v497
        %v550 = vmul.f32 %v301, %v501
        %v551 = vmul.f32 %v301, %v505
        %v552 = vmul.f32 %v301, %v509
        %v553 = vmul.f32 %v301, %v513
        %v554 = vmul.f32 %v306, %v485
        %v555 = vmul.f32 %v306, %v489
        %v556 = vmul.f32 %v306, %v493
        %v557 = vmul.f32 %v306, %v497
        %v558 = vmul.f32 %v306, %v501
        %v559 = vmul.f32 %v306, %v505
        %v560 = vmul.f32 %v306, %v509
        %v561 = vmul.f32 %v306, %v513
        %v562 = vmul.f32 %v311, %v485
        %v563 = vmul.f32 %v311, %v489
        %v564 = vmul.f32 %v311, %v493
        %v565 = vmul.f32 %v311, %v497
        %v566 = vmul.f32 %v311, %v501
        %v567 = vmul.f32 %v311, %v505
        %v568 = vmul.f32 %v311, %v509
        %v569 = vmul.f32 %v311, %v513
        %v570 = vmul.f32 %v316, %v485
        %v571 = vmul.f32 %v316, %v489
        %v572 = vmul.f32 %v316, %v493
        %v573 = vmul.f32 %v316, %v497
        %v574 = vmul.f32 %v316, %v501
        %v575 = vmul.f32 %v316, %v505
        %v576 = vmul.f32 %v316, %v509
        %v577 = vmul.f32 %v316, %v513
        %v578 = vmul.f32 %v321, %v485
        %v579 = vmul.f32 %v321, %v489
        %v580 = vmul.f32 %v321, %v493
        %v581 = vmul.f32 %v321, %v497
        %v582 = vmul.f32 %v321, %v501
        %v583 = vmul.f32 %v321, %v505
        %v584 = vmul.f32 %v321, %v509
        %v585 = vmul.f32 %v321, %v513
        %v586 = vmul.f32 %v326, %v485
        %v587 = vmul.f32 %v326, %v489
        %v588 = vmul.f32 %v326, %v493
        %v589 = vmul.f32 %v326, %v497
        %v590 = vmul.f32 %v326, %v501
        %v591 = vmul.f32 %v326, %v505
        %v592 = vmul.f32 %v326, %v509
        %v593 = vmul.f32 %v326, %v513
        %v594 = vmul.f32 %v331, %v485
        %v595 = vmul.f32 %v331, %v489
        %v596 = vmul.f32 %v331, %v493
        %v597 = vmul.f32 %v331, %v497
        %v598 = vmul.f32 %v331, %v501
        %v599 = vmul.f32 %v331, %v505
        %v600 = vmul.f32 %v331, %v509
        %v601 = vmul.f32 %v331, %v513
        %v602 = vmul.f32 %v336, %v485
        %v603 = vmul.f32 %v336, %v489
        %v604 = vmul.f32 %v336, %v493
        %v605 = vmul.f32 %v336, %v497
        %v606 = vmul.f32 %v336, %v501
        %v607 = vmul.f32 %v336, %v505
        %v608 = vmul.f32 %v336, %v509
        %v609 = vmul.f32 %v336, %v513
        %v610 = vmul.f32 %v341, %v485
        %v611 = vmul.f32 %v341, %v489
        %v612 = vmul.f32 %v341, %v493
        %v613 = vmul.f32 %v341, %v497
        %v614 = vmul.f32 %v341, %v501
        %v615 = vmul.f32 %v341, %v505
        %v616 = vmul.f32 %v341, %v509
        %v617 = vmul.f32 %v341, %v513
        %v618 = vmul.f32 %v346, %v485
        %v619 = vmul.f32 %v346, %v489
        %v620 = vmul.f32 %v346, %v493
        %v621 = vmul.f32 %v346, %v497
        %v622 = vmul.f32 %v346, %v501
        %v623 = vmul.f32 %v346, %v505
        %v624 = vmul.f32 %v346, %v509
        %v625 = vmul.f32 %v346, %v513
        %v626 = vmul.f32 %v351, %v485
        %v627 = vmul.f32 %v351, %v489
        %v628 = vmul.f32 %v351, %v493
        %v629 = vmul.f32 %v351, %v497
        %v630 = vmul.f32 %v351, %v501
        %v631 = vmul.f32 %v351, %v505
        %v632 = vmul.f32 %v351, %v509
        %v633 = vmul.f32 %v351, %v513
        %v634 = vmul.f32 %v356, %v485
        %v635 = vmul.f32 %v356, %v489
        %v636 = vmul.f32 %v356, %v493
        %v637 = vmul.f32 %v356, %v497
        %v638 = vmul.f32 %v356, %v501
        %v639 = vmul.f32 %v356, %v505
        %v640 = vmul.f32 %v356, %v509
        %v641 = vmul.f32 %v356, %v513
        %v642 = vmul.f32 %v361, %v485
        %v643 = vmul.f32 %v361, %v489
        %v644 = vmul.f32 %v361, %v493
        %v645 = vmul.f32 %v361, %v497
        %v646 = vmul.f32 %v361, %v501
        %v647 = vmul.f32 %v361, %v505
        %v648 = vmul.f32 %v361, %v509
        %v649 = vmul.f32 %v361, %v513
        %v650 = vmul.f32 %v366, %v485
        %v651 = vmul.f32 %v366, %v489
        %v652 = vmul.f32 %v366, %v493
        %v653 = vmul.f32 %v366, %v497
        %v654 = vmul.f32 %v366, %v501
        %v655 = vmul.f32 %v366, %v505
        %v656 = vmul.f32 %v366, %v509
        %v657 = vmul.f32 %v366, %v513
        %v658 = vmul.f32 %v371, %v485
        %v659 = vmul.f32 %v371, %v489
        %v660 = vmul.f32 %v371, %v493
        %v661 = vmul.f32 %v371, %v497
        %v662 = vmul.f32 %v371, %v501
        %v663 = vmul.f32 %v371, %v505
        %v664 = vmul.f32 %v371, %v509
        %v665 = vmul.f32 %v371, %v513
        %v666 = vmul.f32 %v376, %v485
        %v667 = vmul.f32 %v376, %v489
        %v668 = vmul.f32 %v376, %v493
        %v669 = vmul.f32 %v376, %v497
        %v670 = vmul.f32 %v376, %v501
        %v671 = vmul.f32 %v376, %v505
        %v672 = vmul.f32 %v376, %v509
        %v673 = vmul.f32 %v376, %v513
        %v674 = vmul.f32 %v381, %v485
        %v675 = vmul.f32 %v381, %v489
        %v676 = vmul.f32 %v381, %v493
        %v677 = vmul.f32 %v381, %v497
        %v678 = vmul.f32 %v381, %v501
        %v679 = vmul.f32 %v381, %v505
        %v680 = vmul.f32 %v381, %v509
        %v681 = vmul.f32 %v381, %v513
        %v682 = vmul.f32 %v386, %v485
        %v683 = vmul.f32 %v386, %v489
        %v684 = vmul.f32 %v386, %v493
        %v685 = vmul.f32 %v386, %v497
        %v686 = vmul.f32 %v386, %v501
        %v687 = vmul.f32 %v386, %v505
        %v688 = vmul.f32 %v386, %v509
        %v689 = vmul.f32 %v386, %v513
        %v690 = vmul.f32 %v391, %v485
        %v691 = vmul.f32 %v391, %v489
        %v692 = vmul.f32 %v391, %v493
        %v693 = vmul.f32 %v391, %v497
        %v694 = vmul.f32 %v391, %v501
        %v695 = vmul.f32 %v391, %v505
        %v696 = vmul.f32 %v391, %v509
        %v697 = vmul.f32 %v391, %v513
        %v698 = vmul.f32 %v396, %v485
        %v699 = vmul.f32 %v396, %v489
        %v700 = vmul.f32 %v396, %v493
        %v701 = vmul.f32 %v396, %v497
        %v702 = vmul.f32 %v396, %v501
        %v703 = vmul.f32 %v396, %v505
        %v704 = vmul.f32 %v396, %v509
        %v705 = vmul.f32 %v396, %v513
        %v706 = vmul.f32 %v401, %v485
        %v707 = vmul.f32 %v401, %v489
        %v708 = vmul.f32 %v401, %v493
        %v709 = vmul.f32 %v401, %v497
        %v710 = vmul.f32 %v401, %v501
        %v711 = vmul.f32 %v401, %v505
        %v712 = vmul.f32 %v401, %v509
        %v713 = vmul.f32 %v401, %v513
        %v714 = vmul.f32 %v406, %v485
        %v715 = vmul.f32 %v406, %v489
        %v716 = vmul.f32 %v406, %v493
        %v717 = vmul.f32 %v406, %v497
        %v718 = vmul.f32 %v406, %v501
        %v719 = vmul.f32 %v406, %v505
        %v720 = vmul.f32 %v406, %v509
        %v721 = vmul.f32 %v406, %v513
        %v722 = vmul.f32 %v411, %v485
        %v723 = vmul.f32 %v411, %v489
        %v724 = vmul.f32 %v411, %v493
        %v725 = vmul.f32 %v411, %v497
        %v726 = vmul.f32 %v411, %v501
        %v727 = vmul.f32 %v411, %v505
        %v728 = vmul.f32 %v411, %v509
        %v729 = vmul.f32 %v411, %v513
        %v730 = vmul.f32 %v416, %v485
        %v731 = vmul.f32 %v416, %v489
        %v732 = vmul.f32 %v416, %v493
        %v733 = vmul.f32 %v416, %v497
        %v734 = vmul.f32 %v416, %v501
        %v735 = vmul.f32 %v416, %v505
        %v736 = vmul.f32 %v416, %v509
        %v737 = vmul.f32 %v416, %v513
        %v738 = vmul.f32 %v421, %v485
        %v739 = vmul.f32 %v421, %v489
        %v740 = vmul.f32 %v421, %v493
        %v741 = vmul.f32 %v421, %v497
        %v742 = vmul.f32 %v421, %v501
        %v743 = vmul.f32 %v421, %v505
        %v744 = vmul.f32 %v421, %v509
        %v745 = vmul.f32 %v421, %v513
        %v746 = vmul.f32 %v426, %v485
        %v747 = vmul.f32 %v426, %v489
        %v748 = vmul.f32 %v426, %v493
        %v749 = vmul.f32 %v426, %v497
        %v750 = vmul.f32 %v426, %v501
        %v751 = vmul.f32 %v426, %v505
        %v752 = vmul.f32 %v426, %v509
        %v753 = vmul.f32 %v426, %v513
        %v754 = vmul.f32 %v431, %v485
        %v755 = vmul.f32 %v431, %v489
        %v756 = vmul.f32 %v431, %v493
        %v757 = vmul.f32 %v431, %v497
        %v758 = vmul.f32 %v431, %v501
        %v759 = vmul.f32 %v431, %v505
        %v760 = vmul.f32 %v431, %v509
        %v761 = vmul.f32 %v431, %v513
        %v762 = vmul.f32 %v436, %v485
        %v763 = vmul.f32 %v436, %v489
        %v764 = vmul.f32 %v436, %v493
        %v765 = vmul.f32 %v436, %v497
        %v766 = vmul.f32 %v436, %v501
        %v767 = vmul.f32 %v436, %v505
        %v768 = vmul.f32 %v436, %v509
        %v769 = vmul.f32 %v436, %v513
        %770 = vset.pattern.permute.xlu0 1
        %771 = vperm.xlu0 %770, %v246
        %v772 = vpop.permute.xlu0 %771
        %774 = vset.pattern.permute.xlu0 1
        %775 = vperm.xlu0 %774, %v247
        %v776 = vpop.permute.xlu0 %775
        %778 = vset.pattern.permute.xlu0 1
        %779 = vperm.xlu0 %778, %v248
        %v780 = vpop.permute.xlu0 %779
        %782 = vset.pattern.permute.xlu0 1
        %783 = vperm.xlu0 %782, %v249
        %v784 = vpop.permute.xlu0 %783
        %786 = vset.pattern.permute.xlu0 1
        %787 = vperm.xlu0 %786, %v250
        %v788 = vpop.permute.xlu0 %787
        %790 = vset.pattern.permute.xlu0 1
        %791 = vperm.xlu0 %790, %v251
        %v792 = vpop.permute.xlu0 %791
        %794 = vset.pattern.permute.xlu0 1
        %795 = vperm.xlu0 %794, %v252
        %v796 = vpop.permute.xlu0 %795
        %798 = vset.pattern.permute.xlu0 1
        %799 = vperm.xlu0 %798, %v253
        %v800 = vpop.permute.xlu0 %799
        %802 = vset.pattern.permute.xlu0 1
        %803 = vperm.xlu0 %802, %v254
        %v804 = vpop.permute.xlu0 %803
        %806 = vset.pattern.permute.xlu0 1
        %807 = vperm.xlu0 %806, %v255
        %v808 = vpop.permute.xlu0 %807
        %810 = vset.pattern.permute.xlu0 1
        %811 = vperm.xlu0 %810, %v256
        %v812 = vpop.permute.xlu0 %811
        %814 = vset.pattern.permute.xlu0 1
        %815 = vperm.xlu0 %814, %v257
        %v816 = vpop.permute.xlu0 %815
        %818 = vset.pattern.permute.xlu0 1
        %819 = vperm.xlu0 %818, %v258
        %v820 = vpop.permute.xlu0 %819
        %822 = vset.pattern.permute.xlu0 1
        %823 = vperm.xlu0 %822, %v259
        %v824 = vpop.permute.xlu0 %823
        %826 = vset.pattern.permute.xlu0 1
        %827 = vperm.xlu0 %826, %v260
        %v828 = vpop.permute.xlu0 %827
        %830 = vset.pattern.permute.xlu0 1
        %831 = vperm.xlu0 %830, %v261
        %v832 = vpop.permute.xlu0 %831
        %834 = vset.pattern.permute.xlu0 1
        %835 = vperm.xlu0 %834, %v262
        %v836 = vpop.permute.xlu0 %835
        %838 = vset.pattern.permute.xlu0 1
        %839 = vperm.xlu0 %838, %v263
        %v840 = vpop.permute.xlu0 %839
        %842 = vset.pattern.permute.xlu0 1
        %843 = vperm.xlu0 %842, %v264
        %v844 = vpop.permute.xlu0 %843
        %846 = vset.pattern.permute.xlu0 1
        %847 = vperm.xlu0 %846, %v265
        %v848 = vpop.permute.xlu0 %847
        %850 = vset.pattern.permute.xlu0 1
        %851 = vperm.xlu0 %850, %v266
        %v852 = vpop.permute.xlu0 %851
        %854 = vset.pattern.permute.xlu0 1
        %855 = vperm.xlu0 %854, %v267
        %v856 = vpop.permute.xlu0 %855
        %858 = vset.pattern.permute.xlu0 1
        %859 = vperm.xlu0 %858, %v268
        %v860 = vpop.permute.xlu0 %859
        %862 = vset.pattern.permute.xlu0 1
        %863 = vperm.xlu0 %862, %v269
        %v864 = vpop.permute.xlu0 %863
        %866 = vset.pattern.permute.xlu0 1
        %867 = vperm.xlu0 %866, %v270
        %v868 = vpop.permute.xlu0 %867
        %870 = vset.pattern.permute.xlu0 1
        %871 = vperm.xlu0 %870, %v271
        %v872 = vpop.permute.xlu0 %871
        %874 = vset.pattern.permute.xlu0 1
        %875 = vperm.xlu0 %874, %v272
        %v876 = vpop.permute.xlu0 %875
        %878 = vset.pattern.permute.xlu0 1
        %879 = vperm.xlu0 %878, %v273
        %v880 = vpop.permute.xlu0 %879
        %882 = vset.pattern.permute.xlu0 1
        %883 = vperm.xlu0 %882, %v274
        %v884 = vpop.permute.xlu0 %883
        %886 = vset.pattern.permute.xlu0 1
        %887 = vperm.xlu0 %886, %v275
        %v888 = vpop.permute.xlu0 %887
        %890 = vset.pattern.permute.xlu0 1
        %891 = vperm.xlu0 %890, %v276
        %v892 = vpop.permute.xlu0 %891
        %894 = vset.pattern.permute.xlu0 1
        %895 = vperm.xlu0 %894, %v277
        %v896 = vpop.permute.xlu0 %895
        %v898 = vlaneseq
        %v899 = vshrl.u32 %v898, 7
        %v900 = vsub.s32 1, %v899
        %v901 = vrot.slane %v242, %v900
        %v902 = vlaneseq
        %v903 = vshrl.u32 %v902, 7
        %v904 = vsub.s32 5, %v903
        %v905 = vrot.slane %v242, %v904
        %v906 = vlaneseq
        %v907 = vshrl.u32 %v906, 7
        %v908 = vsub.s32 1, %v907
        %v909 = vrot.slane %v243, %v908
        %v910 = vlaneseq
        %v911 = vshrl.u32 %v910, 7
        %v912 = vsub.s32 5, %v911
        %v913 = vrot.slane %v243, %v912
        %v914 = vlaneseq
        %v915 = vshrl.u32 %v914, 7
        %v916 = vsub.s32 1, %v915
        %v917 = vrot.slane %v244, %v916
        %v918 = vlaneseq
        %v919 = vshrl.u32 %v918, 7
        %v920 = vsub.s32 5, %v919
        %v921 = vrot.slane %v244, %v920
        %v922 = vlaneseq
        %v923 = vshrl.u32 %v922, 7
        %v924 = vsub.s32 1, %v923
        %v925 = vrot.slane %v245, %v924
        %v926 = vlaneseq
        %v927 = vshrl.u32 %v926, 7
        %v928 = vsub.s32 5, %v927
        %v929 = vrot.slane %v245, %v928
        %v938 = vlaneseq
        %v939 = vshrl.u32 %v938, 7
        %v940 = vsub.s32 1, %v939
        %v941 = vrot.slane %v901, %v940
        %v942 = vlaneseq
        %v943 = vshrl.u32 %v942, 7
        %v944 = vsub.s32 1, %v943
        %v945 = vrot.slane %v905, %v944
        %v946 = vlaneseq
        %v947 = vshrl.u32 %v946, 7
        %v948 = vsub.s32 1, %v947
        %v949 = vrot.slane %v909, %v948
        %v950 = vlaneseq
        %v951 = vshrl.u32 %v950, 7
        %v952 = vsub.s32 1, %v951
        %v953 = vrot.slane %v913, %v952
        %v954 = vlaneseq
        %v955 = vshrl.u32 %v954, 7
        %v956 = vsub.s32 1, %v955
        %v957 = vrot.slane %v917, %v956
        %v958 = vlaneseq
        %v959 = vshrl.u32 %v958, 7
        %v960 = vsub.s32 1, %v959
        %v961 = vrot.slane %v921, %v960
        %v962 = vlaneseq
        %v963 = vshrl.u32 %v962, 7
        %v964 = vsub.s32 1, %v963
        %v965 = vrot.slane %v925, %v964
        %v966 = vlaneseq
        %v967 = vshrl.u32 %v966, 7
        %v968 = vsub.s32 1, %v967
        %v969 = vrot.slane %v929, %v968
        %v970 = vmul.f32 %v772, %v941
        %v971 = vmul.f32 %v772, %v945
        %v972 = vmul.f32 %v772, %v949
        %v973 = vmul.f32 %v772, %v953
        %v974 = vmul.f32 %v772, %v957
        %v975 = vmul.f32 %v772, %v961
        %v976 = vmul.f32 %v772, %v965
        %v977 = vmul.f32 %v772, %v969
        %v978 = vmul.f32 %v776, %v941
        %v979 = vmul.f32 %v776, %v945
        %v980 = vmul.f32 %v776, %v949
        %v981 = vmul.f32 %v776, %v953
        %v982 = vmul.f32 %v776, %v957
        %v983 = vmul.f32 %v776, %v961
        %v984 = vmul.f32 %v776, %v965
        %v985 = vmul.f32 %v776, %v969
        %v986 = vmul.f32 %v780, %v941
        %v987 = vmul.f32 %v780, %v945
        %v988 = vmul.f32 %v780, %v949
        %v989 = vmul.f32 %v780, %v953
        %v990 = vmul.f32 %v780, %v957
        %v991 = vmul.f32 %v780, %v961
        %v992 = vmul.f32 %v780, %v965
        %v993 = vmul.f32 %v780, %v969
        %v994 = vmul.f32 %v784, %v941
        %v995 = vmul.f32 %v784, %v945
        %v996 = vmul.f32 %v784, %v949
        %v997 = vmul.f32 %v784, %v953
        %v998 = vmul.f32 %v784, %v957
        %v999 = vmul.f32 %v784, %v961
        %v1000 = vmul.f32 %v784, %v965
        %v1001 = vmul.f32 %v784, %v969
        %v1002 = vmul.f32 %v788, %v941
        %v1003 = vmul.f32 %v788, %v945
        %v1004 = vmul.f32 %v788, %v949
        %v1005 = vmul.f32 %v788, %v953
        %v1006 = vmul.f32 %v788, %v957
        %v1007 = vmul.f32 %v788, %v961
        %v1008 = vmul.f32 %v788, %v965
        %v1009 = vmul.f32 %v788, %v969
        %v1010 = vmul.f32 %v792, %v941
        %v1011 = vmul.f32 %v792, %v945
        %v1012 = vmul.f32 %v792, %v949
        %v1013 = vmul.f32 %v792, %v953
        %v1014 = vmul.f32 %v792, %v957
        %v1015 = vmul.f32 %v792, %v961
        %v1016 = vmul.f32 %v792, %v965
        %v1017 = vmul.f32 %v792, %v969
        %v1018 = vmul.f32 %v796, %v941
        %v1019 = vmul.f32 %v796, %v945
        %v1020 = vmul.f32 %v796, %v949
        %v1021 = vmul.f32 %v796, %v953
        %v1022 = vmul.f32 %v796, %v957
        %v1023 = vmul.f32 %v796, %v961
        %v1024 = vmul.f32 %v796, %v965
        %v1025 = vmul.f32 %v796, %v969
        %v1026 = vmul.f32 %v800, %v941
        %v1027 = vmul.f32 %v800, %v945
        %v1028 = vmul.f32 %v800, %v949
        %v1029 = vmul.f32 %v800, %v953
        %v1030 = vmul.f32 %v800, %v957
        %v1031 = vmul.f32 %v800, %v961
        %v1032 = vmul.f32 %v800, %v965
        %v1033 = vmul.f32 %v800, %v969
        %v1034 = vmul.f32 %v804, %v941
        %v1035 = vmul.f32 %v804, %v945
        %v1036 = vmul.f32 %v804, %v949
        %v1037 = vmul.f32 %v804, %v953
        %v1038 = vmul.f32 %v804, %v957
        %v1039 = vmul.f32 %v804, %v961
        %v1040 = vmul.f32 %v804, %v965
        %v1041 = vmul.f32 %v804, %v969
        %v1042 = vmul.f32 %v808, %v941
        %v1043 = vmul.f32 %v808, %v945
        %v1044 = vmul.f32 %v808, %v949
        %v1045 = vmul.f32 %v808, %v953
        %v1046 = vmul.f32 %v808, %v957
        %v1047 = vmul.f32 %v808, %v961
        %v1048 = vmul.f32 %v808, %v965
        %v1049 = vmul.f32 %v808, %v969
        %v1050 = vmul.f32 %v812, %v941
        %v1051 = vmul.f32 %v812, %v945
        %v1052 = vmul.f32 %v812, %v949
        %v1053 = vmul.f32 %v812, %v953
        %v1054 = vmul.f32 %v812, %v957
        %v1055 = vmul.f32 %v812, %v961
        %v1056 = vmul.f32 %v812, %v965
        %v1057 = vmul.f32 %v812, %v969
        %v1058 = vmul.f32 %v816, %v941
        %v1059 = vmul.f32 %v816, %v945
        %v1060 = vmul.f32 %v816, %v949
        %v1061 = vmul.f32 %v816, %v953
        %v1062 = vmul.f32 %v816, %v957
        %v1063 = vmul.f32 %v816, %v961
        %v1064 = vmul.f32 %v816, %v965
        %v1065 = vmul.f32 %v816, %v969
        %v1066 = vmul.f32 %v820, %v941
        %v1067 = vmul.f32 %v820, %v945
        %v1068 = vmul.f32 %v820, %v949
        %v1069 = vmul.f32 %v820, %v953
        %v1070 = vmul.f32 %v820, %v957
        %v1071 = vmul.f32 %v820, %v961
        %v1072 = vmul.f32 %v820, %v965
        %v1073 = vmul.f32 %v820, %v969
        %v1074 = vmul.f32 %v824, %v941
        %v1075 = vmul.f32 %v824, %v945
        %v1076 = vmul.f32 %v824, %v949
        %v1077 = vmul.f32 %v824, %v953
        %v1078 = vmul.f32 %v824, %v957
        %v1079 = vmul.f32 %v824, %v961
        %v1080 = vmul.f32 %v824, %v965
        %v1081 = vmul.f32 %v824, %v969
        %v1082 = vmul.f32 %v828, %v941
        %v1083 = vmul.f32 %v828, %v945
        %v1084 = vmul.f32 %v828, %v949
        %v1085 = vmul.f32 %v828, %v953
        %v1086 = vmul.f32 %v828, %v957
        %v1087 = vmul.f32 %v828, %v961
        %v1088 = vmul.f32 %v828, %v965
        %v1089 = vmul.f32 %v828, %v969
        %v1090 = vmul.f32 %v832, %v941
        %v1091 = vmul.f32 %v832, %v945
        %v1092 = vmul.f32 %v832, %v949
        %v1093 = vmul.f32 %v832, %v953
        %v1094 = vmul.f32 %v832, %v957
        %v1095 = vmul.f32 %v832, %v961
        %v1096 = vmul.f32 %v832, %v965
        %v1097 = vmul.f32 %v832, %v969
        %v1098 = vmul.f32 %v836, %v941
        %v1099 = vmul.f32 %v836, %v945
        %v1100 = vmul.f32 %v836, %v949
        %v1101 = vmul.f32 %v836, %v953
        %v1102 = vmul.f32 %v836, %v957
        %v1103 = vmul.f32 %v836, %v961
        %v1104 = vmul.f32 %v836, %v965
        %v1105 = vmul.f32 %v836, %v969
        %v1106 = vmul.f32 %v840, %v941
        %v1107 = vmul.f32 %v840, %v945
        %v1108 = vmul.f32 %v840, %v949
        %v1109 = vmul.f32 %v840, %v953
        %v1110 = vmul.f32 %v840, %v957
        %v1111 = vmul.f32 %v840, %v961
        %v1112 = vmul.f32 %v840, %v965
        %v1113 = vmul.f32 %v840, %v969
        %v1114 = vmul.f32 %v844, %v941
        %v1115 = vmul.f32 %v844, %v945
        %v1116 = vmul.f32 %v844, %v949
        %v1117 = vmul.f32 %v844, %v953
        %v1118 = vmul.f32 %v844, %v957
        %v1119 = vmul.f32 %v844, %v961
        %v1120 = vmul.f32 %v844, %v965
        %v1121 = vmul.f32 %v844, %v969
        %v1122 = vmul.f32 %v848, %v941
        %v1123 = vmul.f32 %v848, %v945
        %v1124 = vmul.f32 %v848, %v949
        %v1125 = vmul.f32 %v848, %v953
        %v1126 = vmul.f32 %v848, %v957
        %v1127 = vmul.f32 %v848, %v961
        %v1128 = vmul.f32 %v848, %v965
        %v1129 = vmul.f32 %v848, %v969
        %v1130 = vmul.f32 %v852, %v941
        %v1131 = vmul.f32 %v852, %v945
        %v1132 = vmul.f32 %v852, %v949
        %v1133 = vmul.f32 %v852, %v953
        %v1134 = vmul.f32 %v852, %v957
        %v1135 = vmul.f32 %v852, %v961
        %v1136 = vmul.f32 %v852, %v965
        %v1137 = vmul.f32 %v852, %v969
        %v1138 = vmul.f32 %v856, %v941
        %v1139 = vmul.f32 %v856, %v945
        %v1140 = vmul.f32 %v856, %v949
        %v1141 = vmul.f32 %v856, %v953
        %v1142 = vmul.f32 %v856, %v957
        %v1143 = vmul.f32 %v856, %v961
        %v1144 = vmul.f32 %v856, %v965
        %v1145 = vmul.f32 %v856, %v969
        %v1146 = vmul.f32 %v860, %v941
        %v1147 = vmul.f32 %v860, %v945
        %v1148 = vmul.f32 %v860, %v949
        %v1149 = vmul.f32 %v860, %v953
        %v1150 = vmul.f32 %v860, %v957
        %v1151 = vmul.f32 %v860, %v961
        %v1152 = vmul.f32 %v860, %v965
        %v1153 = vmul.f32 %v860, %v969
        %v1154 = vmul.f32 %v864, %v941
        %v1155 = vmul.f32 %v864, %v945
        %v1156 = vmul.f32 %v864, %v949
        %v1157 = vmul.f32 %v864, %v953
        %v1158 = vmul.f32 %v864, %v957
        %v1159 = vmul.f32 %v864, %v961
        %v1160 = vmul.f32 %v864, %v965
        %v1161 = vmul.f32 %v864, %v969
        %v1162 = vmul.f32 %v868, %v941
        %v1163 = vmul.f32 %v868, %v945
        %v1164 = vmul.f32 %v868, %v949
        %v1165 = vmul.f32 %v868, %v953
        %v1166 = vmul.f32 %v868, %v957
        %v1167 = vmul.f32 %v868, %v961
        %v1168 = vmul.f32 %v868, %v965
        %v1169 = vmul.f32 %v868, %v969
        %v1170 = vmul.f32 %v872, %v941
        %v1171 = vmul.f32 %v872, %v945
        %v1172 = vmul.f32 %v872, %v949
        %v1173 = vmul.f32 %v872, %v953
        %v1174 = vmul.f32 %v872, %v957
        %v1175 = vmul.f32 %v872, %v961
        %v1176 = vmul.f32 %v872, %v965
        %v1177 = vmul.f32 %v872, %v969
        %v1178 = vmul.f32 %v876, %v941
        %v1179 = vmul.f32 %v876, %v945
        %v1180 = vmul.f32 %v876, %v949
        %v1181 = vmul.f32 %v876, %v953
        %v1182 = vmul.f32 %v876, %v957
        %v1183 = vmul.f32 %v876, %v961
        %v1184 = vmul.f32 %v876, %v965
        %v1185 = vmul.f32 %v876, %v969
        %v1186 = vmul.f32 %v880, %v941
        %v1187 = vmul.f32 %v880, %v945
        %v1188 = vmul.f32 %v880, %v949
        %v1189 = vmul.f32 %v880, %v953
        %v1190 = vmul.f32 %v880, %v957
        %v1191 = vmul.f32 %v880, %v961
        %v1192 = vmul.f32 %v880, %v965
        %v1193 = vmul.f32 %v880, %v969
        %v1194 = vmul.f32 %v884, %v941
        %v1195 = vmul.f32 %v884, %v945
        %v1196 = vmul.f32 %v884, %v949
        %v1197 = vmul.f32 %v884, %v953
        %v1198 = vmul.f32 %v884, %v957
        %v1199 = vmul.f32 %v884, %v961
        %v1200 = vmul.f32 %v884, %v965
        %v1201 = vmul.f32 %v884, %v969
        %v1202 = vmul.f32 %v888, %v941
        %v1203 = vmul.f32 %v888, %v945
        %v1204 = vmul.f32 %v888, %v949
        %v1205 = vmul.f32 %v888, %v953
        %v1206 = vmul.f32 %v888, %v957
        %v1207 = vmul.f32 %v888, %v961
        %v1208 = vmul.f32 %v888, %v965
        %v1209 = vmul.f32 %v888, %v969
        %v1210 = vmul.f32 %v892, %v941
        %v1211 = vmul.f32 %v892, %v945
        %v1212 = vmul.f32 %v892, %v949
        %v1213 = vmul.f32 %v892, %v953
        %v1214 = vmul.f32 %v892, %v957
        %v1215 = vmul.f32 %v892, %v961
        %v1216 = vmul.f32 %v892, %v965
        %v1217 = vmul.f32 %v892, %v969
        %v1218 = vmul.f32 %v896, %v941
        %v1219 = vmul.f32 %v896, %v945
        %v1220 = vmul.f32 %v896, %v949
        %v1221 = vmul.f32 %v896, %v953
        %v1222 = vmul.f32 %v896, %v957
        %v1223 = vmul.f32 %v896, %v961
        %v1224 = vmul.f32 %v896, %v965
        %v1225 = vmul.f32 %v896, %v969
        %v1226 = vadd.f32 %v514, %v970
        %v1227 = vadd.f32 %v515, %v971
        %v1228 = vadd.f32 %v516, %v972
        %v1229 = vadd.f32 %v517, %v973
        %v1230 = vadd.f32 %v518, %v974
        %v1231 = vadd.f32 %v519, %v975
        %v1232 = vadd.f32 %v520, %v976
        %v1233 = vadd.f32 %v521, %v977
        %v1234 = vadd.f32 %v522, %v978
        %v1235 = vadd.f32 %v523, %v979
        %v1236 = vadd.f32 %v524, %v980
        %v1237 = vadd.f32 %v525, %v981
        %v1238 = vadd.f32 %v526, %v982
        %v1239 = vadd.f32 %v527, %v983
        %v1240 = vadd.f32 %v528, %v984
        %v1241 = vadd.f32 %v529, %v985
        %v1242 = vadd.f32 %v530, %v986
        %v1243 = vadd.f32 %v531, %v987
        %v1244 = vadd.f32 %v532, %v988
        %v1245 = vadd.f32 %v533, %v989
        %v1246 = vadd.f32 %v534, %v990
        %v1247 = vadd.f32 %v535, %v991
        %v1248 = vadd.f32 %v536, %v992
        %v1249 = vadd.f32 %v537, %v993
        %v1250 = vadd.f32 %v538, %v994
        %v1251 = vadd.f32 %v539, %v995
        %v1252 = vadd.f32 %v540, %v996
        %v1253 = vadd.f32 %v541, %v997
        %v1254 = vadd.f32 %v542, %v998
        %v1255 = vadd.f32 %v543, %v999
        %v1256 = vadd.f32 %v544, %v1000
        %v1257 = vadd.f32 %v545, %v1001
        %v1258 = vadd.f32 %v546, %v1002
        %v1259 = vadd.f32 %v547, %v1003
        %v1260 = vadd.f32 %v548, %v1004
        %v1261 = vadd.f32 %v549, %v1005
        %v1262 = vadd.f32 %v550, %v1006
        %v1263 = vadd.f32 %v551, %v1007
        %v1264 = vadd.f32 %v552, %v1008
        %v1265 = vadd.f32 %v553, %v1009
        %v1266 = vadd.f32 %v554, %v1010
        %v1267 = vadd.f32 %v555, %v1011
        %v1268 = vadd.f32 %v556, %v1012
        %v1269 = vadd.f32 %v557, %v1013
        %v1270 = vadd.f32 %v558, %v1014
        %v1271 = vadd.f32 %v559, %v1015
        %v1272 = vadd.f32 %v560, %v1016
        %v1273 = vadd.f32 %v561, %v1017
        %v1274 = vadd.f32 %v562, %v1018
        %v1275 = vadd.f32 %v563, %v1019
        %v1276 = vadd.f32 %v564, %v1020
        %v1277 = vadd.f32 %v565, %v1021
        %v1278 = vadd.f32 %v566, %v1022
        %v1279 = vadd.f32 %v567, %v1023
        %v1280 = vadd.f32 %v568, %v1024
        %v1281 = vadd.f32 %v569, %v1025
        %v1282 = vadd.f32 %v570, %v1026
        %v1283 = vadd.f32 %v571, %v1027
        %v1284 = vadd.f32 %v572, %v1028
        %v1285 = vadd.f32 %v573, %v1029
        %v1286 = vadd.f32 %v574, %v1030
        %v1287 = vadd.f32 %v575, %v1031
        %v1288 = vadd.f32 %v576, %v1032
        %v1289 = vadd.f32 %v577, %v1033
        %v1290 = vadd.f32 %v578, %v1034
        %v1291 = vadd.f32 %v579, %v1035
        %v1292 = vadd.f32 %v580, %v1036
        %v1293 = vadd.f32 %v581, %v1037
        %v1294 = vadd.f32 %v582, %v1038
        %v1295 = vadd.f32 %v583, %v1039
        %v1296 = vadd.f32 %v584, %v1040
        %v1297 = vadd.f32 %v585, %v1041
        %v1298 = vadd.f32 %v586, %v1042
        %v1299 = vadd.f32 %v587, %v1043
        %v1300 = vadd.f32 %v588, %v1044
        %v1301 = vadd.f32 %v589, %v1045
        %v1302 = vadd.f32 %v590, %v1046
        %v1303 = vadd.f32 %v591, %v1047
        %v1304 = vadd.f32 %v592, %v1048
        %v1305 = vadd.f32 %v593, %v1049
        %v1306 = vadd.f32 %v594, %v1050
        %v1307 = vadd.f32 %v595, %v1051
        %v1308 = vadd.f32 %v596, %v1052
        %v1309 = vadd.f32 %v597, %v1053
        %v1310 = vadd.f32 %v598, %v1054
        %v1311 = vadd.f32 %v599, %v1055
        %v1312 = vadd.f32 %v600, %v1056
        %v1313 = vadd.f32 %v601, %v1057
        %v1314 = vadd.f32 %v602, %v1058
        %v1315 = vadd.f32 %v603, %v1059
        %v1316 = vadd.f32 %v604, %v1060
        %v1317 = vadd.f32 %v605, %v1061
        %v1318 = vadd.f32 %v606, %v1062
        %v1319 = vadd.f32 %v607, %v1063
        %v1320 = vadd.f32 %v608, %v1064
        %v1321 = vadd.f32 %v609, %v1065
        %v1322 = vadd.f32 %v610, %v1066
        %v1323 = vadd.f32 %v611, %v1067
        %v1324 = vadd.f32 %v612, %v1068
        %v1325 = vadd.f32 %v613, %v1069
        %v1326 = vadd.f32 %v614, %v1070
        %v1327 = vadd.f32 %v615, %v1071
        %v1328 = vadd.f32 %v616, %v1072
        %v1329 = vadd.f32 %v617, %v1073
        %v1330 = vadd.f32 %v618, %v1074
        %v1331 = vadd.f32 %v619, %v1075
        %v1332 = vadd.f32 %v620, %v1076
        %v1333 = vadd.f32 %v621, %v1077
        %v1334 = vadd.f32 %v622, %v1078
        %v1335 = vadd.f32 %v623, %v1079
        %v1336 = vadd.f32 %v624, %v1080
        %v1337 = vadd.f32 %v625, %v1081
        %v1338 = vadd.f32 %v626, %v1082
        %v1339 = vadd.f32 %v627, %v1083
        %v1340 = vadd.f32 %v628, %v1084
        %v1341 = vadd.f32 %v629, %v1085
        %v1342 = vadd.f32 %v630, %v1086
        %v1343 = vadd.f32 %v631, %v1087
        %v1344 = vadd.f32 %v632, %v1088
        %v1345 = vadd.f32 %v633, %v1089
        %v1346 = vadd.f32 %v634, %v1090
        %v1347 = vadd.f32 %v635, %v1091
        %v1348 = vadd.f32 %v636, %v1092
        %v1349 = vadd.f32 %v637, %v1093
        %v1350 = vadd.f32 %v638, %v1094
        %v1351 = vadd.f32 %v639, %v1095
        %v1352 = vadd.f32 %v640, %v1096
        %v1353 = vadd.f32 %v641, %v1097
        %v1354 = vadd.f32 %v642, %v1098
        %v1355 = vadd.f32 %v643, %v1099
        %v1356 = vadd.f32 %v644, %v1100
        %v1357 = vadd.f32 %v645, %v1101
        %v1358 = vadd.f32 %v646, %v1102
        %v1359 = vadd.f32 %v647, %v1103
        %v1360 = vadd.f32 %v648, %v1104
        %v1361 = vadd.f32 %v649, %v1105
        %v1362 = vadd.f32 %v650, %v1106
        %v1363 = vadd.f32 %v651, %v1107
        %v1364 = vadd.f32 %v652, %v1108
        %v1365 = vadd.f32 %v653, %v1109
        %v1366 = vadd.f32 %v654, %v1110
        %v1367 = vadd.f32 %v655, %v1111
        %v1368 = vadd.f32 %v656, %v1112
        %v1369 = vadd.f32 %v657, %v1113
        %v1370 = vadd.f32 %v658, %v1114
        %v1371 = vadd.f32 %v659, %v1115
        %v1372 = vadd.f32 %v660, %v1116
        %v1373 = vadd.f32 %v661, %v1117
        %v1374 = vadd.f32 %v662, %v1118
        %v1375 = vadd.f32 %v663, %v1119
        %v1376 = vadd.f32 %v664, %v1120
        %v1377 = vadd.f32 %v665, %v1121
        %v1378 = vadd.f32 %v666, %v1122
        %v1379 = vadd.f32 %v667, %v1123
        %v1380 = vadd.f32 %v668, %v1124
        %v1381 = vadd.f32 %v669, %v1125
        %v1382 = vadd.f32 %v670, %v1126
        %v1383 = vadd.f32 %v671, %v1127
        %v1384 = vadd.f32 %v672, %v1128
        %v1385 = vadd.f32 %v673, %v1129
        %v1386 = vadd.f32 %v674, %v1130
        %v1387 = vadd.f32 %v675, %v1131
        %v1388 = vadd.f32 %v676, %v1132
        %v1389 = vadd.f32 %v677, %v1133
        %v1390 = vadd.f32 %v678, %v1134
        %v1391 = vadd.f32 %v679, %v1135
        %v1392 = vadd.f32 %v680, %v1136
        %v1393 = vadd.f32 %v681, %v1137
        %v1394 = vadd.f32 %v682, %v1138
        %v1395 = vadd.f32 %v683, %v1139
        %v1396 = vadd.f32 %v684, %v1140
        %v1397 = vadd.f32 %v685, %v1141
        %v1398 = vadd.f32 %v686, %v1142
        %v1399 = vadd.f32 %v687, %v1143
        %v1400 = vadd.f32 %v688, %v1144
        %v1401 = vadd.f32 %v689, %v1145
        %v1402 = vadd.f32 %v690, %v1146
        %v1403 = vadd.f32 %v691, %v1147
        %v1404 = vadd.f32 %v692, %v1148
        %v1405 = vadd.f32 %v693, %v1149
        %v1406 = vadd.f32 %v694, %v1150
        %v1407 = vadd.f32 %v695, %v1151
        %v1408 = vadd.f32 %v696, %v1152
        %v1409 = vadd.f32 %v697, %v1153
        %v1410 = vadd.f32 %v698, %v1154
        %v1411 = vadd.f32 %v699, %v1155
        %v1412 = vadd.f32 %v700, %v1156
        %v1413 = vadd.f32 %v701, %v1157
        %v1414 = vadd.f32 %v702, %v1158
        %v1415 = vadd.f32 %v703, %v1159
        %v1416 = vadd.f32 %v704, %v1160
        %v1417 = vadd.f32 %v705, %v1161
        %v1418 = vadd.f32 %v706, %v1162
        %v1419 = vadd.f32 %v707, %v1163
        %v1420 = vadd.f32 %v708, %v1164
        %v1421 = vadd.f32 %v709, %v1165
        %v1422 = vadd.f32 %v710, %v1166
        %v1423 = vadd.f32 %v711, %v1167
        %v1424 = vadd.f32 %v712, %v1168
        %v1425 = vadd.f32 %v713, %v1169
        %v1426 = vadd.f32 %v714, %v1170
        %v1427 = vadd.f32 %v715, %v1171
        %v1428 = vadd.f32 %v716, %v1172
        %v1429 = vadd.f32 %v717, %v1173
        %v1430 = vadd.f32 %v718, %v1174
        %v1431 = vadd.f32 %v719, %v1175
        %v1432 = vadd.f32 %v720, %v1176
        %v1433 = vadd.f32 %v721, %v1177
        %v1434 = vadd.f32 %v722, %v1178
        %v1435 = vadd.f32 %v723, %v1179
        %v1436 = vadd.f32 %v724, %v1180
        %v1437 = vadd.f32 %v725, %v1181
        %v1438 = vadd.f32 %v726, %v1182
        %v1439 = vadd.f32 %v727, %v1183
        %v1440 = vadd.f32 %v728, %v1184
        %v1441 = vadd.f32 %v729, %v1185
        %v1442 = vadd.f32 %v730, %v1186
        %v1443 = vadd.f32 %v731, %v1187
        %v1444 = vadd.f32 %v732, %v1188
        %v1445 = vadd.f32 %v733, %v1189
        %v1446 = vadd.f32 %v734, %v1190
        %v1447 = vadd.f32 %v735, %v1191
        %v1448 = vadd.f32 %v736, %v1192
        %v1449 = vadd.f32 %v737, %v1193
        %v1450 = vadd.f32 %v738, %v1194
        %v1451 = vadd.f32 %v739, %v1195
        %v1452 = vadd.f32 %v740, %v1196
        %v1453 = vadd.f32 %v741, %v1197
        %v1454 = vadd.f32 %v742, %v1198
        %v1455 = vadd.f32 %v743, %v1199
        %v1456 = vadd.f32 %v744, %v1200
        %v1457 = vadd.f32 %v745, %v1201
        %v1458 = vadd.f32 %v746, %v1202
        %v1459 = vadd.f32 %v747, %v1203
        %v1460 = vadd.f32 %v748, %v1204
        %v1461 = vadd.f32 %v749, %v1205
        %v1462 = vadd.f32 %v750, %v1206
        %v1463 = vadd.f32 %v751, %v1207
        %v1464 = vadd.f32 %v752, %v1208
        %v1465 = vadd.f32 %v753, %v1209
        %v1466 = vadd.f32 %v754, %v1210
        %v1467 = vadd.f32 %v755, %v1211
        %v1468 = vadd.f32 %v756, %v1212
        %v1469 = vadd.f32 %v757, %v1213
        %v1470 = vadd.f32 %v758, %v1214
        %v1471 = vadd.f32 %v759, %v1215
        %v1472 = vadd.f32 %v760, %v1216
        %v1473 = vadd.f32 %v761, %v1217
        %v1474 = vadd.f32 %v762, %v1218
        %v1475 = vadd.f32 %v763, %v1219
        %v1476 = vadd.f32 %v764, %v1220
        %v1477 = vadd.f32 %v765, %v1221
        %v1478 = vadd.f32 %v766, %v1222
        %v1479 = vadd.f32 %v767, %v1223
        %v1480 = vadd.f32 %v768, %v1224
        %v1481 = vadd.f32 %v769, %v1225
        %1482 = vset.pattern.permute.xlu0 2
        %1483 = vperm.xlu0 %1482, %v246
        %v1484 = vpop.permute.xlu0 %1483
        %1486 = vset.pattern.permute.xlu0 2
        %1487 = vperm.xlu0 %1486, %v247
        %v1488 = vpop.permute.xlu0 %1487
        %1490 = vset.pattern.permute.xlu0 2
        %1491 = vperm.xlu0 %1490, %v248
        %v1492 = vpop.permute.xlu0 %1491
        %1494 = vset.pattern.permute.xlu0 2
        %1495 = vperm.xlu0 %1494, %v249
        %v1496 = vpop.permute.xlu0 %1495
        %1498 = vset.pattern.permute.xlu0 2
        %1499 = vperm.xlu0 %1498, %v250
        %v1500 = vpop.permute.xlu0 %1499
        %1502 = vset.pattern.permute.xlu0 2
        %1503 = vperm.xlu0 %1502, %v251
        %v1504 = vpop.permute.xlu0 %1503
        %1506 = vset.pattern.permute.xlu0 2
        %1507 = vperm.xlu0 %1506, %v252
        %v1508 = vpop.permute.xlu0 %1507
        %1510 = vset.pattern.permute.xlu0 2
        %1511 = vperm.xlu0 %1510, %v253
        %v1512 = vpop.permute.xlu0 %1511
        %1514 = vset.pattern.permute.xlu0 2
        %1515 = vperm.xlu0 %1514, %v254
        %v1516 = vpop.permute.xlu0 %1515
        %1518 = vset.pattern.permute.xlu0 2
        %1519 = vperm.xlu0 %1518, %v255
        %v1520 = vpop.permute.xlu0 %1519
        %1522 = vset.pattern.permute.xlu0 2
        %1523 = vperm.xlu0 %1522, %v256
        %v1524 = vpop.permute.xlu0 %1523
        %1526 = vset.pattern.permute.xlu0 2
        %1527 = vperm.xlu0 %1526, %v257
        %v1528 = vpop.permute.xlu0 %1527
        %1530 = vset.pattern.permute.xlu0 2
        %1531 = vperm.xlu0 %1530, %v258
        %v1532 = vpop.permute.xlu0 %1531
        %1534 = vset.pattern.permute.xlu0 2
        %1535 = vperm.xlu0 %1534, %v259
        %v1536 = vpop.permute.xlu0 %1535
        %1538 = vset.pattern.permute.xlu0 2
        %1539 = vperm.xlu0 %1538, %v260
        %v1540 = vpop.permute.xlu0 %1539
        %1542 = vset.pattern.permute.xlu0 2
        %1543 = vperm.xlu0 %1542, %v261
        %v1544 = vpop.permute.xlu0 %1543
        %1546 = vset.pattern.permute.xlu0 2
        %1547 = vperm.xlu0 %1546, %v262
        %v1548 = vpop.permute.xlu0 %1547
        %1550 = vset.pattern.permute.xlu0 2
        %1551 = vperm.xlu0 %1550, %v263
        %v1552 = vpop.permute.xlu0 %1551
        %1554 = vset.pattern.permute.xlu0 2
        %1555 = vperm.xlu0 %1554, %v264
        %v1556 = vpop.permute.xlu0 %1555
        %1558 = vset.pattern.permute.xlu0 2
        %1559 = vperm.xlu0 %1558, %v265
        %v1560 = vpop.permute.xlu0 %1559
        %1562 = vset.pattern.permute.xlu0 2
        %1563 = vperm.xlu0 %1562, %v266
        %v1564 = vpop.permute.xlu0 %1563
        %1566 = vset.pattern.permute.xlu0 2
        %1567 = vperm.xlu0 %1566, %v267
        %v1568 = vpop.permute.xlu0 %1567
        %1570 = vset.pattern.permute.xlu0 2
        %1571 = vperm.xlu0 %1570, %v268
        %v1572 = vpop.permute.xlu0 %1571
        %1574 = vset.pattern.permute.xlu0 2
        %1575 = vperm.xlu0 %1574, %v269
        %v1576 = vpop.permute.xlu0 %1575
        %1578 = vset.pattern.permute.xlu0 2
        %1579 = vperm.xlu0 %1578, %v270
        %v1580 = vpop.permute.xlu0 %1579
        %1582 = vset.pattern.permute.xlu0 2
        %1583 = vperm.xlu0 %1582, %v271
        %v1584 = vpop.permute.xlu0 %1583
        %1586 = vset.pattern.permute.xlu0 2
        %1587 = vperm.xlu0 %1586, %v272
        %v1588 = vpop.permute.xlu0 %1587
        %1590 = vset.pattern.permute.xlu0 2
        %1591 = vperm.xlu0 %1590, %v273
        %v1592 = vpop.permute.xlu0 %1591
        %1594 = vset.pattern.permute.xlu0 2
        %1595 = vperm.xlu0 %1594, %v274
        %v1596 = vpop.permute.xlu0 %1595
        %1598 = vset.pattern.permute.xlu0 2
        %1599 = vperm.xlu0 %1598, %v275
        %v1600 = vpop.permute.xlu0 %1599
        %1602 = vset.pattern.permute.xlu0 2
        %1603 = vperm.xlu0 %1602, %v276
        %v1604 = vpop.permute.xlu0 %1603
        %1606 = vset.pattern.permute.xlu0 2
        %1607 = vperm.xlu0 %1606, %v277
        %v1608 = vpop.permute.xlu0 %1607
        %v1610 = vlaneseq
        %v1611 = vshrl.u32 %v1610, 7
        %v1612 = vsub.s32 2, %v1611
        %v1613 = vrot.slane %v242, %v1612
        %v1614 = vlaneseq
        %v1615 = vshrl.u32 %v1614, 7
        %v1616 = vsub.s32 6, %v1615
        %v1617 = vrot.slane %v242, %v1616
        %v1618 = vlaneseq
        %v1619 = vshrl.u32 %v1618, 7
        %v1620 = vsub.s32 2, %v1619
        %v1621 = vrot.slane %v243, %v1620
        %v1622 = vlaneseq
        %v1623 = vshrl.u32 %v1622, 7
        %v1624 = vsub.s32 6, %v1623
        %v1625 = vrot.slane %v243, %v1624
        %v1626 = vlaneseq
        %v1627 = vshrl.u32 %v1626, 7
        %v1628 = vsub.s32 2, %v1627
        %v1629 = vrot.slane %v244, %v1628
        %v1630 = vlaneseq
        %v1631 = vshrl.u32 %v1630, 7
        %v1632 = vsub.s32 6, %v1631
        %v1633 = vrot.slane %v244, %v1632
        %v1634 = vlaneseq
        %v1635 = vshrl.u32 %v1634, 7
        %v1636 = vsub.s32 2, %v1635
        %v1637 = vrot.slane %v245, %v1636
        %v1638 = vlaneseq
        %v1639 = vshrl.u32 %v1638, 7
        %v1640 = vsub.s32 6, %v1639
        %v1641 = vrot.slane %v245, %v1640
        %v1650 = vlaneseq
        %v1651 = vshrl.u32 %v1650, 7
        %v1652 = vsub.s32 2, %v1651
        %v1653 = vrot.slane %v1613, %v1652
        %v1654 = vlaneseq
        %v1655 = vshrl.u32 %v1654, 7
        %v1656 = vsub.s32 2, %v1655
        %v1657 = vrot.slane %v1617, %v1656
        %v1658 = vlaneseq
        %v1659 = vshrl.u32 %v1658, 7
        %v1660 = vsub.s32 2, %v1659
        %v1661 = vrot.slane %v1621, %v1660
        %v1662 = vlaneseq
        %v1663 = vshrl.u32 %v1662, 7
        %v1664 = vsub.s32 2, %v1663
        %v1665 = vrot.slane %v1625, %v1664
        %v1666 = vlaneseq
        %v1667 = vshrl.u32 %v1666, 7
        %v1668 = vsub.s32 2, %v1667
        %v1669 = vrot.slane %v1629, %v1668
        %v1670 = vlaneseq
        %v1671 = vshrl.u32 %v1670, 7
        %v1672 = vsub.s32 2, %v1671
        %v1673 = vrot.slane %v1633, %v1672
        %v1674 = vlaneseq
        %v1675 = vshrl.u32 %v1674, 7
        %v1676 = vsub.s32 2, %v1675
        %v1677 = vrot.slane %v1637, %v1676
        %v1678 = vlaneseq
        %v1679 = vshrl.u32 %v1678, 7
        %v1680 = vsub.s32 2, %v1679
        %v1681 = vrot.slane %v1641, %v1680
        %v1682 = vmul.f32 %v1484, %v1653
        %v1683 = vmul.f32 %v1484, %v1657
        %v1684 = vmul.f32 %v1484, %v1661
        %v1685 = vmul.f32 %v1484, %v1665
        %v1686 = vmul.f32 %v1484, %v1669
        %v1687 = vmul.f32 %v1484, %v1673
        %v1688 = vmul.f32 %v1484, %v1677
        %v1689 = vmul.f32 %v1484, %v1681
        %v1690 = vmul.f32 %v1488, %v1653
        %v1691 = vmul.f32 %v1488, %v1657
        %v1692 = vmul.f32 %v1488, %v1661
        %v1693 = vmul.f32 %v1488, %v1665
        %v1694 = vmul.f32 %v1488, %v1669
        %v1695 = vmul.f32 %v1488, %v1673
        %v1696 = vmul.f32 %v1488, %v1677
        %v1697 = vmul.f32 %v1488, %v1681
        %v1698 = vmul.f32 %v1492, %v1653
        %v1699 = vmul.f32 %v1492, %v1657
        %v1700 = vmul.f32 %v1492, %v1661
        %v1701 = vmul.f32 %v1492, %v1665
        %v1702 = vmul.f32 %v1492, %v1669
        %v1703 = vmul.f32 %v1492, %v1673
        %v1704 = vmul.f32 %v1492, %v1677
        %v1705 = vmul.f32 %v1492, %v1681
        %v1706 = vmul.f32 %v1496, %v1653
        %v1707 = vmul.f32 %v1496, %v1657
        %v1708 = vmul.f32 %v1496, %v1661
        %v1709 = vmul.f32 %v1496, %v1665
        %v1710 = vmul.f32 %v1496, %v1669
        %v1711 = vmul.f32 %v1496, %v1673
        %v1712 = vmul.f32 %v1496, %v1677
        %v1713 = vmul.f32 %v1496, %v1681
        %v1714 = vmul.f32 %v1500, %v1653
        %v1715 = vmul.f32 %v1500, %v1657
        %v1716 = vmul.f32 %v1500, %v1661
        %v1717 = vmul.f32 %v1500, %v1665
        %v1718 = vmul.f32 %v1500, %v1669
        %v1719 = vmul.f32 %v1500, %v1673
        %v1720 = vmul.f32 %v1500, %v1677
        %v1721 = vmul.f32 %v1500, %v1681
        %v1722 = vmul.f32 %v1504, %v1653
        %v1723 = vmul.f32 %v1504, %v1657
        %v1724 = vmul.f32 %v1504, %v1661
        %v1725 = vmul.f32 %v1504, %v1665
        %v1726 = vmul.f32 %v1504, %v1669
        %v1727 = vmul.f32 %v1504, %v1673
        %v1728 = vmul.f32 %v1504, %v1677
        %v1729 = vmul.f32 %v1504, %v1681
        %v1730 = vmul.f32 %v1508, %v1653
        %v1731 = vmul.f32 %v1508, %v1657
        %v1732 = vmul.f32 %v1508, %v1661
        %v1733 = vmul.f32 %v1508, %v1665
        %v1734 = vmul.f32 %v1508, %v1669
        %v1735 = vmul.f32 %v1508, %v1673
        %v1736 = vmul.f32 %v1508, %v1677
        %v1737 = vmul.f32 %v1508, %v1681
        %v1738 = vmul.f32 %v1512, %v1653
        %v1739 = vmul.f32 %v1512, %v1657
        %v1740 = vmul.f32 %v1512, %v1661
        %v1741 = vmul.f32 %v1512, %v1665
        %v1742 = vmul.f32 %v1512, %v1669
        %v1743 = vmul.f32 %v1512, %v1673
        %v1744 = vmul.f32 %v1512, %v1677
        %v1745 = vmul.f32 %v1512, %v1681
        %v1746 = vmul.f32 %v1516, %v1653
        %v1747 = vmul.f32 %v1516, %v1657
        %v1748 = vmul.f32 %v1516, %v1661
        %v1749 = vmul.f32 %v1516, %v1665
        %v1750 = vmul.f32 %v1516, %v1669
        %v1751 = vmul.f32 %v1516, %v1673
        %v1752 = vmul.f32 %v1516, %v1677
        %v1753 = vmul.f32 %v1516, %v1681
        %v1754 = vmul.f32 %v1520, %v1653
        %v1755 = vmul.f32 %v1520, %v1657
        %v1756 = vmul.f32 %v1520, %v1661
        %v1757 = vmul.f32 %v1520, %v1665
        %v1758 = vmul.f32 %v1520, %v1669
        %v1759 = vmul.f32 %v1520, %v1673
        %v1760 = vmul.f32 %v1520, %v1677
        %v1761 = vmul.f32 %v1520, %v1681
        %v1762 = vmul.f32 %v1524, %v1653
        %v1763 = vmul.f32 %v1524, %v1657
        %v1764 = vmul.f32 %v1524, %v1661
        %v1765 = vmul.f32 %v1524, %v1665
        %v1766 = vmul.f32 %v1524, %v1669
        %v1767 = vmul.f32 %v1524, %v1673
        %v1768 = vmul.f32 %v1524, %v1677
        %v1769 = vmul.f32 %v1524, %v1681
        %v1770 = vmul.f32 %v1528, %v1653
        %v1771 = vmul.f32 %v1528, %v1657
        %v1772 = vmul.f32 %v1528, %v1661
        %v1773 = vmul.f32 %v1528, %v1665
        %v1774 = vmul.f32 %v1528, %v1669
        %v1775 = vmul.f32 %v1528, %v1673
        %v1776 = vmul.f32 %v1528, %v1677
        %v1777 = vmul.f32 %v1528, %v1681
        %v1778 = vmul.f32 %v1532, %v1653
        %v1779 = vmul.f32 %v1532, %v1657
        %v1780 = vmul.f32 %v1532, %v1661
        %v1781 = vmul.f32 %v1532, %v1665
        %v1782 = vmul.f32 %v1532, %v1669
        %v1783 = vmul.f32 %v1532, %v1673
        %v1784 = vmul.f32 %v1532, %v1677
        %v1785 = vmul.f32 %v1532, %v1681
        %v1786 = vmul.f32 %v1536, %v1653
        %v1787 = vmul.f32 %v1536, %v1657
        %v1788 = vmul.f32 %v1536, %v1661
        %v1789 = vmul.f32 %v1536, %v1665
        %v1790 = vmul.f32 %v1536, %v1669
        %v1791 = vmul.f32 %v1536, %v1673
        %v1792 = vmul.f32 %v1536, %v1677
        %v1793 = vmul.f32 %v1536, %v1681
        %v1794 = vmul.f32 %v1540, %v1653
        %v1795 = vmul.f32 %v1540, %v1657
        %v1796 = vmul.f32 %v1540, %v1661
        %v1797 = vmul.f32 %v1540, %v1665
        %v1798 = vmul.f32 %v1540, %v1669
        %v1799 = vmul.f32 %v1540, %v1673
        %v1800 = vmul.f32 %v1540, %v1677
        %v1801 = vmul.f32 %v1540, %v1681
        %v1802 = vmul.f32 %v1544, %v1653
        %v1803 = vmul.f32 %v1544, %v1657
        %v1804 = vmul.f32 %v1544, %v1661
        %v1805 = vmul.f32 %v1544, %v1665
        %v1806 = vmul.f32 %v1544, %v1669
        %v1807 = vmul.f32 %v1544, %v1673
        %v1808 = vmul.f32 %v1544, %v1677
        %v1809 = vmul.f32 %v1544, %v1681
        %v1810 = vmul.f32 %v1548, %v1653
        %v1811 = vmul.f32 %v1548, %v1657
        %v1812 = vmul.f32 %v1548, %v1661
        %v1813 = vmul.f32 %v1548, %v1665
        %v1814 = vmul.f32 %v1548, %v1669
        %v1815 = vmul.f32 %v1548, %v1673
        %v1816 = vmul.f32 %v1548, %v1677
        %v1817 = vmul.f32 %v1548, %v1681
        %v1818 = vmul.f32 %v1552, %v1653
        %v1819 = vmul.f32 %v1552, %v1657
        %v1820 = vmul.f32 %v1552, %v1661
        %v1821 = vmul.f32 %v1552, %v1665
        %v1822 = vmul.f32 %v1552, %v1669
        %v1823 = vmul.f32 %v1552, %v1673
        %v1824 = vmul.f32 %v1552, %v1677
        %v1825 = vmul.f32 %v1552, %v1681
        %v1826 = vmul.f32 %v1556, %v1653
        %v1827 = vmul.f32 %v1556, %v1657
        %v1828 = vmul.f32 %v1556, %v1661
        %v1829 = vmul.f32 %v1556, %v1665
        %v1830 = vmul.f32 %v1556, %v1669
        %v1831 = vmul.f32 %v1556, %v1673
        %v1832 = vmul.f32 %v1556, %v1677
        %v1833 = vmul.f32 %v1556, %v1681
        %v1834 = vmul.f32 %v1560, %v1653
        %v1835 = vmul.f32 %v1560, %v1657
        %v1836 = vmul.f32 %v1560, %v1661
        %v1837 = vmul.f32 %v1560, %v1665
        %v1838 = vmul.f32 %v1560, %v1669
        %v1839 = vmul.f32 %v1560, %v1673
        %v1840 = vmul.f32 %v1560, %v1677
        %v1841 = vmul.f32 %v1560, %v1681
        %v1842 = vmul.f32 %v1564, %v1653
        %v1843 = vmul.f32 %v1564, %v1657
        %v1844 = vmul.f32 %v1564, %v1661
        %v1845 = vmul.f32 %v1564, %v1665
        %v1846 = vmul.f32 %v1564, %v1669
        %v1847 = vmul.f32 %v1564, %v1673
        %v1848 = vmul.f32 %v1564, %v1677
        %v1849 = vmul.f32 %v1564, %v1681
        %v1850 = vmul.f32 %v1568, %v1653
        %v1851 = vmul.f32 %v1568, %v1657
        %v1852 = vmul.f32 %v1568, %v1661
        %v1853 = vmul.f32 %v1568, %v1665
        %v1854 = vmul.f32 %v1568, %v1669
        %v1855 = vmul.f32 %v1568, %v1673
        %v1856 = vmul.f32 %v1568, %v1677
        %v1857 = vmul.f32 %v1568, %v1681
        %v1858 = vmul.f32 %v1572, %v1653
        %v1859 = vmul.f32 %v1572, %v1657
        %v1860 = vmul.f32 %v1572, %v1661
        %v1861 = vmul.f32 %v1572, %v1665
        %v1862 = vmul.f32 %v1572, %v1669
        %v1863 = vmul.f32 %v1572, %v1673
        %v1864 = vmul.f32 %v1572, %v1677
        %v1865 = vmul.f32 %v1572, %v1681
        %v1866 = vmul.f32 %v1576, %v1653
        %v1867 = vmul.f32 %v1576, %v1657
        %v1868 = vmul.f32 %v1576, %v1661
        %v1869 = vmul.f32 %v1576, %v1665
        %v1870 = vmul.f32 %v1576, %v1669
        %v1871 = vmul.f32 %v1576, %v1673
        %v1872 = vmul.f32 %v1576, %v1677
        %v1873 = vmul.f32 %v1576, %v1681
        %v1874 = vmul.f32 %v1580, %v1653
        %v1875 = vmul.f32 %v1580, %v1657
        %v1876 = vmul.f32 %v1580, %v1661
        %v1877 = vmul.f32 %v1580, %v1665
        %v1878 = vmul.f32 %v1580, %v1669
        %v1879 = vmul.f32 %v1580, %v1673
        %v1880 = vmul.f32 %v1580, %v1677
        %v1881 = vmul.f32 %v1580, %v1681
        %v1882 = vmul.f32 %v1584, %v1653
        %v1883 = vmul.f32 %v1584, %v1657
        %v1884 = vmul.f32 %v1584, %v1661
        %v1885 = vmul.f32 %v1584, %v1665
        %v1886 = vmul.f32 %v1584, %v1669
        %v1887 = vmul.f32 %v1584, %v1673
        %v1888 = vmul.f32 %v1584, %v1677
        %v1889 = vmul.f32 %v1584, %v1681
        %v1890 = vmul.f32 %v1588, %v1653
        %v1891 = vmul.f32 %v1588, %v1657
        %v1892 = vmul.f32 %v1588, %v1661
        %v1893 = vmul.f32 %v1588, %v1665
        %v1894 = vmul.f32 %v1588, %v1669
        %v1895 = vmul.f32 %v1588, %v1673
        %v1896 = vmul.f32 %v1588, %v1677
        %v1897 = vmul.f32 %v1588, %v1681
        %v1898 = vmul.f32 %v1592, %v1653
        %v1899 = vmul.f32 %v1592, %v1657
        %v1900 = vmul.f32 %v1592, %v1661
        %v1901 = vmul.f32 %v1592, %v1665
        %v1902 = vmul.f32 %v1592, %v1669
        %v1903 = vmul.f32 %v1592, %v1673
        %v1904 = vmul.f32 %v1592, %v1677
        %v1905 = vmul.f32 %v1592, %v1681
        %v1906 = vmul.f32 %v1596, %v1653
        %v1907 = vmul.f32 %v1596, %v1657
        %v1908 = vmul.f32 %v1596, %v1661
        %v1909 = vmul.f32 %v1596, %v1665
        %v1910 = vmul.f32 %v1596, %v1669
        %v1911 = vmul.f32 %v1596, %v1673
        %v1912 = vmul.f32 %v1596, %v1677
        %v1913 = vmul.f32 %v1596, %v1681
        %v1914 = vmul.f32 %v1600, %v1653
        %v1915 = vmul.f32 %v1600, %v1657
        %v1916 = vmul.f32 %v1600, %v1661
        %v1917 = vmul.f32 %v1600, %v1665
        %v1918 = vmul.f32 %v1600, %v1669
        %v1919 = vmul.f32 %v1600, %v1673
        %v1920 = vmul.f32 %v1600, %v1677
        %v1921 = vmul.f32 %v1600, %v1681
        %v1922 = vmul.f32 %v1604, %v1653
        %v1923 = vmul.f32 %v1604, %v1657
        %v1924 = vmul.f32 %v1604, %v1661
        %v1925 = vmul.f32 %v1604, %v1665
        %v1926 = vmul.f32 %v1604, %v1669
        %v1927 = vmul.f32 %v1604, %v1673
        %v1928 = vmul.f32 %v1604, %v1677
        %v1929 = vmul.f32 %v1604, %v1681
        %v1930 = vmul.f32 %v1608, %v1653
        %v1931 = vmul.f32 %v1608, %v1657
        %v1932 = vmul.f32 %v1608, %v1661
        %v1933 = vmul.f32 %v1608, %v1665
        %v1934 = vmul.f32 %v1608, %v1669
        %v1935 = vmul.f32 %v1608, %v1673
        %v1936 = vmul.f32 %v1608, %v1677
        %v1937 = vmul.f32 %v1608, %v1681
        %v1938 = vadd.f32 %v1226, %v1682
        %v1939 = vadd.f32 %v1227, %v1683
        %v1940 = vadd.f32 %v1228, %v1684
        %v1941 = vadd.f32 %v1229, %v1685
        %v1942 = vadd.f32 %v1230, %v1686
        %v1943 = vadd.f32 %v1231, %v1687
        %v1944 = vadd.f32 %v1232, %v1688
        %v1945 = vadd.f32 %v1233, %v1689
        %v1946 = vadd.f32 %v1234, %v1690
        %v1947 = vadd.f32 %v1235, %v1691
        %v1948 = vadd.f32 %v1236, %v1692
        %v1949 = vadd.f32 %v1237, %v1693
        %v1950 = vadd.f32 %v1238, %v1694
        %v1951 = vadd.f32 %v1239, %v1695
        %v1952 = vadd.f32 %v1240, %v1696
        %v1953 = vadd.f32 %v1241, %v1697
        %v1954 = vadd.f32 %v1242, %v1698
        %v1955 = vadd.f32 %v1243, %v1699
        %v1956 = vadd.f32 %v1244, %v1700
        %v1957 = vadd.f32 %v1245, %v1701
        %v1958 = vadd.f32 %v1246, %v1702
        %v1959 = vadd.f32 %v1247, %v1703
        %v1960 = vadd.f32 %v1248, %v1704
        %v1961 = vadd.f32 %v1249, %v1705
        %v1962 = vadd.f32 %v1250, %v1706
        %v1963 = vadd.f32 %v1251, %v1707
        %v1964 = vadd.f32 %v1252, %v1708
        %v1965 = vadd.f32 %v1253, %v1709
        %v1966 = vadd.f32 %v1254, %v1710
        %v1967 = vadd.f32 %v1255, %v1711
        %v1968 = vadd.f32 %v1256, %v1712
        %v1969 = vadd.f32 %v1257, %v1713
        %v1970 = vadd.f32 %v1258, %v1714
        %v1971 = vadd.f32 %v1259, %v1715
        %v1972 = vadd.f32 %v1260, %v1716
        %v1973 = vadd.f32 %v1261, %v1717
        %v1974 = vadd.f32 %v1262, %v1718
        %v1975 = vadd.f32 %v1263, %v1719
        %v1976 = vadd.f32 %v1264, %v1720
        %v1977 = vadd.f32 %v1265, %v1721
        %v1978 = vadd.f32 %v1266, %v1722
        %v1979 = vadd.f32 %v1267, %v1723
        %v1980 = vadd.f32 %v1268, %v1724
        %v1981 = vadd.f32 %v1269, %v1725
        %v1982 = vadd.f32 %v1270, %v1726
        %v1983 = vadd.f32 %v1271, %v1727
        %v1984 = vadd.f32 %v1272, %v1728
        %v1985 = vadd.f32 %v1273, %v1729
        %v1986 = vadd.f32 %v1274, %v1730
        %v1987 = vadd.f32 %v1275, %v1731
        %v1988 = vadd.f32 %v1276, %v1732
        %v1989 = vadd.f32 %v1277, %v1733
        %v1990 = vadd.f32 %v1278, %v1734
        %v1991 = vadd.f32 %v1279, %v1735
        %v1992 = vadd.f32 %v1280, %v1736
        %v1993 = vadd.f32 %v1281, %v1737
        %v1994 = vadd.f32 %v1282, %v1738
        %v1995 = vadd.f32 %v1283, %v1739
        %v1996 = vadd.f32 %v1284, %v1740
        %v1997 = vadd.f32 %v1285, %v1741
        %v1998 = vadd.f32 %v1286, %v1742
        %v1999 = vadd.f32 %v1287, %v1743
        %v2000 = vadd.f32 %v1288, %v1744
        %v2001 = vadd.f32 %v1289, %v1745
        %v2002 = vadd.f32 %v1290, %v1746
        %v2003 = vadd.f32 %v1291, %v1747
        %v2004 = vadd.f32 %v1292, %v1748
        %v2005 = vadd.f32 %v1293, %v1749
        %v2006 = vadd.f32 %v1294, %v1750
        %v2007 = vadd.f32 %v1295, %v1751
        %v2008 = vadd.f32 %v1296, %v1752
        %v2009 = vadd.f32 %v1297, %v1753
        %v2010 = vadd.f32 %v1298, %v1754
        %v2011 = vadd.f32 %v1299, %v1755
        %v2012 = vadd.f32 %v1300, %v1756
        %v2013 = vadd.f32 %v1301, %v1757
        %v2014 = vadd.f32 %v1302, %v1758
        %v2015 = vadd.f32 %v1303, %v1759
        %v2016 = vadd.f32 %v1304, %v1760
        %v2017 = vadd.f32 %v1305, %v1761
        %v2018 = vadd.f32 %v1306, %v1762
        %v2019 = vadd.f32 %v1307, %v1763
        %v2020 = vadd.f32 %v1308, %v1764
        %v2021 = vadd.f32 %v1309, %v1765
        %v2022 = vadd.f32 %v1310, %v1766
        %v2023 = vadd.f32 %v1311, %v1767
        %v2024 = vadd.f32 %v1312, %v1768
        %v2025 = vadd.f32 %v1313, %v1769
        %v2026 = vadd.f32 %v1314, %v1770
        %v2027 = vadd.f32 %v1315, %v1771
        %v2028 = vadd.f32 %v1316, %v1772
        %v2029 = vadd.f32 %v1317, %v1773
        %v2030 = vadd.f32 %v1318, %v1774
        %v2031 = vadd.f32 %v1319, %v1775
        %v2032 = vadd.f32 %v1320, %v1776
        %v2033 = vadd.f32 %v1321, %v1777
        %v2034 = vadd.f32 %v1322, %v1778
        %v2035 = vadd.f32 %v1323, %v1779
        %v2036 = vadd.f32 %v1324, %v1780
        %v2037 = vadd.f32 %v1325, %v1781
        %v2038 = vadd.f32 %v1326, %v1782
        %v2039 = vadd.f32 %v1327, %v1783
        %v2040 = vadd.f32 %v1328, %v1784
        %v2041 = vadd.f32 %v1329, %v1785
        %v2042 = vadd.f32 %v1330, %v1786
        %v2043 = vadd.f32 %v1331, %v1787
        %v2044 = vadd.f32 %v1332, %v1788
        %v2045 = vadd.f32 %v1333, %v1789
        %v2046 = vadd.f32 %v1334, %v1790
        %v2047 = vadd.f32 %v1335, %v1791
        %v2048 = vadd.f32 %v1336, %v1792
        %v2049 = vadd.f32 %v1337, %v1793
        %v2050 = vadd.f32 %v1338, %v1794
        %v2051 = vadd.f32 %v1339, %v1795
        %v2052 = vadd.f32 %v1340, %v1796
        %v2053 = vadd.f32 %v1341, %v1797
        %v2054 = vadd.f32 %v1342, %v1798
        %v2055 = vadd.f32 %v1343, %v1799
        %v2056 = vadd.f32 %v1344, %v1800
        %v2057 = vadd.f32 %v1345, %v1801
        %v2058 = vadd.f32 %v1346, %v1802
        %v2059 = vadd.f32 %v1347, %v1803
        %v2060 = vadd.f32 %v1348, %v1804
        %v2061 = vadd.f32 %v1349, %v1805
        %v2062 = vadd.f32 %v1350, %v1806
        %v2063 = vadd.f32 %v1351, %v1807
        %v2064 = vadd.f32 %v1352, %v1808
        %v2065 = vadd.f32 %v1353, %v1809
        %v2066 = vadd.f32 %v1354, %v1810
        %v2067 = vadd.f32 %v1355, %v1811
        %v2068 = vadd.f32 %v1356, %v1812
        %v2069 = vadd.f32 %v1357, %v1813
        %v2070 = vadd.f32 %v1358, %v1814
        %v2071 = vadd.f32 %v1359, %v1815
        %v2072 = vadd.f32 %v1360, %v1816
        %v2073 = vadd.f32 %v1361, %v1817
        %v2074 = vadd.f32 %v1362, %v1818
        %v2075 = vadd.f32 %v1363, %v1819
        %v2076 = vadd.f32 %v1364, %v1820
        %v2077 = vadd.f32 %v1365, %v1821
        %v2078 = vadd.f32 %v1366, %v1822
        %v2079 = vadd.f32 %v1367, %v1823
        %v2080 = vadd.f32 %v1368, %v1824
        %v2081 = vadd.f32 %v1369, %v1825
        %v2082 = vadd.f32 %v1370, %v1826
        %v2083 = vadd.f32 %v1371, %v1827
        %v2084 = vadd.f32 %v1372, %v1828
        %v2085 = vadd.f32 %v1373, %v1829
        %v2086 = vadd.f32 %v1374, %v1830
        %v2087 = vadd.f32 %v1375, %v1831
        %v2088 = vadd.f32 %v1376, %v1832
        %v2089 = vadd.f32 %v1377, %v1833
        %v2090 = vadd.f32 %v1378, %v1834
        %v2091 = vadd.f32 %v1379, %v1835
        %v2092 = vadd.f32 %v1380, %v1836
        %v2093 = vadd.f32 %v1381, %v1837
        %v2094 = vadd.f32 %v1382, %v1838
        %v2095 = vadd.f32 %v1383, %v1839
        %v2096 = vadd.f32 %v1384, %v1840
        %v2097 = vadd.f32 %v1385, %v1841
        %v2098 = vadd.f32 %v1386, %v1842
        %v2099 = vadd.f32 %v1387, %v1843
        %v2100 = vadd.f32 %v1388, %v1844
        %v2101 = vadd.f32 %v1389, %v1845
        %v2102 = vadd.f32 %v1390, %v1846
        %v2103 = vadd.f32 %v1391, %v1847
        %v2104 = vadd.f32 %v1392, %v1848
        %v2105 = vadd.f32 %v1393, %v1849
        %v2106 = vadd.f32 %v1394, %v1850
        %v2107 = vadd.f32 %v1395, %v1851
        %v2108 = vadd.f32 %v1396, %v1852
        %v2109 = vadd.f32 %v1397, %v1853
        %v2110 = vadd.f32 %v1398, %v1854
        %v2111 = vadd.f32 %v1399, %v1855
        %v2112 = vadd.f32 %v1400, %v1856
        %v2113 = vadd.f32 %v1401, %v1857
        %v2114 = vadd.f32 %v1402, %v1858
        %v2115 = vadd.f32 %v1403, %v1859
        %v2116 = vadd.f32 %v1404, %v1860
        %v2117 = vadd.f32 %v1405, %v1861
        %v2118 = vadd.f32 %v1406, %v1862
        %v2119 = vadd.f32 %v1407, %v1863
        %v2120 = vadd.f32 %v1408, %v1864
        %v2121 = vadd.f32 %v1409, %v1865
        %v2122 = vadd.f32 %v1410, %v1866
        %v2123 = vadd.f32 %v1411, %v1867
        %v2124 = vadd.f32 %v1412, %v1868
        %v2125 = vadd.f32 %v1413, %v1869
        %v2126 = vadd.f32 %v1414, %v1870
        %v2127 = vadd.f32 %v1415, %v1871
        %v2128 = vadd.f32 %v1416, %v1872
        %v2129 = vadd.f32 %v1417, %v1873
        %v2130 = vadd.f32 %v1418, %v1874
        %v2131 = vadd.f32 %v1419, %v1875
        %v2132 = vadd.f32 %v1420, %v1876
        %v2133 = vadd.f32 %v1421, %v1877
        %v2134 = vadd.f32 %v1422, %v1878
        %v2135 = vadd.f32 %v1423, %v1879
        %v2136 = vadd.f32 %v1424, %v1880
        %v2137 = vadd.f32 %v1425, %v1881
        %v2138 = vadd.f32 %v1426, %v1882
        %v2139 = vadd.f32 %v1427, %v1883
        %v2140 = vadd.f32 %v1428, %v1884
        %v2141 = vadd.f32 %v1429, %v1885
        %v2142 = vadd.f32 %v1430, %v1886
        %v2143 = vadd.f32 %v1431, %v1887
        %v2144 = vadd.f32 %v1432, %v1888
        %v2145 = vadd.f32 %v1433, %v1889
        %v2146 = vadd.f32 %v1434, %v1890
        %v2147 = vadd.f32 %v1435, %v1891
        %v2148 = vadd.f32 %v1436, %v1892
        %v2149 = vadd.f32 %v1437, %v1893
        %v2150 = vadd.f32 %v1438, %v1894
        %v2151 = vadd.f32 %v1439, %v1895
        %v2152 = vadd.f32 %v1440, %v1896
        %v2153 = vadd.f32 %v1441, %v1897
        %v2154 = vadd.f32 %v1442, %v1898
        %v2155 = vadd.f32 %v1443, %v1899
        %v2156 = vadd.f32 %v1444, %v1900
        %v2157 = vadd.f32 %v1445, %v1901
        %v2158 = vadd.f32 %v1446, %v1902
        %v2159 = vadd.f32 %v1447, %v1903
        %v2160 = vadd.f32 %v1448, %v1904
        %v2161 = vadd.f32 %v1449, %v1905
        %v2162 = vadd.f32 %v1450, %v1906
        %v2163 = vadd.f32 %v1451, %v1907
        %v2164 = vadd.f32 %v1452, %v1908
        %v2165 = vadd.f32 %v1453, %v1909
        %v2166 = vadd.f32 %v1454, %v1910
        %v2167 = vadd.f32 %v1455, %v1911
        %v2168 = vadd.f32 %v1456, %v1912
        %v2169 = vadd.f32 %v1457, %v1913
        %v2170 = vadd.f32 %v1458, %v1914
        %v2171 = vadd.f32 %v1459, %v1915
        %v2172 = vadd.f32 %v1460, %v1916
        %v2173 = vadd.f32 %v1461, %v1917
        %v2174 = vadd.f32 %v1462, %v1918
        %v2175 = vadd.f32 %v1463, %v1919
        %v2176 = vadd.f32 %v1464, %v1920
        %v2177 = vadd.f32 %v1465, %v1921
        %v2178 = vadd.f32 %v1466, %v1922
        %v2179 = vadd.f32 %v1467, %v1923
        %v2180 = vadd.f32 %v1468, %v1924
        %v2181 = vadd.f32 %v1469, %v1925
        %v2182 = vadd.f32 %v1470, %v1926
        %v2183 = vadd.f32 %v1471, %v1927
        %v2184 = vadd.f32 %v1472, %v1928
        %v2185 = vadd.f32 %v1473, %v1929
        %v2186 = vadd.f32 %v1474, %v1930
        %v2187 = vadd.f32 %v1475, %v1931
        %v2188 = vadd.f32 %v1476, %v1932
        %v2189 = vadd.f32 %v1477, %v1933
        %v2190 = vadd.f32 %v1478, %v1934
        %v2191 = vadd.f32 %v1479, %v1935
        %v2192 = vadd.f32 %v1480, %v1936
        %v2193 = vadd.f32 %v1481, %v1937
        %v2194 = vld [vmem:[%s3] sm:$0xff]
        %v2195 = vld [vmem:[%s3 + $0x8] sm:$0xff]
        %v2196 = vld [vmem:[%s3 + $0x10] sm:$0xff]
        %v2197 = vld [vmem:[%s3 + $0x18] sm:$0xff]
        %v2198 = vld [vmem:[%s3 + $0x20] sm:$0xff]
        %v2199 = vld [vmem:[%s3 + $0x28] sm:$0xff]
        %v2200 = vld [vmem:[%s3 + $0x30] sm:$0xff]
        %v2201 = vld [vmem:[%s3 + $0x38] sm:$0xff]
        %v2202 = vld [vmem:[%s3 + $0x40] sm:$0xff]
        %v2203 = vld [vmem:[%s3 + $0x48] sm:$0xff]
        %v2204 = vld [vmem:[%s3 + $0x50] sm:$0xff]
        %v2205 = vld [vmem:[%s3 + $0x58] sm:$0xff]
        %v2206 = vld [vmem:[%s3 + $0x60] sm:$0xff]
        %v2207 = vld [vmem:[%s3 + $0x68] sm:$0xff]
        %v2208 = vld [vmem:[%s3 + $0x70] sm:$0xff]
        %v2209 = vld [vmem:[%s3 + $0x78] sm:$0xff]
        %v2210 = vld [vmem:[%s3 + $0x80] sm:$0xff]
        %v2211 = vld [vmem:[%s3 + $0x88] sm:$0xff]
        %v2212 = vld [vmem:[%s3 + $0x90] sm:$0xff]
        %v2213 = vld [vmem:[%s3 + $0x98] sm:$0xff]
        %v2214 = vld [vmem:[%s3 + $0xa0] sm:$0xff]
        %v2215 = vld [vmem:[%s3 + $0xa8] sm:$0xff]
        %v2216 = vld [vmem:[%s3 + $0xb0] sm:$0xff]
        %v2217 = vld [vmem:[%s3 + $0xb8] sm:$0xff]
        %v2218 = vld [vmem:[%s3 + $0xc0] sm:$0xff]
        %v2219 = vld [vmem:[%s3 + $0xc8] sm:$0xff]
        %v2220 = vld [vmem:[%s3 + $0xd0] sm:$0xff]
        %v2221 = vld [vmem:[%s3 + $0xd8] sm:$0xff]
        %v2222 = vld [vmem:[%s3 + $0xe0] sm:$0xff]
        %v2223 = vld [vmem:[%s3 + $0xe8] sm:$0xff]
        %v2224 = vld [vmem:[%s3 + $0xf0] sm:$0xff]
        %v2225 = vld [vmem:[%s3 + $0xf8] sm:$0xff]
        %2227 = vset.pattern.permute.xlu0 0
        %2228 = vperm.xlu0 %2227, %v2194
        %v2229 = vpop.permute.xlu0 %2228
        %2232 = vset.pattern.permute.xlu0 0
        %2233 = vperm.xlu0 %2232, %v2195
        %v2234 = vpop.permute.xlu0 %2233
        %2237 = vset.pattern.permute.xlu0 0
        %2238 = vperm.xlu0 %2237, %v2196
        %v2239 = vpop.permute.xlu0 %2238
        %2242 = vset.pattern.permute.xlu0 0
        %2243 = vperm.xlu0 %2242, %v2197
        %v2244 = vpop.permute.xlu0 %2243
        %2247 = vset.pattern.permute.xlu0 0
        %2248 = vperm.xlu0 %2247, %v2198
        %v2249 = vpop.permute.xlu0 %2248
        %2252 = vset.pattern.permute.xlu0 0
        %2253 = vperm.xlu0 %2252, %v2199
        %v2254 = vpop.permute.xlu0 %2253
        %2257 = vset.pattern.permute.xlu0 0
        %2258 = vperm.xlu0 %2257, %v2200
        %v2259 = vpop.permute.xlu0 %2258
        %2262 = vset.pattern.permute.xlu0 0
        %2263 = vperm.xlu0 %2262, %v2201
        %v2264 = vpop.permute.xlu0 %2263
        %2267 = vset.pattern.permute.xlu0 0
        %2268 = vperm.xlu0 %2267, %v2202
        %v2269 = vpop.permute.xlu0 %2268
        %2272 = vset.pattern.permute.xlu0 0
        %2273 = vperm.xlu0 %2272, %v2203
        %v2274 = vpop.permute.xlu0 %2273
        %2277 = vset.pattern.permute.xlu0 0
        %2278 = vperm.xlu0 %2277, %v2204
        %v2279 = vpop.permute.xlu0 %2278
        %2282 = vset.pattern.permute.xlu0 0
        %2283 = vperm.xlu0 %2282, %v2205
        %v2284 = vpop.permute.xlu0 %2283
        %2287 = vset.pattern.permute.xlu0 0
        %2288 = vperm.xlu0 %2287, %v2206
        %v2289 = vpop.permute.xlu0 %2288
        %2292 = vset.pattern.permute.xlu0 0
        %2293 = vperm.xlu0 %2292, %v2207
        %v2294 = vpop.permute.xlu0 %2293
        %2297 = vset.pattern.permute.xlu0 0
        %2298 = vperm.xlu0 %2297, %v2208
        %v2299 = vpop.permute.xlu0 %2298
        %2302 = vset.pattern.permute.xlu0 0
        %2303 = vperm.xlu0 %2302, %v2209
        %v2304 = vpop.permute.xlu0 %2303
        %2307 = vset.pattern.permute.xlu0 0
        %2308 = vperm.xlu0 %2307, %v2210
        %v2309 = vpop.permute.xlu0 %2308
        %2312 = vset.pattern.permute.xlu0 0
        %2313 = vperm.xlu0 %2312, %v2211
        %v2314 = vpop.permute.xlu0 %2313
        %2317 = vset.pattern.permute.xlu0 0
        %2318 = vperm.xlu0 %2317, %v2212
        %v2319 = vpop.permute.xlu0 %2318
        %2322 = vset.pattern.permute.xlu0 0
        %2323 = vperm.xlu0 %2322, %v2213
        %v2324 = vpop.permute.xlu0 %2323
        %2327 = vset.pattern.permute.xlu0 0
        %2328 = vperm.xlu0 %2327, %v2214
        %v2329 = vpop.permute.xlu0 %2328
        %2332 = vset.pattern.permute.xlu0 0
        %2333 = vperm.xlu0 %2332, %v2215
        %v2334 = vpop.permute.xlu0 %2333
        %2337 = vset.pattern.permute.xlu0 0
        %2338 = vperm.xlu0 %2337, %v2216
        %v2339 = vpop.permute.xlu0 %2338
        %2342 = vset.pattern.permute.xlu0 0
        %2343 = vperm.xlu0 %2342, %v2217
        %v2344 = vpop.permute.xlu0 %2343
        %2347 = vset.pattern.permute.xlu0 0
        %2348 = vperm.xlu0 %2347, %v2218
        %v2349 = vpop.permute.xlu0 %2348
        %2352 = vset.pattern.permute.xlu0 0
        %2353 = vperm.xlu0 %2352, %v2219
        %v2354 = vpop.permute.xlu0 %2353
        %2357 = vset.pattern.permute.xlu0 0
        %2358 = vperm.xlu0 %2357, %v2220
        %v2359 = vpop.permute.xlu0 %2358
        %2362 = vset.pattern.permute.xlu0 0
        %2363 = vperm.xlu0 %2362, %v2221
        %v2364 = vpop.permute.xlu0 %2363
        %2367 = vset.pattern.permute.xlu0 0
        %2368 = vperm.xlu0 %2367, %v2222
        %v2369 = vpop.permute.xlu0 %2368
        %2372 = vset.pattern.permute.xlu0 0
        %2373 = vperm.xlu0 %2372, %v2223
        %v2374 = vpop.permute.xlu0 %2373
        %2377 = vset.pattern.permute.xlu0 0
        %2378 = vperm.xlu0 %2377, %v2224
        %v2379 = vpop.permute.xlu0 %2378
        %2382 = vset.pattern.permute.xlu0 0
        %2383 = vperm.xlu0 %2382, %v2225
        %v2384 = vpop.permute.xlu0 %2383
        %v2386 = vadd.f32 %v1938, %v2229
        %v2387 = vadd.f32 %v1939, %v2229
        %v2388 = vadd.f32 %v1940, %v2229
        %v2389 = vadd.f32 %v1941, %v2229
        %v2390 = vadd.f32 %v1942, %v2229
        %v2391 = vadd.f32 %v1943, %v2229
        %v2392 = vadd.f32 %v1944, %v2229
        %v2393 = vadd.f32 %v1945, %v2229
        %v2394 = vadd.f32 %v1946, %v2234
        %v2395 = vadd.f32 %v1947, %v2234
        %v2396 = vadd.f32 %v1948, %v2234
        %v2397 = vadd.f32 %v1949, %v2234
        %v2398 = vadd.f32 %v1950, %v2234
        %v2399 = vadd.f32 %v1951, %v2234
        %v2400 = vadd.f32 %v1952, %v2234
        %v2401 = vadd.f32 %v1953, %v2234
        %v2402 = vadd.f32 %v1954, %v2239
        %v2403 = vadd.f32 %v1955, %v2239
        %v2404 = vadd.f32 %v1956, %v2239
        %v2405 = vadd.f32 %v1957, %v2239
        %v2406 = vadd.f32 %v1958, %v2239
        %v2407 = vadd.f32 %v1959, %v2239
        %v2408 = vadd.f32 %v1960, %v2239
        %v2409 = vadd.f32 %v1961, %v2239
        %v2410 = vadd.f32 %v1962, %v2244
        %v2411 = vadd.f32 %v1963, %v2244
        %v2412 = vadd.f32 %v1964, %v2244
        %v2413 = vadd.f32 %v1965, %v2244
        %v2414 = vadd.f32 %v1966, %v2244
        %v2415 = vadd.f32 %v1967, %v2244
        %v2416 = vadd.f32 %v1968, %v2244
        %v2417 = vadd.f32 %v1969, %v2244
        %v2418 = vadd.f32 %v1970, %v2249
        %v2419 = vadd.f32 %v1971, %v2249
        %v2420 = vadd.f32 %v1972, %v2249
        %v2421 = vadd.f32 %v1973, %v2249
        %v2422 = vadd.f32 %v1974, %v2249
        %v2423 = vadd.f32 %v1975, %v2249
        %v2424 = vadd.f32 %v1976, %v2249
        %v2425 = vadd.f32 %v1977, %v2249
        %v2426 = vadd.f32 %v1978, %v2254
        %v2427 = vadd.f32 %v1979, %v2254
        %v2428 = vadd.f32 %v1980, %v2254
        %v2429 = vadd.f32 %v1981, %v2254
        %v2430 = vadd.f32 %v1982, %v2254
        %v2431 = vadd.f32 %v1983, %v2254
        %v2432 = vadd.f32 %v1984, %v2254
        %v2433 = vadd.f32 %v1985, %v2254
        %v2434 = vadd.f32 %v1986, %v2259
        %v2435 = vadd.f32 %v1987, %v2259
        %v2436 = vadd.f32 %v1988, %v2259
        %v2437 = vadd.f32 %v1989, %v2259
        %v2438 = vadd.f32 %v1990, %v2259
        %v2439 = vadd.f32 %v1991, %v2259
        %v2440 = vadd.f32 %v1992, %v2259
        %v2441 = vadd.f32 %v1993, %v2259
        %v2442 = vadd.f32 %v1994, %v2264
        %v2443 = vadd.f32 %v1995, %v2264
        %v2444 = vadd.f32 %v1996, %v2264
        %v2445 = vadd.f32 %v1997, %v2264
        %v2446 = vadd.f32 %v1998, %v2264
        %v2447 = vadd.f32 %v1999, %v2264
        %v2448 = vadd.f32 %v2000, %v2264
        %v2449 = vadd.f32 %v2001, %v2264
        %v2450 = vadd.f32 %v2002, %v2269
        %v2451 = vadd.f32 %v2003, %v2269
        %v2452 = vadd.f32 %v2004, %v2269
        %v2453 = vadd.f32 %v2005, %v2269
        %v2454 = vadd.f32 %v2006, %v2269
        %v2455 = vadd.f32 %v2007, %v2269
        %v2456 = vadd.f32 %v2008, %v2269
        %v2457 = vadd.f32 %v2009, %v2269
        %v2458 = vadd.f32 %v2010, %v2274
        %v2459 = vadd.f32 %v2011, %v2274
        %v2460 = vadd.f32 %v2012, %v2274
        %v2461 = vadd.f32 %v2013, %v2274
        %v2462 = vadd.f32 %v2014, %v2274
        %v2463 = vadd.f32 %v2015, %v2274
        %v2464 = vadd.f32 %v2016, %v2274
        %v2465 = vadd.f32 %v2017, %v2274
        %v2466 = vadd.f32 %v2018, %v2279
        %v2467 = vadd.f32 %v2019, %v2279
        %v2468 = vadd.f32 %v2020, %v2279
        %v2469 = vadd.f32 %v2021, %v2279
        %v2470 = vadd.f32 %v2022, %v2279
        %v2471 = vadd.f32 %v2023, %v2279
        %v2472 = vadd.f32 %v2024, %v2279
        %v2473 = vadd.f32 %v2025, %v2279
        %v2474 = vadd.f32 %v2026, %v2284
        %v2475 = vadd.f32 %v2027, %v2284
        %v2476 = vadd.f32 %v2028, %v2284
        %v2477 = vadd.f32 %v2029, %v2284
        %v2478 = vadd.f32 %v2030, %v2284
        %v2479 = vadd.f32 %v2031, %v2284
        %v2480 = vadd.f32 %v2032, %v2284
        %v2481 = vadd.f32 %v2033, %v2284
        %v2482 = vadd.f32 %v2034, %v2289
        %v2483 = vadd.f32 %v2035, %v2289
        %v2484 = vadd.f32 %v2036, %v2289
        %v2485 = vadd.f32 %v2037, %v2289
        %v2486 = vadd.f32 %v2038, %v2289
        %v2487 = vadd.f32 %v2039, %v2289
        %v2488 = vadd.f32 %v2040, %v2289
        %v2489 = vadd.f32 %v2041, %v2289
        %v2490 = vadd.f32 %v2042, %v2294
        %v2491 = vadd.f32 %v2043, %v2294
        %v2492 = vadd.f32 %v2044, %v2294
        %v2493 = vadd.f32 %v2045, %v2294
        %v2494 = vadd.f32 %v2046, %v2294
        %v2495 = vadd.f32 %v2047, %v2294
        %v2496 = vadd.f32 %v2048, %v2294
        %v2497 = vadd.f32 %v2049, %v2294
        %v2498 = vadd.f32 %v2050, %v2299
        %v2499 = vadd.f32 %v2051, %v2299
        %v2500 = vadd.f32 %v2052, %v2299
        %v2501 = vadd.f32 %v2053, %v2299
        %v2502 = vadd.f32 %v2054, %v2299
        %v2503 = vadd.f32 %v2055, %v2299
        %v2504 = vadd.f32 %v2056, %v2299
        %v2505 = vadd.f32 %v2057, %v2299
        %v2506 = vadd.f32 %v2058, %v2304
        %v2507 = vadd.f32 %v2059, %v2304
        %v2508 = vadd.f32 %v2060, %v2304
        %v2509 = vadd.f32 %v2061, %v2304
        %v2510 = vadd.f32 %v2062, %v2304
        %v2511 = vadd.f32 %v2063, %v2304
        %v2512 = vadd.f32 %v2064, %v2304
        %v2513 = vadd.f32 %v2065, %v2304
        %v2514 = vadd.f32 %v2066, %v2309
        %v2515 = vadd.f32 %v2067, %v2309
        %v2516 = vadd.f32 %v2068, %v2309
        %v2517 = vadd.f32 %v2069, %v2309
        %v2518 = vadd.f32 %v2070, %v2309
        %v2519 = vadd.f32 %v2071, %v2309
        %v2520 = vadd.f32 %v2072, %v2309
        %v2521 = vadd.f32 %v2073, %v2309
        %v2522 = vadd.f32 %v2074, %v2314
        %v2523 = vadd.f32 %v2075, %v2314
        %v2524 = vadd.f32 %v2076, %v2314
        %v2525 = vadd.f32 %v2077, %v2314
        %v2526 = vadd.f32 %v2078, %v2314
        %v2527 = vadd.f32 %v2079, %v2314
        %v2528 = vadd.f32 %v2080, %v2314
        %v2529 = vadd.f32 %v2081, %v2314
        %v2530 = vadd.f32 %v2082, %v2319
        %v2531 = vadd.f32 %v2083, %v2319
        %v2532 = vadd.f32 %v2084, %v2319
        %v2533 = vadd.f32 %v2085, %v2319
        %v2534 = vadd.f32 %v2086, %v2319
        %v2535 = vadd.f32 %v2087, %v2319
        %v2536 = vadd.f32 %v2088, %v2319
        %v2537 = vadd.f32 %v2089, %v2319
        %v2538 = vadd.f32 %v2090, %v2324
        %v2539 = vadd.f32 %v2091, %v2324
        %v2540 = vadd.f32 %v2092, %v2324
        %v2541 = vadd.f32 %v2093, %v2324
        %v2542 = vadd.f32 %v2094, %v2324
        %v2543 = vadd.f32 %v2095, %v2324
        %v2544 = vadd.f32 %v2096, %v2324
        %v2545 = vadd.f32 %v2097, %v2324
        %v2546 = vadd.f32 %v2098, %v2329
        %v2547 = vadd.f32 %v2099, %v2329
        %v2548 = vadd.f32 %v2100, %v2329
        %v2549 = vadd.f32 %v2101, %v2329
        %v2550 = vadd.f32 %v2102, %v2329
        %v2551 = vadd.f32 %v2103, %v2329
        %v2552 = vadd.f32 %v2104, %v2329
        %v2553 = vadd.f32 %v2105, %v2329
        %v2554 = vadd.f32 %v2106, %v2334
        %v2555 = vadd.f32 %v2107, %v2334
        %v2556 = vadd.f32 %v2108, %v2334
        %v2557 = vadd.f32 %v2109, %v2334
        %v2558 = vadd.f32 %v2110, %v2334
        %v2559 = vadd.f32 %v2111, %v2334
        %v2560 = vadd.f32 %v2112, %v2334
        %v2561 = vadd.f32 %v2113, %v2334
        %v2562 = vadd.f32 %v2114, %v2339
        %v2563 = vadd.f32 %v2115, %v2339
        %v2564 = vadd.f32 %v2116, %v2339
        %v2565 = vadd.f32 %v2117, %v2339
        %v2566 = vadd.f32 %v2118, %v2339
        %v2567 = vadd.f32 %v2119, %v2339
        %v2568 = vadd.f32 %v2120, %v2339
        %v2569 = vadd.f32 %v2121, %v2339
        %v2570 = vadd.f32 %v2122, %v2344
        %v2571 = vadd.f32 %v2123, %v2344
        %v2572 = vadd.f32 %v2124, %v2344
        %v2573 = vadd.f32 %v2125, %v2344
        %v2574 = vadd.f32 %v2126, %v2344
        %v2575 = vadd.f32 %v2127, %v2344
        %v2576 = vadd.f32 %v2128, %v2344
        %v2577 = vadd.f32 %v2129, %v2344
        %v2578 = vadd.f32 %v2130, %v2349
        %v2579 = vadd.f32 %v2131, %v2349
        %v2580 = vadd.f32 %v2132, %v2349
        %v2581 = vadd.f32 %v2133, %v2349
        %v2582 = vadd.f32 %v2134, %v2349
        %v2583 = vadd.f32 %v2135, %v2349
        %v2584 = vadd.f32 %v2136, %v2349
        %v2585 = vadd.f32 %v2137, %v2349
        %v2586 = vadd.f32 %v2138, %v2354
        %v2587 = vadd.f32 %v2139, %v2354
        %v2588 = vadd.f32 %v2140, %v2354
        %v2589 = vadd.f32 %v2141, %v2354
        %v2590 = vadd.f32 %v2142, %v2354
        %v2591 = vadd.f32 %v2143, %v2354
        %v2592 = vadd.f32 %v2144, %v2354
        %v2593 = vadd.f32 %v2145, %v2354
        %v2594 = vadd.f32 %v2146, %v2359
        %v2595 = vadd.f32 %v2147, %v2359
        %v2596 = vadd.f32 %v2148, %v2359
        %v2597 = vadd.f32 %v2149, %v2359
        %v2598 = vadd.f32 %v2150, %v2359
        %v2599 = vadd.f32 %v2151, %v2359
        %v2600 = vadd.f32 %v2152, %v2359
        %v2601 = vadd.f32 %v2153, %v2359
        %v2602 = vadd.f32 %v2154, %v2364
        %v2603 = vadd.f32 %v2155, %v2364
        %v2604 = vadd.f32 %v2156, %v2364
        %v2605 = vadd.f32 %v2157, %v2364
        %v2606 = vadd.f32 %v2158, %v2364
        %v2607 = vadd.f32 %v2159, %v2364
        %v2608 = vadd.f32 %v2160, %v2364
        %v2609 = vadd.f32 %v2161, %v2364
        %v2610 = vadd.f32 %v2162, %v2369
        %v2611 = vadd.f32 %v2163, %v2369
        %v2612 = vadd.f32 %v2164, %v2369
        %v2613 = vadd.f32 %v2165, %v2369
        %v2614 = vadd.f32 %v2166, %v2369
        %v2615 = vadd.f32 %v2167, %v2369
        %v2616 = vadd.f32 %v2168, %v2369
        %v2617 = vadd.f32 %v2169, %v2369
        %v2618 = vadd.f32 %v2170, %v2374
        %v2619 = vadd.f32 %v2171, %v2374
        %v2620 = vadd.f32 %v2172, %v2374
        %v2621 = vadd.f32 %v2173, %v2374
        %v2622 = vadd.f32 %v2174, %v2374
        %v2623 = vadd.f32 %v2175, %v2374
        %v2624 = vadd.f32 %v2176, %v2374
        %v2625 = vadd.f32 %v2177, %v2374
        %v2626 = vadd.f32 %v2178, %v2379
        %v2627 = vadd.f32 %v2179, %v2379
        %v2628 = vadd.f32 %v2180, %v2379
        %v2629 = vadd.f32 %v2181, %v2379
        %v2630 = vadd.f32 %v2182, %v2379
        %v2631 = vadd.f32 %v2183, %v2379
        %v2632 = vadd.f32 %v2184, %v2379
        %v2633 = vadd.f32 %v2185, %v2379
        %v2634 = vadd.f32 %v2186, %v2384
        %v2635 = vadd.f32 %v2187, %v2384
        %v2636 = vadd.f32 %v2188, %v2384
        %v2637 = vadd.f32 %v2189, %v2384
        %v2638 = vadd.f32 %v2190, %v2384
        %v2639 = vadd.f32 %v2191, %v2384
        %v2640 = vadd.f32 %v2192, %v2384
        %v2641 = vadd.f32 %v2193, %v2384
        %v2642 = vmax.f32 %v2386, 0.0
        %v2643 = vmax.f32 %v2387, 0.0
        %v2644 = vmax.f32 %v2388, 0.0
        %v2645 = vmax.f32 %v2389, 0.0
        %v2646 = vmax.f32 %v2390, 0.0
        %v2647 = vmax.f32 %v2391, 0.0
        %v2648 = vmax.f32 %v2392, 0.0
        %v2649 = vmax.f32 %v2393, 0.0
        %v2650 = vmax.f32 %v2394, 0.0
        %v2651 = vmax.f32 %v2395, 0.0
        %v2652 = vmax.f32 %v2396, 0.0
        %v2653 = vmax.f32 %v2397, 0.0
        %v2654 = vmax.f32 %v2398, 0.0
        %v2655 = vmax.f32 %v2399, 0.0
        %v2656 = vmax.f32 %v2400, 0.0
        %v2657 = vmax.f32 %v2401, 0.0
        %v2658 = vmax.f32 %v2402, 0.0
        %v2659 = vmax.f32 %v2403, 0.0
        %v2660 = vmax.f32 %v2404, 0.0
        %v2661 = vmax.f32 %v2405, 0.0
        %v2662 = vmax.f32 %v2406, 0.0
        %v2663 = vmax.f32 %v2407, 0.0
        %v2664 = vmax.f32 %v2408, 0.0
        %v2665 = vmax.f32 %v2409, 0.0
        %v2666 = vmax.f32 %v2410, 0.0
        %v2667 = vmax.f32 %v2411, 0.0
        %v2668 = vmax.f32 %v2412, 0.0
        %v2669 = vmax.f32 %v2413, 0.0
        %v2670 = vmax.f32 %v2414, 0.0
        %v2671 = vmax.f32 %v2415, 0.0
        %v2672 = vmax.f32 %v2416, 0.0
        %v2673 = vmax.f32 %v2417, 0.0
        %v2674 = vmax.f32 %v2418, 0.0
        %v2675 = vmax.f32 %v2419, 0.0
        %v2676 = vmax.f32 %v2420, 0.0
        %v2677 = vmax.f32 %v2421, 0.0
        %v2678 = vmax.f32 %v2422, 0.0
        %v2679 = vmax.f32 %v2423, 0.0
        %v2680 = vmax.f32 %v2424, 0.0
        %v2681 = vmax.f32 %v2425, 0.0
        %v2682 = vmax.f32 %v2426, 0.0
        %v2683 = vmax.f32 %v2427, 0.0
        %v2684 = vmax.f32 %v2428, 0.0
        %v2685 = vmax.f32 %v2429, 0.0
        %v2686 = vmax.f32 %v2430, 0.0
        %v2687 = vmax.f32 %v2431, 0.0
        %v2688 = vmax.f32 %v2432, 0.0
        %v2689 = vmax.f32 %v2433, 0.0
        %v2690 = vmax.f32 %v2434, 0.0
        %v2691 = vmax.f32 %v2435, 0.0
        %v2692 = vmax.f32 %v2436, 0.0
        %v2693 = vmax.f32 %v2437, 0.0
        %v2694 = vmax.f32 %v2438, 0.0
        %v2695 = vmax.f32 %v2439, 0.0
        %v2696 = vmax.f32 %v2440, 0.0
        %v2697 = vmax.f32 %v2441, 0.0
        %v2698 = vmax.f32 %v2442, 0.0
        %v2699 = vmax.f32 %v2443, 0.0
        %v2700 = vmax.f32 %v2444, 0.0
        %v2701 = vmax.f32 %v2445, 0.0
        %v2702 = vmax.f32 %v2446, 0.0
        %v2703 = vmax.f32 %v2447, 0.0
        %v2704 = vmax.f32 %v2448, 0.0
        %v2705 = vmax.f32 %v2449, 0.0
        %v2706 = vmax.f32 %v2450, 0.0
        %v2707 = vmax.f32 %v2451, 0.0
        %v2708 = vmax.f32 %v2452, 0.0
        %v2709 = vmax.f32 %v2453, 0.0
        %v2710 = vmax.f32 %v2454, 0.0
        %v2711 = vmax.f32 %v2455, 0.0
        %v2712 = vmax.f32 %v2456, 0.0
        %v2713 = vmax.f32 %v2457, 0.0
        %v2714 = vmax.f32 %v2458, 0.0
        %v2715 = vmax.f32 %v2459, 0.0
        %v2716 = vmax.f32 %v2460, 0.0
        %v2717 = vmax.f32 %v2461, 0.0
        %v2718 = vmax.f32 %v2462, 0.0
        %v2719 = vmax.f32 %v2463, 0.0
        %v2720 = vmax.f32 %v2464, 0.0
        %v2721 = vmax.f32 %v2465, 0.0
        %v2722 = vmax.f32 %v2466, 0.0
        %v2723 = vmax.f32 %v2467, 0.0
        %v2724 = vmax.f32 %v2468, 0.0
        %v2725 = vmax.f32 %v2469, 0.0
        %v2726 = vmax.f32 %v2470, 0.0
        %v2727 = vmax.f32 %v2471, 0.0
        %v2728 = vmax.f32 %v2472, 0.0
        %v2729 = vmax.f32 %v2473, 0.0
        %v2730 = vmax.f32 %v2474, 0.0
        %v2731 = vmax.f32 %v2475, 0.0
        %v2732 = vmax.f32 %v2476, 0.0
        %v2733 = vmax.f32 %v2477, 0.0
        %v2734 = vmax.f32 %v2478, 0.0
        %v2735 = vmax.f32 %v2479, 0.0
        %v2736 = vmax.f32 %v2480, 0.0
        %v2737 = vmax.f32 %v2481, 0.0
        %v2738 = vmax.f32 %v2482, 0.0
        %v2739 = vmax.f32 %v2483, 0.0
        %v2740 = vmax.f32 %v2484, 0.0
        %v2741 = vmax.f32 %v2485, 0.0
        %v2742 = vmax.f32 %v2486, 0.0
        %v2743 = vmax.f32 %v2487, 0.0
        %v2744 = vmax.f32 %v2488, 0.0
        %v2745 = vmax.f32 %v2489, 0.0
        %v2746 = vmax.f32 %v2490, 0.0
        %v2747 = vmax.f32 %v2491, 0.0
        %v2748 = vmax.f32 %v2492, 0.0
        %v2749 = vmax.f32 %v2493, 0.0
        %v2750 = vmax.f32 %v2494, 0.0
        %v2751 = vmax.f32 %v2495, 0.0
        %v2752 = vmax.f32 %v2496, 0.0
        %v2753 = vmax.f32 %v2497, 0.0
        %v2754 = vmax.f32 %v2498, 0.0
        %v2755 = vmax.f32 %v2499, 0.0
        %v2756 = vmax.f32 %v2500, 0.0
        %v2757 = vmax.f32 %v2501, 0.0
        %v2758 = vmax.f32 %v2502, 0.0
        %v2759 = vmax.f32 %v2503, 0.0
        %v2760 = vmax.f32 %v2504, 0.0
        %v2761 = vmax.f32 %v2505, 0.0
        %v2762 = vmax.f32 %v2506, 0.0
        %v2763 = vmax.f32 %v2507, 0.0
        %v2764 = vmax.f32 %v2508, 0.0
        %v2765 = vmax.f32 %v2509, 0.0
        %v2766 = vmax.f32 %v2510, 0.0
        %v2767 = vmax.f32 %v2511, 0.0
        %v2768 = vmax.f32 %v2512, 0.0
        %v2769 = vmax.f32 %v2513, 0.0
        %v2770 = vmax.f32 %v2514, 0.0
        %v2771 = vmax.f32 %v2515, 0.0
        %v2772 = vmax.f32 %v2516, 0.0
        %v2773 = vmax.f32 %v2517, 0.0
        %v2774 = vmax.f32 %v2518, 0.0
        %v2775 = vmax.f32 %v2519, 0.0
        %v2776 = vmax.f32 %v2520, 0.0
        %v2777 = vmax.f32 %v2521, 0.0
        %v2778 = vmax.f32 %v2522, 0.0
        %v2779 = vmax.f32 %v2523, 0.0
        %v2780 = vmax.f32 %v2524, 0.0
        %v2781 = vmax.f32 %v2525, 0.0
        %v2782 = vmax.f32 %v2526, 0.0
        %v2783 = vmax.f32 %v2527, 0.0
        %v2784 = vmax.f32 %v2528, 0.0
        %v2785 = vmax.f32 %v2529, 0.0
        %v2786 = vmax.f32 %v2530, 0.0
        %v2787 = vmax.f32 %v2531, 0.0
        %v2788 = vmax.f32 %v2532, 0.0
        %v2789 = vmax.f32 %v2533, 0.0
        %v2790 = vmax.f32 %v2534, 0.0
        %v2791 = vmax.f32 %v2535, 0.0
        %v2792 = vmax.f32 %v2536, 0.0
        %v2793 = vmax.f32 %v2537, 0.0
        %v2794 = vmax.f32 %v2538, 0.0
        %v2795 = vmax.f32 %v2539, 0.0
        %v2796 = vmax.f32 %v2540, 0.0
        %v2797 = vmax.f32 %v2541, 0.0
        %v2798 = vmax.f32 %v2542, 0.0
        %v2799 = vmax.f32 %v2543, 0.0
        %v2800 = vmax.f32 %v2544, 0.0
        %v2801 = vmax.f32 %v2545, 0.0
        %v2802 = vmax.f32 %v2546, 0.0
        %v2803 = vmax.f32 %v2547, 0.0
        %v2804 = vmax.f32 %v2548, 0.0
        %v2805 = vmax.f32 %v2549, 0.0
        %v2806 = vmax.f32 %v2550, 0.0
        %v2807 = vmax.f32 %v2551, 0.0
        %v2808 = vmax.f32 %v2552, 0.0
        %v2809 = vmax.f32 %v2553, 0.0
        %v2810 = vmax.f32 %v2554, 0.0
        %v2811 = vmax.f32 %v2555, 0.0
        %v2812 = vmax.f32 %v2556, 0.0
        %v2813 = vmax.f32 %v2557, 0.0
        %v2814 = vmax.f32 %v2558, 0.0
        %v2815 = vmax.f32 %v2559, 0.0
        %v2816 = vmax.f32 %v2560, 0.0
        %v2817 = vmax.f32 %v2561, 0.0
        %v2818 = vmax.f32 %v2562, 0.0
        %v2819 = vmax.f32 %v2563, 0.0
        %v2820 = vmax.f32 %v2564, 0.0
        %v2821 = vmax.f32 %v2565, 0.0
        %v2822 = vmax.f32 %v2566, 0.0
        %v2823 = vmax.f32 %v2567, 0.0
        %v2824 = vmax.f32 %v2568, 0.0
        %v2825 = vmax.f32 %v2569, 0.0
        %v2826 = vmax.f32 %v2570, 0.0
        %v2827 = vmax.f32 %v2571, 0.0
        %v2828 = vmax.f32 %v2572, 0.0
        %v2829 = vmax.f32 %v2573, 0.0
        %v2830 = vmax.f32 %v2574, 0.0
        %v2831 = vmax.f32 %v2575, 0.0
        %v2832 = vmax.f32 %v2576, 0.0
        %v2833 = vmax.f32 %v2577, 0.0
        %v2834 = vmax.f32 %v2578, 0.0
        %v2835 = vmax.f32 %v2579, 0.0
        %v2836 = vmax.f32 %v2580, 0.0
        %v2837 = vmax.f32 %v2581, 0.0
        %v2838 = vmax.f32 %v2582, 0.0
        %v2839 = vmax.f32 %v2583, 0.0
        %v2840 = vmax.f32 %v2584, 0.0
        %v2841 = vmax.f32 %v2585, 0.0
        %v2842 = vmax.f32 %v2586, 0.0
        %v2843 = vmax.f32 %v2587, 0.0
        %v2844 = vmax.f32 %v2588, 0.0
        %v2845 = vmax.f32 %v2589, 0.0
        %v2846 = vmax.f32 %v2590, 0.0
        %v2847 = vmax.f32 %v2591, 0.0
        %v2848 = vmax.f32 %v2592, 0.0
        %v2849 = vmax.f32 %v2593, 0.0
        %v2850 = vmax.f32 %v2594, 0.0
        %v2851 = vmax.f32 %v2595, 0.0
        %v2852 = vmax.f32 %v2596, 0.0
        %v2853 = vmax.f32 %v2597, 0.0
        %v2854 = vmax.f32 %v2598, 0.0
        %v2855 = vmax.f32 %v2599, 0.0
        %v2856 = vmax.f32 %v2600, 0.0
        %v2857 = vmax.f32 %v2601, 0.0
        %v2858 = vmax.f32 %v2602, 0.0
        %v2859 = vmax.f32 %v2603, 0.0
        %v2860 = vmax.f32 %v2604, 0.0
        %v2861 = vmax.f32 %v2605, 0.0
        %v2862 = vmax.f32 %v2606, 0.0
        %v2863 = vmax.f32 %v2607, 0.0
        %v2864 = vmax.f32 %v2608, 0.0
        %v2865 = vmax.f32 %v2609, 0.0
        %v2866 = vmax.f32 %v2610, 0.0
        %v2867 = vmax.f32 %v2611, 0.0
        %v2868 = vmax.f32 %v2612, 0.0
        %v2869 = vmax.f32 %v2613, 0.0
        %v2870 = vmax.f32 %v2614, 0.0
        %v2871 = vmax.f32 %v2615, 0.0
        %v2872 = vmax.f32 %v2616, 0.0
        %v2873 = vmax.f32 %v2617, 0.0
        %v2874 = vmax.f32 %v2618, 0.0
        %v2875 = vmax.f32 %v2619, 0.0
        %v2876 = vmax.f32 %v2620, 0.0
        %v2877 = vmax.f32 %v2621, 0.0
        %v2878 = vmax.f32 %v2622, 0.0
        %v2879 = vmax.f32 %v2623, 0.0
        %v2880 = vmax.f32 %v2624, 0.0
        %v2881 = vmax.f32 %v2625, 0.0
        %v2882 = vmax.f32 %v2626, 0.0
        %v2883 = vmax.f32 %v2627, 0.0
        %v2884 = vmax.f32 %v2628, 0.0
        %v2885 = vmax.f32 %v2629, 0.0
        %v2886 = vmax.f32 %v2630, 0.0
        %v2887 = vmax.f32 %v2631, 0.0
        %v2888 = vmax.f32 %v2632, 0.0
        %v2889 = vmax.f32 %v2633, 0.0
        %v2890 = vmax.f32 %v2634, 0.0
        %v2891 = vmax.f32 %v2635, 0.0
        %v2892 = vmax.f32 %v2636, 0.0
        %v2893 = vmax.f32 %v2637, 0.0
        %v2894 = vmax.f32 %v2638, 0.0
        %v2895 = vmax.f32 %v2639, 0.0
        %v2896 = vmax.f32 %v2640, 0.0
        %v2897 = vmax.f32 %v2641, 0.0
        %v2898 = vld [vmem:[#allocation2] sm:$0xff]
        %v2899 = vld [vmem:[#allocation2 + $0x8] sm:$0xff]
        %v2900 = vld [vmem:[#allocation2 + $0x10] sm:$0xff]
        %v2901 = vld [vmem:[#allocation2 + $0x18] sm:$0xff]
        %v2902 = vld [vmem:[#allocation2 + $0x20] sm:$0xff]
        %v2903 = vld [vmem:[#allocation2 + $0x28] sm:$0xff]
        %v2904 = vld [vmem:[#allocation2 + $0x30] sm:$0xff]
        %v2905 = vld [vmem:[#allocation2 + $0x38] sm:$0xff]
        %v2906 = vld [vmem:[#allocation2 + $0x40] sm:$0xff]
        %v2907 = vld [vmem:[#allocation2 + $0x48] sm:$0xff]
        %v2908 = vld [vmem:[#allocation2 + $0x50] sm:$0xff]
        %v2909 = vld [vmem:[#allocation2 + $0x58] sm:$0xff]
        %v2910 = vld [vmem:[#allocation2 + $0x60] sm:$0xff]
        %v2911 = vld [vmem:[#allocation2 + $0x68] sm:$0xff]
        %v2912 = vld [vmem:[#allocation2 + $0x70] sm:$0xff]
        %v2913 = vld [vmem:[#allocation2 + $0x78] sm:$0xff]
        %v2914 = vld [vmem:[#allocation2 + $0x80] sm:$0xff]
        %v2915 = vld [vmem:[#allocation2 + $0x88] sm:$0xff]
        %v2916 = vld [vmem:[#allocation2 + $0x90] sm:$0xff]
        %v2917 = vld [vmem:[#allocation2 + $0x98] sm:$0xff]
        %v2918 = vld [vmem:[#allocation2 + $0xa0] sm:$0xff]
        %v2919 = vld [vmem:[#allocation2 + $0xa8] sm:$0xff]
        %v2920 = vld [vmem:[#allocation2 + $0xb0] sm:$0xff]
        %v2921 = vld [vmem:[#allocation2 + $0xb8] sm:$0xff]
        %v2922 = vld [vmem:[#allocation2 + $0xc0] sm:$0xff]
        %v2923 = vld [vmem:[#allocation2 + $0xc8] sm:$0xff]
        %v2924 = vld [vmem:[#allocation2 + $0xd0] sm:$0xff]
        %v2925 = vld [vmem:[#allocation2 + $0xd8] sm:$0xff]
        %v2926 = vld [vmem:[#allocation2 + $0xe0] sm:$0xff]
        %v2927 = vld [vmem:[#allocation2 + $0xe8] sm:$0xff]
        %v2928 = vld [vmem:[#allocation2 + $0xf0] sm:$0xff]
        %v2929 = vld [vmem:[#allocation2 + $0xf8] sm:$0xff]
        %v2930 = vpack.c.bf16 %v2650, %v2642
        %v2931 = vpack.c.bf16 %v2651, %v2643
        %v2932 = vpack.c.bf16 %v2652, %v2644
        %v2933 = vpack.c.bf16 %v2653, %v2645
        %v2934 = vpack.c.bf16 %v2654, %v2646
        %v2935 = vpack.c.bf16 %v2655, %v2647
        %v2936 = vpack.c.bf16 %v2656, %v2648
        %v2937 = vpack.c.bf16 %v2657, %v2649
        %v2938 = vpack.c.bf16 %v2666, %v2658
        %v2939 = vpack.c.bf16 %v2667, %v2659
        %v2940 = vpack.c.bf16 %v2668, %v2660
        %v2941 = vpack.c.bf16 %v2669, %v2661
        %v2942 = vpack.c.bf16 %v2670, %v2662
        %v2943 = vpack.c.bf16 %v2671, %v2663
        %v2944 = vpack.c.bf16 %v2672, %v2664
        %v2945 = vpack.c.bf16 %v2673, %v2665
        %v2946 = vpack.c.bf16 %v2682, %v2674
        %v2947 = vpack.c.bf16 %v2683, %v2675
        %v2948 = vpack.c.bf16 %v2684, %v2676
        %v2949 = vpack.c.bf16 %v2685, %v2677
        %v2950 = vpack.c.bf16 %v2686, %v2678
        %v2951 = vpack.c.bf16 %v2687, %v2679
        %v2952 = vpack.c.bf16 %v2688, %v2680
        %v2953 = vpack.c.bf16 %v2689, %v2681
        %v2954 = vpack.c.bf16 %v2698, %v2690
        %v2955 = vpack.c.bf16 %v2699, %v2691
        %v2956 = vpack.c.bf16 %v2700, %v2692
        %v2957 = vpack.c.bf16 %v2701, %v2693
        %v2958 = vpack.c.bf16 %v2702, %v2694
        %v2959 = vpack.c.bf16 %v2703, %v2695
        %v2960 = vpack.c.bf16 %v2704, %v2696
        %v2961 = vpack.c.bf16 %v2705, %v2697
        %v2962 = vpack.c.bf16 %v2714, %v2706
        %v2963 = vpack.c.bf16 %v2715, %v2707
        %v2964 = vpack.c.bf16 %v2716, %v2708
        %v2965 = vpack.c.bf16 %v2717, %v2709
        %v2966 = vpack.c.bf16 %v2718, %v2710
        %v2967 = vpack.c.bf16 %v2719, %v2711
        %v2968 = vpack.c.bf16 %v2720, %v2712
        %v2969 = vpack.c.bf16 %v2721, %v2713
        %v2970 = vpack.c.bf16 %v2730, %v2722
        %v2971 = vpack.c.bf16 %v2731, %v2723
        %v2972 = vpack.c.bf16 %v2732, %v2724
        %v2973 = vpack.c.bf16 %v2733, %v2725
        %v2974 = vpack.c.bf16 %v2734, %v2726
        %v2975 = vpack.c.bf16 %v2735, %v2727
        %v2976 = vpack.c.bf16 %v2736, %v2728
        %v2977 = vpack.c.bf16 %v2737, %v2729
        %v2978 = vpack.c.bf16 %v2746, %v2738
        %v2979 = vpack.c.bf16 %v2747, %v2739
        %v2980 = vpack.c.bf16 %v2748, %v2740
        %v2981 = vpack.c.bf16 %v2749, %v2741
        %v2982 = vpack.c.bf16 %v2750, %v2742
        %v2983 = vpack.c.bf16 %v2751, %v2743
        %v2984 = vpack.c.bf16 %v2752, %v2744
        %v2985 = vpack.c.bf16 %v2753, %v2745
        %v2986 = vpack.c.bf16 %v2762, %v2754
        %v2987 = vpack.c.bf16 %v2763, %v2755
        %v2988 = vpack.c.bf16 %v2764, %v2756
        %v2989 = vpack.c.bf16 %v2765, %v2757
        %v2990 = vpack.c.bf16 %v2766, %v2758
        %v2991 = vpack.c.bf16 %v2767, %v2759
        %v2992 = vpack.c.bf16 %v2768, %v2760
        %v2993 = vpack.c.bf16 %v2769, %v2761
        %v2994 = vpack.c.bf16 %v2778, %v2770
        %v2995 = vpack.c.bf16 %v2779, %v2771
        %v2996 = vpack.c.bf16 %v2780, %v2772
        %v2997 = vpack.c.bf16 %v2781, %v2773
        %v2998 = vpack.c.bf16 %v2782, %v2774
        %v2999 = vpack.c.bf16 %v2783, %v2775
        %v3000 = vpack.c.bf16 %v2784, %v2776
        %v3001 = vpack.c.bf16 %v2785, %v2777
        %v3002 = vpack.c.bf16 %v2794, %v2786
        %v3003 = vpack.c.bf16 %v2795, %v2787
        %v3004 = vpack.c.bf16 %v2796, %v2788
        %v3005 = vpack.c.bf16 %v2797, %v2789
        %v3006 = vpack.c.bf16 %v2798, %v2790
        %v3007 = vpack.c.bf16 %v2799, %v2791
        %v3008 = vpack.c.bf16 %v2800, %v2792
        %v3009 = vpack.c.bf16 %v2801, %v2793
        %v3010 = vpack.c.bf16 %v2810, %v2802
        %v3011 = vpack.c.bf16 %v2811, %v2803
        %v3012 = vpack.c.bf16 %v2812, %v2804
        %v3013 = vpack.c.bf16 %v2813, %v2805
        %v3014 = vpack.c.bf16 %v2814, %v2806
        %v3015 = vpack.c.bf16 %v2815, %v2807
        %v3016 = vpack.c.bf16 %v2816, %v2808
        %v3017 = vpack.c.bf16 %v2817, %v2809
        %v3018 = vpack.c.bf16 %v2826, %v2818
        %v3019 = vpack.c.bf16 %v2827, %v2819
        %v3020 = vpack.c.bf16 %v2828, %v2820
        %v3021 = vpack.c.bf16 %v2829, %v2821
        %v3022 = vpack.c.bf16 %v2830, %v2822
        %v3023 = vpack.c.bf16 %v2831, %v2823
        %v3024 = vpack.c.bf16 %v2832, %v2824
        %v3025 = vpack.c.bf16 %v2833, %v2825
        %v3026 = vpack.c.bf16 %v2842, %v2834
        %v3027 = vpack.c.bf16 %v2843, %v2835
        %v3028 = vpack.c.bf16 %v2844, %v2836
        %v3029 = vpack.c.bf16 %v2845, %v2837
        %v3030 = vpack.c.bf16 %v2846, %v2838
        %v3031 = vpack.c.bf16 %v2847, %v2839
        %v3032 = vpack.c.bf16 %v2848, %v2840
        %v3033 = vpack.c.bf16 %v2849, %v2841
        %v3034 = vpack.c.bf16 %v2858, %v2850
        %v3035 = vpack.c.bf16 %v2859, %v2851
        %v3036 = vpack.c.bf16 %v2860, %v2852
        %v3037 = vpack.c.bf16 %v2861, %v2853
        %v3038 = vpack.c.bf16 %v2862, %v2854
        %v3039 = vpack.c.bf16 %v2863, %v2855
        %v3040 = vpack.c.bf16 %v2864, %v2856
        %v3041 = vpack.c.bf16 %v2865, %v2857
        %v3042 = vpack.c.bf16 %v2874, %v2866
        %v3043 = vpack.c.bf16 %v2875, %v2867
        %v3044 = vpack.c.bf16 %v2876, %v2868
        %v3045 = vpack.c.bf16 %v2877, %v2869
        %v3046 = vpack.c.bf16 %v2878, %v2870
        %v3047 = vpack.c.bf16 %v2879, %v2871
        %v3048 = vpack.c.bf16 %v2880, %v2872
        %v3049 = vpack.c.bf16 %v2881, %v2873
        %v3050 = vpack.c.bf16 %v2890, %v2882
        %v3051 = vpack.c.bf16 %v2891, %v2883
        %v3052 = vpack.c.bf16 %v2892, %v2884
        %v3053 = vpack.c.bf16 %v2893, %v2885
        %v3054 = vpack.c.bf16 %v2894, %v2886
        %v3055 = vpack.c.bf16 %v2895, %v2887
        %v3056 = vpack.c.bf16 %v2896, %v2888
        %v3057 = vpack.c.bf16 %v2897, %v2889
        %3058 = vset.pattern.permute.xlu0 1
        %3059 = vperm.xlu0 %3058, %v2194
        %v3060 = vpop.permute.xlu0 %3059
        %3062 = vset.pattern.permute.xlu0 1
        %3063 = vperm.xlu0 %3062, %v2195
        %v3064 = vpop.permute.xlu0 %3063
        %3066 = vset.pattern.permute.xlu0 1
        %3067 = vperm.xlu0 %3066, %v2196
        %v3068 = vpop.permute.xlu0 %3067
        %3070 = vset.pattern.permute.xlu0 1
        %3071 = vperm.xlu0 %3070, %v2197
        %v3072 = vpop.permute.xlu0 %3071
        %3074 = vset.pattern.permute.xlu0 1
        %3075 = vperm.xlu0 %3074, %v2198
        %v3076 = vpop.permute.xlu0 %3075
        %3078 = vset.pattern.permute.xlu0 1
        %3079 = vperm.xlu0 %3078, %v2199
        %v3080 = vpop.permute.xlu0 %3079
        %3082 = vset.pattern.permute.xlu0 1
        %3083 = vperm.xlu0 %3082, %v2200
        %v3084 = vpop.permute.xlu0 %3083
        %3086 = vset.pattern.permute.xlu0 1
        %3087 = vperm.xlu0 %3086, %v2201
        %v3088 = vpop.permute.xlu0 %3087
        %3090 = vset.pattern.permute.xlu0 1
        %3091 = vperm.xlu0 %3090, %v2202
        %v3092 = vpop.permute.xlu0 %3091
        %3094 = vset.pattern.permute.xlu0 1
        %3095 = vperm.xlu0 %3094, %v2203
        %v3096 = vpop.permute.xlu0 %3095
        %3098 = vset.pattern.permute.xlu0 1
        %3099 = vperm.xlu0 %3098, %v2204
        %v3100 = vpop.permute.xlu0 %3099
        %3102 = vset.pattern.permute.xlu0 1
        %3103 = vperm.xlu0 %3102, %v2205
        %v3104 = vpop.permute.xlu0 %3103
        %3106 = vset.pattern.permute.xlu0 1
        %3107 = vperm.xlu0 %3106, %v2206
        %v3108 = vpop.permute.xlu0 %3107
        %3110 = vset.pattern.permute.xlu0 1
        %3111 = vperm.xlu0 %3110, %v2207
        %v3112 = vpop.permute.xlu0 %3111
        %3114 = vset.pattern.permute.xlu0 1
        %3115 = vperm.xlu0 %3114, %v2208
        %v3116 = vpop.permute.xlu0 %3115
        %3118 = vset.pattern.permute.xlu0 1
        %3119 = vperm.xlu0 %3118, %v2209
        %v3120 = vpop.permute.xlu0 %3119
        %3122 = vset.pattern.permute.xlu0 1
        %3123 = vperm.xlu0 %3122, %v2210
        %v3124 = vpop.permute.xlu0 %3123
        %3126 = vset.pattern.permute.xlu0 1
        %3127 = vperm.xlu0 %3126, %v2211
        %v3128 = vpop.permute.xlu0 %3127
        %3130 = vset.pattern.permute.xlu0 1
        %3131 = vperm.xlu0 %3130, %v2212
        %v3132 = vpop.permute.xlu0 %3131
        %3134 = vset.pattern.permute.xlu0 1
        %3135 = vperm.xlu0 %3134, %v2213
        %v3136 = vpop.permute.xlu0 %3135
        %3138 = vset.pattern.permute.xlu0 1
        %3139 = vperm.xlu0 %3138, %v2214
        %v3140 = vpop.permute.xlu0 %3139
        %3142 = vset.pattern.permute.xlu0 1
        %3143 = vperm.xlu0 %3142, %v2215
        %v3144 = vpop.permute.xlu0 %3143
        %3146 = vset.pattern.permute.xlu0 1
        %3147 = vperm.xlu0 %3146, %v2216
        %v3148 = vpop.permute.xlu0 %3147
        %3150 = vset.pattern.permute.xlu0 1
        %3151 = vperm.xlu0 %3150, %v2217
        %v3152 = vpop.permute.xlu0 %3151
        %3154 = vset.pattern.permute.xlu0 1
        %3155 = vperm.xlu0 %3154, %v2218
        %v3156 = vpop.permute.xlu0 %3155
        %3158 = vset.pattern.permute.xlu0 1
        %3159 = vperm.xlu0 %3158, %v2219
        %v3160 = vpop.permute.xlu0 %3159
        %3162 = vset.pattern.permute.xlu0 1
        %3163 = vperm.xlu0 %3162, %v2220
        %v3164 = vpop.permute.xlu0 %3163
        %3166 = vset.pattern.permute.xlu0 1
        %3167 = vperm.xlu0 %3166, %v2221
        %v3168 = vpop.permute.xlu0 %3167
        %3170 = vset.pattern.permute.xlu0 1
        %3171 = vperm.xlu0 %3170, %v2222
        %v3172 = vpop.permute.xlu0 %3171
        %3174 = vset.pattern.permute.xlu0 1
        %3175 = vperm.xlu0 %3174, %v2223
        %v3176 = vpop.permute.xlu0 %3175
        %3178 = vset.pattern.permute.xlu0 1
        %3179 = vperm.xlu0 %3178, %v2224
        %v3180 = vpop.permute.xlu0 %3179
        %3182 = vset.pattern.permute.xlu0 1
        %3183 = vperm.xlu0 %3182, %v2225
        %v3184 = vpop.permute.xlu0 %3183
        %v3218 = vunpack.c.l.b16 %v2898
        %v3219 = vunpack.c.h.b16 %v2898
        %v3220 = vunpack.c.l.b16 %v2899
        %v3221 = vunpack.c.h.b16 %v2899
        %v3222 = vunpack.c.l.b16 %v2900
        %v3223 = vunpack.c.h.b16 %v2900
        %v3224 = vunpack.c.l.b16 %v2901
        %v3225 = vunpack.c.h.b16 %v2901
        %v3226 = vunpack.c.l.b16 %v2902
        %v3227 = vunpack.c.h.b16 %v2902
        %v3228 = vunpack.c.l.b16 %v2903
        %v3229 = vunpack.c.h.b16 %v2903
        %v3230 = vunpack.c.l.b16 %v2904
        %v3231 = vunpack.c.h.b16 %v2904
        %v3232 = vunpack.c.l.b16 %v2905
        %v3233 = vunpack.c.h.b16 %v2905
        %v3234 = vunpack.c.l.b16 %v2906
        %v3235 = vunpack.c.h.b16 %v2906
        %v3236 = vunpack.c.l.b16 %v2907
        %v3237 = vunpack.c.h.b16 %v2907
        %v3238 = vunpack.c.l.b16 %v2908
        %v3239 = vunpack.c.h.b16 %v2908
        %v3240 = vunpack.c.l.b16 %v2909
        %v3241 = vunpack.c.h.b16 %v2909
        %v3242 = vunpack.c.l.b16 %v2910
        %v3243 = vunpack.c.h.b16 %v2910
        %v3244 = vunpack.c.l.b16 %v2911
        %v3245 = vunpack.c.h.b16 %v2911
        %v3246 = vunpack.c.l.b16 %v2912
        %v3247 = vunpack.c.h.b16 %v2912
        %v3248 = vunpack.c.l.b16 %v2913
        %v3249 = vunpack.c.h.b16 %v2913
        %v3250 = vunpack.c.l.b16 %v2914
        %v3251 = vunpack.c.h.b16 %v2914
        %v3252 = vunpack.c.l.b16 %v2915
        %v3253 = vunpack.c.h.b16 %v2915
        %v3254 = vunpack.c.l.b16 %v2916
        %v3255 = vunpack.c.h.b16 %v2916
        %v3256 = vunpack.c.l.b16 %v2917
        %v3257 = vunpack.c.h.b16 %v2917
        %v3258 = vunpack.c.l.b16 %v2918
        %v3259 = vunpack.c.h.b16 %v2918
        %v3260 = vunpack.c.l.b16 %v2919
        %v3261 = vunpack.c.h.b16 %v2919
        %v3262 = vunpack.c.l.b16 %v2920
        %v3263 = vunpack.c.h.b16 %v2920
        %v3264 = vunpack.c.l.b16 %v2921
        %v3265 = vunpack.c.h.b16 %v2921
        %v3266 = vunpack.c.l.b16 %v2922
        %v3267 = vunpack.c.h.b16 %v2922
        %v3268 = vunpack.c.l.b16 %v2923
        %v3269 = vunpack.c.h.b16 %v2923
        %v3270 = vunpack.c.l.b16 %v2924
        %v3271 = vunpack.c.h.b16 %v2924
        %v3272 = vunpack.c.l.b16 %v2925
        %v3273 = vunpack.c.h.b16 %v2925
        %v3274 = vunpack.c.l.b16 %v2926
        %v3275 = vunpack.c.h.b16 %v2926
        %v3276 = vunpack.c.l.b16 %v2927
        %v3277 = vunpack.c.h.b16 %v2927
        %v3278 = vunpack.c.l.b16 %v2928
        %v3279 = vunpack.c.h.b16 %v2928
        %v3280 = vunpack.c.l.b16 %v2929
        %v3281 = vunpack.c.h.b16 %v2929
        %v3282 = vpack.c.b16 %v3220, %v3218
        %v3283 = vpack.c.b16 %v3221, %v3219
        %v3284 = vpack.c.b16 %v3224, %v3222
        %v3285 = vpack.c.b16 %v3225, %v3223
        %v3286 = vpack.c.b16 %v3228, %v3226
        %v3287 = vpack.c.b16 %v3229, %v3227
        %v3288 = vpack.c.b16 %v3232, %v3230
        %v3289 = vpack.c.b16 %v3233, %v3231
        %v3290 = vpack.c.b16 %v3236, %v3234
        %v3291 = vpack.c.b16 %v3237, %v3235
        %v3292 = vpack.c.b16 %v3240, %v3238
        %v3293 = vpack.c.b16 %v3241, %v3239
        %v3294 = vpack.c.b16 %v3244, %v3242
        %v3295 = vpack.c.b16 %v3245, %v3243
        %v3296 = vpack.c.b16 %v3248, %v3246
        %v3297 = vpack.c.b16 %v3249, %v3247
        %v3298 = vpack.c.b16 %v3252, %v3250
        %v3299 = vpack.c.b16 %v3253, %v3251
        %v3300 = vpack.c.b16 %v3256, %v3254
        %v3301 = vpack.c.b16 %v3257, %v3255
        %v3302 = vpack.c.b16 %v3260, %v3258
        %v3303 = vpack.c.b16 %v3261, %v3259
        %v3304 = vpack.c.b16 %v3264, %v3262
        %v3305 = vpack.c.b16 %v3265, %v3263
        %v3306 = vpack.c.b16 %v3268, %v3266
        %v3307 = vpack.c.b16 %v3269, %v3267
        %v3308 = vpack.c.b16 %v3272, %v3270
        %v3309 = vpack.c.b16 %v3273, %v3271
        %v3310 = vpack.c.b16 %v3276, %v3274
        %v3311 = vpack.c.b16 %v3277, %v3275
        %v3312 = vpack.c.b16 %v3280, %v3278
        %v3313 = vpack.c.b16 %v3281, %v3279
        %3346 = vmatprep.subr.bf16.mxu0 %v2931
        %3347 = vmatpush1.bf16.msra.mxu0 %v2930
        %3348 = vmatprep.subr.bf16.mxu0 %v2939
        %3349 = vmatpush1.bf16.msra.mxu0 %v2938
        %3350 = vmatprep.subr.bf16.mxu0 %v2947
        %3351 = vmatpush1.bf16.msra.mxu0 %v2946
        %3352 = vmatprep.subr.bf16.mxu0 %v2955
        %3353 = vmatpush1.bf16.msra.mxu0 %v2954
        %3354 = vmatprep.subr.bf16.mxu0 %v2963
        %3355 = vmatpush1.bf16.msra.mxu0 %v2962
        %3356 = vmatprep.subr.bf16.mxu0 %v2971
        %3357 = vmatpush1.bf16.msra.mxu0 %v2970
        %3358 = vmatprep.subr.bf16.mxu0 %v2979
        %3359 = vmatpush1.bf16.msra.mxu0 %v2978
        %3360 = vmatprep.subr.bf16.mxu0 %v2987
        %3361 = vmatpush1.bf16.msra.mxu0 %v2986
        %3362 = vmatprep.subr.bf16.mxu0 %v2995
        %3363 = vmatpush1.bf16.msra.mxu0 %v2994
        %3364 = vmatprep.subr.bf16.mxu0 %v3003
        %3365 = vmatpush1.bf16.msra.mxu0 %v3002
        %3366 = vmatprep.subr.bf16.mxu0 %v3011
        %3367 = vmatpush1.bf16.msra.mxu0 %v3010
        %3368 = vmatprep.subr.bf16.mxu0 %v3019
        %3369 = vmatpush1.bf16.msra.mxu0 %v3018
        %3370 = vmatprep.subr.bf16.mxu0 %v3027
        %3371 = vmatpush1.bf16.msra.mxu0 %v3026
        %3372 = vmatprep.subr.bf16.mxu0 %v3035
        %3373 = vmatpush1.bf16.msra.mxu0 %v3034
        %3374 = vmatprep.subr.bf16.mxu0 %v3043
        %3375 = vmatpush1.bf16.msra.mxu0 %v3042
        %3376 = vmatprep.subr.bf16.mxu0 %v3051
        %3377 = vmatpush1.bf16.msra.mxu0 %v3050
        %3378 = vmatprep.mubr.bf16.mxu0 %v3283
        %3379 = vmatmul.mubr.bf16.gmra.mrb[0].mxu0 %v3282
        %v3380 = vpop.f32.mrb[0].mxu0
        %v3381 = vadd.f32 %v3060, %v3380
        %v3382 = vpop.f32.mrb[0].mxu0
        %v3383 = vadd.f32 %v3060, %v3382
        %v3384 = vpop.f32.mrb[0].mxu0
        %v3385 = vadd.f32 %v3064, %v3384
        %v3386 = vpop.f32.mrb[0].mxu0
        %v3387 = vadd.f32 %v3064, %v3386
        %3388 = vmatprep.mubr.bf16.mxu0 %v3285
        %3389 = vmatmul.mubr.bf16.gmra.mrb[0].mxu0 %v3284
        %v3390 = vpop.f32.mrb[0].mxu0
        %v3391 = vadd.f32 %v3068, %v3390
        %v3392 = vpop.f32.mrb[0].mxu0
        %v3393 = vadd.f32 %v3068, %v3392
        %v3394 = vpop.f32.mrb[0].mxu0
        %v3395 = vadd.f32 %v3072, %v3394
        %v3396 = vpop.f32.mrb[0].mxu0
        %v3397 = vadd.f32 %v3072, %v3396
        %3398 = vmatprep.mubr.bf16.mxu0 %v3287
        %3399 = vmatmul.mubr.bf16.gmra.mrb[0].mxu0 %v3286
        %v3400 = vpop.f32.mrb[0].mxu0
        %v3401 = vadd.f32 %v3076, %v3400
        %v3402 = vpop.f32.mrb[0].mxu0
        %v3403 = vadd.f32 %v3076, %v3402
        %v3404 = vpop.f32.mrb[0].mxu0
        %v3405 = vadd.f32 %v3080, %v3404
        %v3406 = vpop.f32.mrb[0].mxu0
        %v3407 = vadd.f32 %v3080, %v3406
        %3408 = vmatprep.mubr.bf16.mxu0 %v3289
        %3409 = vmatmul.mubr.bf16.gmra.mrb[0].mxu0 %v3288
        %v3410 = vpop.f32.mrb[0].mxu0
        %v3411 = vadd.f32 %v3084, %v3410
        %v3412 = vpop.f32.mrb[0].mxu0
        %v3413 = vadd.f32 %v3084, %v3412
        %v3414 = vpop.f32.mrb[0].mxu0
        %v3415 = vadd.f32 %v3088, %v3414
        %v3416 = vpop.f32.mrb[0].mxu0
        %v3417 = vadd.f32 %v3088, %v3416
        %3418 = vmatprep.mubr.bf16.mxu0 %v3291
        %3419 = vmatmul.mubr.bf16.gmra.mrb[0].mxu0 %v3290
        %v3420 = vpop.f32.mrb[0].mxu0
        %v3421 = vadd.f32 %v3092, %v3420
        %v3422 = vpop.f32.mrb[0].mxu0
        %v3423 = vadd.f32 %v3092, %v3422
        %v3424 = vpop.f32.mrb[0].mxu0
        %v3425 = vadd.f32 %v3096, %v3424
        %v3426 = vpop.f32.mrb[0].mxu0
        %v3427 = vadd.f32 %v3096, %v3426
        %3428 = vmatprep.mubr.bf16.mxu0 %v3293
        %3429 = vmatmul.mubr.bf16.gmra.mrb[0].mxu0 %v3292
        %v3430 = vpop.f32.mrb[0].mxu0
        %v3431 = vadd.f32 %v3100, %v3430
        %v3432 = vpop.f32.mrb[0].mxu0
        %v3433 = vadd.f32 %v3100, %v3432
        %v3434 = vpop.f32.mrb[0].mxu0
        %v3435 = vadd.f32 %v3104, %v3434
        %v3436 = vpop.f32.mrb[0].mxu0
        %v3437 = vadd.f32 %v3104, %v3436
        %3438 = vmatprep.mubr.bf16.mxu0 %v3295
        %3439 = vmatmul.mubr.bf16.gmra.mrb[0].mxu0 %v3294
        %v3440 = vpop.f32.mrb[0].mxu0
        %v3441 = vadd.f32 %v3108, %v3440
        %v3442 = vpop.f32.mrb[0].mxu0
        %v3443 = vadd.f32 %v3108, %v3442
        %v3444 = vpop.f32.mrb[0].mxu0
        %v3445 = vadd.f32 %v3112, %v3444
        %v3446 = vpop.f32.mrb[0].mxu0
        %v3447 = vadd.f32 %v3112, %v3446
        %3448 = vmatprep.mubr.bf16.mxu0 %v3297
        %3449 = vmatmul.mubr.bf16.gmra.mrb[0].mxu0 %v3296
        %v3450 = vpop.f32.mrb[0].mxu0
        %v3451 = vadd.f32 %v3116, %v3450
        %v3452 = vpop.f32.mrb[0].mxu0
        %v3453 = vadd.f32 %v3116, %v3452
        %v3454 = vpop.f32.mrb[0].mxu0
        %v3455 = vadd.f32 %v3120, %v3454
        %v3456 = vpop.f32.mrb[0].mxu0
        %v3457 = vadd.f32 %v3120, %v3456
        %3458 = vmatprep.mubr.bf16.mxu0 %v3299
        %3459 = vmatmul.mubr.bf16.gmra.mrb[0].mxu0 %v3298
        %v3460 = vpop.f32.mrb[0].mxu0
        %v3461 = vadd.f32 %v3124, %v3460
        %v3462 = vpop.f32.mrb[0].mxu0
        %v3463 = vadd.f32 %v3124, %v3462
        %v3464 = vpop.f32.mrb[0].mxu0
        %v3465 = vadd.f32 %v3128, %v3464
        %v3466 = vpop.f32.mrb[0].mxu0
        %v3467 = vadd.f32 %v3128, %v3466
        %3468 = vmatprep.mubr.bf16.mxu0 %v3301
        %3469 = vmatmul.mubr.bf16.gmra.mrb[0].mxu0 %v3300
        %v3470 = vpop.f32.mrb[0].mxu0
        %v3471 = vadd.f32 %v3132, %v3470
        %v3472 = vpop.f32.mrb[0].mxu0
        %v3473 = vadd.f32 %v3132, %v3472
        %v3474 = vpop.f32.mrb[0].mxu0
        %v3475 = vadd.f32 %v3136, %v3474
        %v3476 = vpop.f32.mrb[0].mxu0
        %v3477 = vadd.f32 %v3136, %v3476
        %3478 = vmatprep.mubr.bf16.mxu0 %v3303
        %3479 = vmatmul.mubr.bf16.gmra.mrb[0].mxu0 %v3302
        %v3480 = vpop.f32.mrb[0].mxu0
        %v3481 = vadd.f32 %v3140, %v3480
        %v3482 = vpop.f32.mrb[0].mxu0
        %v3483 = vadd.f32 %v3140, %v3482
        %v3484 = vpop.f32.mrb[0].mxu0
        %v3485 = vadd.f32 %v3144, %v3484
        %v3486 = vpop.f32.mrb[0].mxu0
        %v3487 = vadd.f32 %v3144, %v3486
        %3488 = vmatprep.mubr.bf16.mxu0 %v3305
        %3489 = vmatmul.mubr.bf16.gmra.mrb[0].mxu0 %v3304
        %v3490 = vpop.f32.mrb[0].mxu0
        %v3491 = vadd.f32 %v3148, %v3490
        %v3492 = vpop.f32.mrb[0].mxu0
        %v3493 = vadd.f32 %v3148, %v3492
        %v3494 = vpop.f32.mrb[0].mxu0
        %v3495 = vadd.f32 %v3152, %v3494
        %v3496 = vpop.f32.mrb[0].mxu0
        %v3497 = vadd.f32 %v3152, %v3496
        %3498 = vmatprep.mubr.bf16.mxu0 %v3307
        %3499 = vmatmul.mubr.bf16.gmra.mrb[0].mxu0 %v3306
        %v3500 = vpop.f32.mrb[0].mxu0
        %v3501 = vadd.f32 %v3156, %v3500
        %v3502 = vpop.f32.mrb[0].mxu0
        %v3503 = vadd.f32 %v3156, %v3502
        %v3504 = vpop.f32.mrb[0].mxu0
        %v3505 = vadd.f32 %v3160, %v3504
        %v3506 = vpop.f32.mrb[0].mxu0
        %v3507 = vadd.f32 %v3160, %v3506
        %3508 = vmatprep.mubr.bf16.mxu0 %v3309
        %3509 = vmatmul.mubr.bf16.gmra.mrb[0].mxu0 %v3308
        %v3510 = vpop.f32.mrb[0].mxu0
        %v3511 = vadd.f32 %v3164, %v3510
        %v3512 = vpop.f32.mrb[0].mxu0
        %v3513 = vadd.f32 %v3164, %v3512
        %v3514 = vpop.f32.mrb[0].mxu0
        %v3515 = vadd.f32 %v3168, %v3514
        %v3516 = vpop.f32.mrb[0].mxu0
        %v3517 = vadd.f32 %v3168, %v3516
        %3518 = vmatprep.mubr.bf16.mxu0 %v3311
        %3519 = vmatmul.mubr.bf16.gmra.mrb[0].mxu0 %v3310
        %v3520 = vpop.f32.mrb[0].mxu0
        %v3521 = vadd.f32 %v3172, %v3520
        %v3522 = vpop.f32.mrb[0].mxu0
        %v3523 = vadd.f32 %v3172, %v3522
        %v3524 = vpop.f32.mrb[0].mxu0
        %v3525 = vadd.f32 %v3176, %v3524
        %v3526 = vpop.f32.mrb[0].mxu0
        %v3527 = vadd.f32 %v3176, %v3526
        %3528 = vmatprep.mubr.bf16.mxu0 %v3313
        %3529 = vmatmul.mubr.bf16.gmra.mrb[0].mxu0 %v3312
        %v3530 = vpop.f32.mrb[0].mxu0
        %v3531 = vadd.f32 %v3180, %v3530
        %v3532 = vpop.f32.mrb[0].mxu0
        %v3533 = vadd.f32 %v3180, %v3532
        %v3534 = vpop.f32.mrb[0].mxu0
        %v3535 = vadd.f32 %v3184, %v3534
        %v3536 = vpop.f32.mrb[0].mxu0
        %v3537 = vadd.f32 %v3184, %v3536
        %3538 = vdwg.mxu0
        %3539 = vmatprep.subr.bf16.mxu0 %v2933
        %3540 = vmatpush1.bf16.msra.mxu0 %v2932
        %3541 = vmatprep.subr.bf16.mxu0 %v2941
        %3542 = vmatpush1.bf16.msra.mxu0 %v2940
        %3543 = vmatprep.subr.bf16.mxu0 %v2949
        %3544 = vmatpush1.bf16.msra.mxu0 %v2948
        %3545 = vmatprep.subr.bf16.mxu0 %v2957
        %3546 = vmatpush1.bf16.msra.mxu0 %v2956
        %3547 = vmatprep.subr.bf16.mxu0 %v2965
        %3548 = vmatpush1.bf16.msra.mxu0 %v2964
        %3549 = vmatprep.subr.bf16.mxu0 %v2973
        %3550 = vmatpush1.bf16.msra.mxu0 %v2972
        %3551 = vmatprep.subr.bf16.mxu0 %v2981
        %3552 = vmatpush1.bf16.msra.mxu0 %v2980
        %3553 = vmatprep.subr.bf16.mxu0 %v2989
        %3554 = vmatpush1.bf16.msra.mxu0 %v2988
        %3555 = vmatprep.subr.bf16.mxu0 %v2997
        %3556 = vmatpush1.bf16.msra.mxu0 %v2996
        %3557 = vmatprep.subr.bf16.mxu0 %v3005
        %3558 = vmatpush1.bf16.msra.mxu0 %v3004
        %3559 = vmatprep.subr.bf16.mxu0 %v3013
        %3560 = vmatpush1.bf16.msra.mxu0 %v3012
        %3561 = vmatprep.subr.bf16.mxu0 %v3021
        %3562 = vmatpush1.bf16.msra.mxu0 %v3020
        %3563 = vmatprep.subr.bf16.mxu0 %v3029
        %3564 = vmatpush1.bf16.msra.mxu0 %v3028
        %3565 = vmatprep.subr.bf16.mxu0 %v3037
        %3566 = vmatpush1.bf16.msra.mxu0 %v3036
        %3567 = vmatprep.subr.bf16.mxu0 %v3045
        %3568 = vmatpush1.bf16.msra.mxu0 %v3044
        %3569 = vmatprep.subr.bf16.mxu0 %v3053
        %3570 = vmatpush1.bf16.msra.mxu0 %v3052
        %3571 = vmatprep.mubr.bf16.mxu0 %v3283
        %3572 = vmatmul.mubr.bf16.gmra.mrb[0].mxu0 %v3282
        %v3573 = vpop.f32.mrb[0].mxu0
        %v3574 = vadd.f32 %v3060, %v3573
        %v3575 = vpop.f32.mrb[0].mxu0
        %v3576 = vadd.f32 %v3060, %v3575
        %v3577 = vpop.f32.mrb[0].mxu0
        %v3578 = vadd.f32 %v3064, %v3577
        %v3579 = vpop.f32.mrb[0].mxu0
        %v3580 = vadd.f32 %v3064, %v3579
        %3581 = vmatprep.mubr.bf16.mxu0 %v3285
        %3582 = vmatmul.mubr.bf16.gmra.mrb[0].mxu0 %v3284
        %v3583 = vpop.f32.mrb[0].mxu0
        %v3584 = vadd.f32 %v3068, %v3583
        %v3585 = vpop.f32.mrb[0].mxu0
        %v3586 = vadd.f32 %v3068, %v3585
        %v3587 = vpop.f32.mrb[0].mxu0
        %v3588 = vadd.f32 %v3072, %v3587
        %v3589 = vpop.f32.mrb[0].mxu0
        %v3590 = vadd.f32 %v3072, %v3589
        %3591 = vmatprep.mubr.bf16.mxu0 %v3287
        %3592 = vmatmul.mubr.bf16.gmra.mrb[0].mxu0 %v3286
        %v3593 = vpop.f32.mrb[0].mxu0
        %v3594 = vadd.f32 %v3076, %v3593
        %v3595 = vpop.f32.mrb[0].mxu0
        %v3596 = vadd.f32 %v3076, %v3595
        %v3597 = vpop.f32.mrb[0].mxu0
        %v3598 = vadd.f32 %v3080, %v3597
        %v3599 = vpop.f32.mrb[0].mxu0
        %v3600 = vadd.f32 %v3080, %v3599
        %3601 = vmatprep.mubr.bf16.mxu0 %v3289
        %3602 = vmatmul.mubr.bf16.gmra.mrb[0].mxu0 %v3288
        %v3603 = vpop.f32.mrb[0].mxu0
        %v3604 = vadd.f32 %v3084, %v3603
        %v3605 = vpop.f32.mrb[0].mxu0
        %v3606 = vadd.f32 %v3084, %v3605
        %v3607 = vpop.f32.mrb[0].mxu0
        %v3608 = vadd.f32 %v3088, %v3607
        %v3609 = vpop.f32.mrb[0].mxu0
        %v3610 = vadd.f32 %v3088, %v3609
        %3611 = vmatprep.mubr.bf16.mxu0 %v3291
        %3612 = vmatmul.mubr.bf16.gmra.mrb[0].mxu0 %v3290
        %v3613 = vpop.f32.mrb[0].mxu0
        %v3614 = vadd.f32 %v3092, %v3613
        %v3615 = vpop.f32.mrb[0].mxu0
        %v3616 = vadd.f32 %v3092, %v3615
        %v3617 = vpop.f32.mrb[0].mxu0
        %v3618 = vadd.f32 %v3096, %v3617
        %v3619 = vpop.f32.mrb[0].mxu0
        %v3620 = vadd.f32 %v3096, %v3619
        %3621 = vmatprep.mubr.bf16.mxu0 %v3293
        %3622 = vmatmul.mubr.bf16.gmra.mrb[0].mxu0 %v3292
        %v3623 = vpop.f32.mrb[0].mxu0
        %v3624 = vadd.f32 %v3100, %v3623
        %v3625 = vpop.f32.mrb[0].mxu0
        %v3626 = vadd.f32 %v3100, %v3625
        %v3627 = vpop.f32.mrb[0].mxu0
        %v3628 = vadd.f32 %v3104, %v3627
        %v3629 = vpop.f32.mrb[0].mxu0
        %v3630 = vadd.f32 %v3104, %v3629
        %3631 = vmatprep.mubr.bf16.mxu0 %v3295
        %3632 = vmatmul.mubr.bf16.gmra.mrb[0].mxu0 %v3294
        %v3633 = vpop.f32.mrb[0].mxu0
        %v3634 = vadd.f32 %v3108, %v3633
        %v3635 = vpop.f32.mrb[0].mxu0
        %v3636 = vadd.f32 %v3108, %v3635
        %v3637 = vpop.f32.mrb[0].mxu0
        %v3638 = vadd.f32 %v3112, %v3637
        %v3639 = vpop.f32.mrb[0].mxu0
        %v3640 = vadd.f32 %v3112, %v3639
        %3641 = vmatprep.mubr.bf16.mxu0 %v3297
        %3642 = vmatmul.mubr.bf16.gmra.mrb[0].mxu0 %v3296
        %v3643 = vpop.f32.mrb[0].mxu0
        %v3644 = vadd.f32 %v3116, %v3643
        %v3645 = vpop.f32.mrb[0].mxu0
        %v3646 = vadd.f32 %v3116, %v3645
        %v3647 = vpop.f32.mrb[0].mxu0
        %v3648 = vadd.f32 %v3120, %v3647
        %v3649 = vpop.f32.mrb[0].mxu0
        %v3650 = vadd.f32 %v3120, %v3649
        %3651 = vmatprep.mubr.bf16.mxu0 %v3299
        %3652 = vmatmul.mubr.bf16.gmra.mrb[0].mxu0 %v3298
        %v3653 = vpop.f32.mrb[0].mxu0
        %v3654 = vadd.f32 %v3124, %v3653
        %v3655 = vpop.f32.mrb[0].mxu0
        %v3656 = vadd.f32 %v3124, %v3655
        %v3657 = vpop.f32.mrb[0].mxu0
        %v3658 = vadd.f32 %v3128, %v3657
        %v3659 = vpop.f32.mrb[0].mxu0
        %v3660 = vadd.f32 %v3128, %v3659
        %3661 = vmatprep.mubr.bf16.mxu0 %v3301
        %3662 = vmatmul.mubr.bf16.gmra.mrb[0].mxu0 %v3300
        %v3663 = vpop.f32.mrb[0].mxu0
        %v3664 = vadd.f32 %v3132, %v3663
        %v3665 = vpop.f32.mrb[0].mxu0
        %v3666 = vadd.f32 %v3132, %v3665
        %v3667 = vpop.f32.mrb[0].mxu0
        %v3668 = vadd.f32 %v3136, %v3667
        %v3669 = vpop.f32.mrb[0].mxu0
        %v3670 = vadd.f32 %v3136, %v3669
        %3671 = vmatprep.mubr.bf16.mxu0 %v3303
        %3672 = vmatmul.mubr.bf16.gmra.mrb[0].mxu0 %v3302
        %v3673 = vpop.f32.mrb[0].mxu0
        %v3674 = vadd.f32 %v3140, %v3673
        %v3675 = vpop.f32.mrb[0].mxu0
        %v3676 = vadd.f32 %v3140, %v3675
        %v3677 = vpop.f32.mrb[0].mxu0
        %v3678 = vadd.f32 %v3144, %v3677
        %v3679 = vpop.f32.mrb[0].mxu0
        %v3680 = vadd.f32 %v3144, %v3679
        %3681 = vmatprep.mubr.bf16.mxu0 %v3305
        %3682 = vmatmul.mubr.bf16.gmra.mrb[0].mxu0 %v3304
        %v3683 = vpop.f32.mrb[0].mxu0
        %v3684 = vadd.f32 %v3148, %v3683
        %v3685 = vpop.f32.mrb[0].mxu0
        %v3686 = vadd.f32 %v3148, %v3685
        %v3687 = vpop.f32.mrb[0].mxu0
        %v3688 = vadd.f32 %v3152, %v3687
        %v3689 = vpop.f32.mrb[0].mxu0
        %v3690 = vadd.f32 %v3152, %v3689
        %3691 = vmatprep.mubr.bf16.mxu0 %v3307
        %3692 = vmatmul.mubr.bf16.gmra.mrb[0].mxu0 %v3306
        %v3693 = vpop.f32.mrb[0].mxu0
        %v3694 = vadd.f32 %v3156, %v3693
        %v3695 = vpop.f32.mrb[0].mxu0
        %v3696 = vadd.f32 %v3156, %v3695
        %v3697 = vpop.f32.mrb[0].mxu0
        %v3698 = vadd.f32 %v3160, %v3697
        %v3699 = vpop.f32.mrb[0].mxu0
        %v3700 = vadd.f32 %v3160, %v3699
        %3701 = vmatprep.mubr.bf16.mxu0 %v3309
        %3702 = vmatmul.mubr.bf16.gmra.mrb[0].mxu0 %v3308
        %v3703 = vpop.f32.mrb[0].mxu0
        %v3704 = vadd.f32 %v3164, %v3703
        %v3705 = vpop.f32.mrb[0].mxu0
        %v3706 = vadd.f32 %v3164, %v3705
        %v3707 = vpop.f32.mrb[0].mxu0
        %v3708 = vadd.f32 %v3168, %v3707
        %v3709 = vpop.f32.mrb[0].mxu0
        %v3710 = vadd.f32 %v3168, %v3709
        %3711 = vmatprep.mubr.bf16.mxu0 %v3311
        %3712 = vmatmul.mubr.bf16.gmra.mrb[0].mxu0 %v3310
        %v3713 = vpop.f32.mrb[0].mxu0
        %v3714 = vadd.f32 %v3172, %v3713
        %v3715 = vpop.f32.mrb[0].mxu0
        %v3716 = vadd.f32 %v3172, %v3715
        %v3717 = vpop.f32.mrb[0].mxu0
        %v3718 = vadd.f32 %v3176, %v3717
        %v3719 = vpop.f32.mrb[0].mxu0
        %v3720 = vadd.f32 %v3176, %v3719
        %3721 = vmatprep.mubr.bf16.mxu0 %v3313
        %3722 = vmatmul.mubr.bf16.gmra.mrb[0].mxu0 %v3312
        %v3723 = vpop.f32.mrb[0].mxu0
        %v3724 = vadd.f32 %v3180, %v3723
        %v3725 = vpop.f32.mrb[0].mxu0
        %v3726 = vadd.f32 %v3180, %v3725
        %v3727 = vpop.f32.mrb[0].mxu0
        %v3728 = vadd.f32 %v3184, %v3727
        %v3729 = vpop.f32.mrb[0].mxu0
        %v3730 = vadd.f32 %v3184, %v3729
        %3731 = vdwg.mxu0
        %3732 = vmatprep.subr.bf16.mxu0 %v2935
        %3733 = vmatpush1.bf16.msra.mxu0 %v2934
        %3734 = vmatprep.subr.bf16.mxu0 %v2943
        %3735 = vmatpush1.bf16.msra.mxu0 %v2942
        %3736 = vmatprep.subr.bf16.mxu0 %v2951
        %3737 = vmatpush1.bf16.msra.mxu0 %v2950
        %3738 = vmatprep.subr.bf16.mxu0 %v2959
        %3739 = vmatpush1.bf16.msra.mxu0 %v2958
        %3740 = vmatprep.subr.bf16.mxu0 %v2967
        %3741 = vmatpush1.bf16.msra.mxu0 %v2966
        %3742 = vmatprep.subr.bf16.mxu0 %v2975
        %3743 = vmatpush1.bf16.msra.mxu0 %v2974
        %3744 = vmatprep.subr.bf16.mxu0 %v2983
        %3745 = vmatpush1.bf16.msra.mxu0 %v2982
        %3746 = vmatprep.subr.bf16.mxu0 %v2991
        %3747 = vmatpush1.bf16.msra.mxu0 %v2990
        %3748 = vmatprep.subr.bf16.mxu0 %v2999
        %3749 = vmatpush1.bf16.msra.mxu0 %v2998
        %3750 = vmatprep.subr.bf16.mxu0 %v3007
        %3751 = vmatpush1.bf16.msra.mxu0 %v3006
        %3752 = vmatprep.subr.bf16.mxu0 %v3015
        %3753 = vmatpush1.bf16.msra.mxu0 %v3014
        %3754 = vmatprep.subr.bf16.mxu0 %v3023
        %3755 = vmatpush1.bf16.msra.mxu0 %v3022
        %3756 = vmatprep.subr.bf16.mxu0 %v3031
        %3757 = vmatpush1.bf16.msra.mxu0 %v3030
        %3758 = vmatprep.subr.bf16.mxu0 %v3039
        %3759 = vmatpush1.bf16.msra.mxu0 %v3038
        %3760 = vmatprep.subr.bf16.mxu0 %v3047
        %3761 = vmatpush1.bf16.msra.mxu0 %v3046
        %3762 = vmatprep.subr.bf16.mxu0 %v3055
        %3763 = vmatpush1.bf16.msra.mxu0 %v3054
        %3764 = vmatprep.mubr.bf16.mxu0 %v3283
        %3765 = vmatmul.mubr.bf16.gmra.mrb[0].mxu0 %v3282
        %v3766 = vpop.f32.mrb[0].mxu0
        %v3767 = vadd.f32 %v3060, %v3766
        %v3768 = vpop.f32.mrb[0].mxu0
        %v3769 = vadd.f32 %v3060, %v3768
        %v3770 = vpop.f32.mrb[0].mxu0
        %v3771 = vadd.f32 %v3064, %v3770
        %v3772 = vpop.f32.mrb[0].mxu0
        %v3773 = vadd.f32 %v3064, %v3772
        %3774 = vmatprep.mubr.bf16.mxu0 %v3285
        %3775 = vmatmul.mubr.bf16.gmra.mrb[0].mxu0 %v3284
        %v3776 = vpop.f32.mrb[0].mxu0
        %v3777 = vadd.f32 %v3068, %v3776
        %v3778 = vpop.f32.mrb[0].mxu0
        %v3779 = vadd.f32 %v3068, %v3778
        %v3780 = vpop.f32.mrb[0].mxu0
        %v3781 = vadd.f32 %v3072, %v3780
        %v3782 = vpop.f32.mrb[0].mxu0
        %v3783 = vadd.f32 %v3072, %v3782
        %3784 = vmatprep.mubr.bf16.mxu0 %v3287
        %3785 = vmatmul.mubr.bf16.gmra.mrb[0].mxu0 %v3286
        %v3786 = vpop.f32.mrb[0].mxu0
        %v3787 = vadd.f32 %v3076, %v3786
        %v3788 = vpop.f32.mrb[0].mxu0
        %v3789 = vadd.f32 %v3076, %v3788
        %v3790 = vpop.f32.mrb[0].mxu0
        %v3791 = vadd.f32 %v3080, %v3790
        %v3792 = vpop.f32.mrb[0].mxu0
        %v3793 = vadd.f32 %v3080, %v3792
        %3794 = vmatprep.mubr.bf16.mxu0 %v3289
        %3795 = vmatmul.mubr.bf16.gmra.mrb[0].mxu0 %v3288
        %v3796 = vpop.f32.mrb[0].mxu0
        %v3797 = vadd.f32 %v3084, %v3796
        %v3798 = vpop.f32.mrb[0].mxu0
        %v3799 = vadd.f32 %v3084, %v3798
        %v3800 = vpop.f32.mrb[0].mxu0
        %v3801 = vadd.f32 %v3088, %v3800
        %v3802 = vpop.f32.mrb[0].mxu0
        %v3803 = vadd.f32 %v3088, %v3802
        %3804 = vmatprep.mubr.bf16.mxu0 %v3291
        %3805 = vmatmul.mubr.bf16.gmra.mrb[0].mxu0 %v3290
        %v3806 = vpop.f32.mrb[0].mxu0
        %v3807 = vadd.f32 %v3092, %v3806
        %v3808 = vpop.f32.mrb[0].mxu0
        %v3809 = vadd.f32 %v3092, %v3808
        %v3810 = vpop.f32.mrb[0].mxu0
        %v3811 = vadd.f32 %v3096, %v3810
        %v3812 = vpop.f32.mrb[0].mxu0
        %v3813 = vadd.f32 %v3096, %v3812
        %3814 = vmatprep.mubr.bf16.mxu0 %v3293
        %3815 = vmatmul.mubr.bf16.gmra.mrb[0].mxu0 %v3292
        %v3816 = vpop.f32.mrb[0].mxu0
        %v3817 = vadd.f32 %v3100, %v3816
        %v3818 = vpop.f32.mrb[0].mxu0
        %v3819 = vadd.f32 %v3100, %v3818
        %v3820 = vpop.f32.mrb[0].mxu0
        %v3821 = vadd.f32 %v3104, %v3820
        %v3822 = vpop.f32.mrb[0].mxu0
        %v3823 = vadd.f32 %v3104, %v3822
        %3824 = vmatprep.mubr.bf16.mxu0 %v3295
        %3825 = vmatmul.mubr.bf16.gmra.mrb[0].mxu0 %v3294
        %v3826 = vpop.f32.mrb[0].mxu0
        %v3827 = vadd.f32 %v3108, %v3826
        %v3828 = vpop.f32.mrb[0].mxu0
        %v3829 = vadd.f32 %v3108, %v3828
        %v3830 = vpop.f32.mrb[0].mxu0
        %v3831 = vadd.f32 %v3112, %v3830
        %v3832 = vpop.f32.mrb[0].mxu0
        %v3833 = vadd.f32 %v3112, %v3832
        %3834 = vmatprep.mubr.bf16.mxu0 %v3297
        %3835 = vmatmul.mubr.bf16.gmra.mrb[0].mxu0 %v3296
        %v3836 = vpop.f32.mrb[0].mxu0
        %v3837 = vadd.f32 %v3116, %v3836
        %v3838 = vpop.f32.mrb[0].mxu0
        %v3839 = vadd.f32 %v3116, %v3838
        %v3840 = vpop.f32.mrb[0].mxu0
        %v3841 = vadd.f32 %v3120, %v3840
        %v3842 = vpop.f32.mrb[0].mxu0
        %v3843 = vadd.f32 %v3120, %v3842
        %3844 = vmatprep.mubr.bf16.mxu0 %v3299
        %3845 = vmatmul.mubr.bf16.gmra.mrb[0].mxu0 %v3298
        %v3846 = vpop.f32.mrb[0].mxu0
        %v3847 = vadd.f32 %v3124, %v3846
        %v3848 = vpop.f32.mrb[0].mxu0
        %v3849 = vadd.f32 %v3124, %v3848
        %v3850 = vpop.f32.mrb[0].mxu0
        %v3851 = vadd.f32 %v3128, %v3850
        %v3852 = vpop.f32.mrb[0].mxu0
        %v3853 = vadd.f32 %v3128, %v3852
        %3854 = vmatprep.mubr.bf16.mxu0 %v3301
        %3855 = vmatmul.mubr.bf16.gmra.mrb[0].mxu0 %v3300
        %v3856 = vpop.f32.mrb[0].mxu0
        %v3857 = vadd.f32 %v3132, %v3856
        %v3858 = vpop.f32.mrb[0].mxu0
        %v3859 = vadd.f32 %v3132, %v3858
        %v3860 = vpop.f32.mrb[0].mxu0
        %v3861 = vadd.f32 %v3136, %v3860
        %v3862 = vpop.f32.mrb[0].mxu0
        %v3863 = vadd.f32 %v3136, %v3862
        %3864 = vmatprep.mubr.bf16.mxu0 %v3303
        %3865 = vmatmul.mubr.bf16.gmra.mrb[0].mxu0 %v3302
        %v3866 = vpop.f32.mrb[0].mxu0
        %v3867 = vadd.f32 %v3140, %v3866
        %v3868 = vpop.f32.mrb[0].mxu0
        %v3869 = vadd.f32 %v3140, %v3868
        %v3870 = vpop.f32.mrb[0].mxu0
        %v3871 = vadd.f32 %v3144, %v3870
        %v3872 = vpop.f32.mrb[0].mxu0
        %v3873 = vadd.f32 %v3144, %v3872
        %3874 = vmatprep.mubr.bf16.mxu0 %v3305
        %3875 = vmatmul.mubr.bf16.gmra.mrb[0].mxu0 %v3304
        %v3876 = vpop.f32.mrb[0].mxu0
        %v3877 = vadd.f32 %v3148, %v3876
        %v3878 = vpop.f32.mrb[0].mxu0
        %v3879 = vadd.f32 %v3148, %v3878
        %v3880 = vpop.f32.mrb[0].mxu0
        %v3881 = vadd.f32 %v3152, %v3880
        %v3882 = vpop.f32.mrb[0].mxu0
        %v3883 = vadd.f32 %v3152, %v3882
        %3884 = vmatprep.mubr.bf16.mxu0 %v3307
        %3885 = vmatmul.mubr.bf16.gmra.mrb[0].mxu0 %v3306
        %v3886 = vpop.f32.mrb[0].mxu0
        %v3887 = vadd.f32 %v3156, %v3886
        %v3888 = vpop.f32.mrb[0].mxu0
        %v3889 = vadd.f32 %v3156, %v3888
        %v3890 = vpop.f32.mrb[0].mxu0
        %v3891 = vadd.f32 %v3160, %v3890
        %v3892 = vpop.f32.mrb[0].mxu0
        %v3893 = vadd.f32 %v3160, %v3892
        %3894 = vmatprep.mubr.bf16.mxu0 %v3309
        %3895 = vmatmul.mubr.bf16.gmra.mrb[0].mxu0 %v3308
        %v3896 = vpop.f32.mrb[0].mxu0
        %v3897 = vadd.f32 %v3164, %v3896
        %v3898 = vpop.f32.mrb[0].mxu0
        %v3899 = vadd.f32 %v3164, %v3898
        %v3900 = vpop.f32.mrb[0].mxu0
        %v3901 = vadd.f32 %v3168, %v3900
        %v3902 = vpop.f32.mrb[0].mxu0
        %v3903 = vadd.f32 %v3168, %v3902
        %3904 = vmatprep.mubr.bf16.mxu0 %v3311
        %3905 = vmatmul.mubr.bf16.gmra.mrb[0].mxu0 %v3310
        %v3906 = vpop.f32.mrb[0].mxu0
        %v3907 = vadd.f32 %v3172, %v3906
        %v3908 = vpop.f32.mrb[0].mxu0
        %v3909 = vadd.f32 %v3172, %v3908
        %v3910 = vpop.f32.mrb[0].mxu0
        %v3911 = vadd.f32 %v3176, %v3910
        %v3912 = vpop.f32.mrb[0].mxu0
        %v3913 = vadd.f32 %v3176, %v3912
        %3914 = vmatprep.mubr.bf16.mxu0 %v3313
        %3915 = vmatmul.mubr.bf16.gmra.mrb[0].mxu0 %v3312
        %v3916 = vpop.f32.mrb[0].mxu0
        %v3917 = vadd.f32 %v3180, %v3916
        %v3918 = vpop.f32.mrb[0].mxu0
        %v3919 = vadd.f32 %v3180, %v3918
        %v3920 = vpop.f32.mrb[0].mxu0
        %v3921 = vadd.f32 %v3184, %v3920
        %v3922 = vpop.f32.mrb[0].mxu0
        %v3923 = vadd.f32 %v3184, %v3922
        %3924 = vdwg.mxu0
        %3925 = vmatprep.subr.bf16.mxu0 %v2937
        %3926 = vmatpush1.bf16.msra.mxu0 %v2936
        %3927 = vmatprep.subr.bf16.mxu0 %v2945
        %3928 = vmatpush1.bf16.msra.mxu0 %v2944
        %3929 = vmatprep.subr.bf16.mxu0 %v2953
        %3930 = vmatpush1.bf16.msra.mxu0 %v2952
        %3931 = vmatprep.subr.bf16.mxu0 %v2961
        %3932 = vmatpush1.bf16.msra.mxu0 %v2960
        %3933 = vmatprep.subr.bf16.mxu0 %v2969
        %3934 = vmatpush1.bf16.msra.mxu0 %v2968
        %3935 = vmatprep.subr.bf16.mxu0 %v2977
        %3936 = vmatpush1.bf16.msra.mxu0 %v2976
        %3937 = vmatprep.subr.bf16.mxu0 %v2985
        %3938 = vmatpush1.bf16.msra.mxu0 %v2984
        %3939 = vmatprep.subr.bf16.mxu0 %v2993
        %3940 = vmatpush1.bf16.msra.mxu0 %v2992
        %3941 = vmatprep.subr.bf16.mxu0 %v3001
        %3942 = vmatpush1.bf16.msra.mxu0 %v3000
        %3943 = vmatprep.subr.bf16.mxu0 %v3009
        %3944 = vmatpush1.bf16.msra.mxu0 %v3008
        %3945 = vmatprep.subr.bf16.mxu0 %v3017
        %3946 = vmatpush1.bf16.msra.mxu0 %v3016
        %3947 = vmatprep.subr.bf16.mxu0 %v3025
        %3948 = vmatpush1.bf16.msra.mxu0 %v3024
        %3949 = vmatprep.subr.bf16.mxu0 %v3033
        %3950 = vmatpush1.bf16.msra.mxu0 %v3032
        %3951 = vmatprep.subr.bf16.mxu0 %v3041
        %3952 = vmatpush1.bf16.msra.mxu0 %v3040
        %3953 = vmatprep.subr.bf16.mxu0 %v3049
        %3954 = vmatpush1.bf16.msra.mxu0 %v3048
        %3955 = vmatprep.subr.bf16.mxu0 %v3057
        %3956 = vmatpush1.bf16.msra.mxu0 %v3056
        %3957 = vmatprep.mubr.bf16.mxu0 %v3283
        %3958 = vmatmul.mubr.bf16.gmra.mrb[0].mxu0 %v3282
        %v3959 = vpop.f32.mrb[0].mxu0
        %v3960 = vadd.f32 %v3060, %v3959
        %v3961 = vpop.f32.mrb[0].mxu0
        %v3962 = vadd.f32 %v3060, %v3961
        %v3963 = vpop.f32.mrb[0].mxu0
        %v3964 = vadd.f32 %v3064, %v3963
        %v3965 = vpop.f32.mrb[0].mxu0
        %v3966 = vadd.f32 %v3064, %v3965
        %3967 = vmatprep.mubr.bf16.mxu0 %v3285
        %3968 = vmatmul.mubr.bf16.gmra.mrb[0].mxu0 %v3284
        %v3969 = vpop.f32.mrb[0].mxu0
        %v3970 = vadd.f32 %v3068, %v3969
        %v3971 = vpop.f32.mrb[0].mxu0
        %v3972 = vadd.f32 %v3068, %v3971
        %v3973 = vpop.f32.mrb[0].mxu0
        %v3974 = vadd.f32 %v3072, %v3973
        %v3975 = vpop.f32.mrb[0].mxu0
        %v3976 = vadd.f32 %v3072, %v3975
        %3977 = vmatprep.mubr.bf16.mxu0 %v3287
        %3978 = vmatmul.mubr.bf16.gmra.mrb[0].mxu0 %v3286
        %v3979 = vpop.f32.mrb[0].mxu0
        %v3980 = vadd.f32 %v3076, %v3979
        %v3981 = vpop.f32.mrb[0].mxu0
        %v3982 = vadd.f32 %v3076, %v3981
        %v3983 = vpop.f32.mrb[0].mxu0
        %v3984 = vadd.f32 %v3080, %v3983
        %v3985 = vpop.f32.mrb[0].mxu0
        %v3986 = vadd.f32 %v3080, %v3985
        %3987 = vmatprep.mubr.bf16.mxu0 %v3289
        %3988 = vmatmul.mubr.bf16.gmra.mrb[0].mxu0 %v3288
        %v3989 = vpop.f32.mrb[0].mxu0
        %v3990 = vadd.f32 %v3084, %v3989
        %v3991 = vpop.f32.mrb[0].mxu0
        %v3992 = vadd.f32 %v3084, %v3991
        %v3993 = vpop.f32.mrb[0].mxu0
        %v3994 = vadd.f32 %v3088, %v3993
        %v3995 = vpop.f32.mrb[0].mxu0
        %v3996 = vadd.f32 %v3088, %v3995
        %3997 = vmatprep.mubr.bf16.mxu0 %v3291
        %3998 = vmatmul.mubr.bf16.gmra.mrb[0].mxu0 %v3290
        %v3999 = vpop.f32.mrb[0].mxu0
        %v4000 = vadd.f32 %v3092, %v3999
        %v4001 = vpop.f32.mrb[0].mxu0
        %v4002 = vadd.f32 %v3092, %v4001
        %v4003 = vpop.f32.mrb[0].mxu0
        %v4004 = vadd.f32 %v3096, %v4003
        %v4005 = vpop.f32.mrb[0].mxu0
        %v4006 = vadd.f32 %v3096, %v4005
        %4007 = vmatprep.mubr.bf16.mxu0 %v3293
        %4008 = vmatmul.mubr.bf16.gmra.mrb[0].mxu0 %v3292
        %v4009 = vpop.f32.mrb[0].mxu0
        %v4010 = vadd.f32 %v3100, %v4009
        %v4011 = vpop.f32.mrb[0].mxu0
        %v4012 = vadd.f32 %v3100, %v4011
        %v4013 = vpop.f32.mrb[0].mxu0
        %v4014 = vadd.f32 %v3104, %v4013
        %v4015 = vpop.f32.mrb[0].mxu0
        %v4016 = vadd.f32 %v3104, %v4015
        %4017 = vmatprep.mubr.bf16.mxu0 %v3295
        %4018 = vmatmul.mubr.bf16.gmra.mrb[0].mxu0 %v3294
        %v4019 = vpop.f32.mrb[0].mxu0
        %v4020 = vadd.f32 %v3108, %v4019
        %v4021 = vpop.f32.mrb[0].mxu0
        %v4022 = vadd.f32 %v3108, %v4021
        %v4023 = vpop.f32.mrb[0].mxu0
        %v4024 = vadd.f32 %v3112, %v4023
        %v4025 = vpop.f32.mrb[0].mxu0
        %v4026 = vadd.f32 %v3112, %v4025
        %4027 = vmatprep.mubr.bf16.mxu0 %v3297
        %4028 = vmatmul.mubr.bf16.gmra.mrb[0].mxu0 %v3296
        %v4029 = vpop.f32.mrb[0].mxu0
        %v4030 = vadd.f32 %v3116, %v4029
        %v4031 = vpop.f32.mrb[0].mxu0
        %v4032 = vadd.f32 %v3116, %v4031
        %v4033 = vpop.f32.mrb[0].mxu0
        %v4034 = vadd.f32 %v3120, %v4033
        %v4035 = vpop.f32.mrb[0].mxu0
        %v4036 = vadd.f32 %v3120, %v4035
        %4037 = vmatprep.mubr.bf16.mxu0 %v3299
        %4038 = vmatmul.mubr.bf16.gmra.mrb[0].mxu0 %v3298
        %v4039 = vpop.f32.mrb[0].mxu0
        %v4040 = vadd.f32 %v3124, %v4039
        %v4041 = vpop.f32.mrb[0].mxu0
        %v4042 = vadd.f32 %v3124, %v4041
        %v4043 = vpop.f32.mrb[0].mxu0
        %v4044 = vadd.f32 %v3128, %v4043
        %v4045 = vpop.f32.mrb[0].mxu0
        %v4046 = vadd.f32 %v3128, %v4045
        %4047 = vmatprep.mubr.bf16.mxu0 %v3301
        %4048 = vmatmul.mubr.bf16.gmra.mrb[0].mxu0 %v3300
        %v4049 = vpop.f32.mrb[0].mxu0
        %v4050 = vadd.f32 %v3132, %v4049
        %v4051 = vpop.f32.mrb[0].mxu0
        %v4052 = vadd.f32 %v3132, %v4051
        %v4053 = vpop.f32.mrb[0].mxu0
        %v4054 = vadd.f32 %v3136, %v4053
        %v4055 = vpop.f32.mrb[0].mxu0
        %v4056 = vadd.f32 %v3136, %v4055
        %4057 = vmatprep.mubr.bf16.mxu0 %v3303
        %4058 = vmatmul.mubr.bf16.gmra.mrb[0].mxu0 %v3302
        %v4059 = vpop.f32.mrb[0].mxu0
        %v4060 = vadd.f32 %v3140, %v4059
        %v4061 = vpop.f32.mrb[0].mxu0
        %v4062 = vadd.f32 %v3140, %v4061
        %v4063 = vpop.f32.mrb[0].mxu0
        %v4064 = vadd.f32 %v3144, %v4063
        %v4065 = vpop.f32.mrb[0].mxu0
        %v4066 = vadd.f32 %v3144, %v4065
        %4067 = vmatprep.mubr.bf16.mxu0 %v3305
        %4068 = vmatmul.mubr.bf16.gmra.mrb[0].mxu0 %v3304
        %v4069 = vpop.f32.mrb[0].mxu0
        %v4070 = vadd.f32 %v3148, %v4069
        %v4071 = vpop.f32.mrb[0].mxu0
        %v4072 = vadd.f32 %v3148, %v4071
        %v4073 = vpop.f32.mrb[0].mxu0
        %v4074 = vadd.f32 %v3152, %v4073
        %v4075 = vpop.f32.mrb[0].mxu0
        %v4076 = vadd.f32 %v3152, %v4075
        %4077 = vmatprep.mubr.bf16.mxu0 %v3307
        %4078 = vmatmul.mubr.bf16.gmra.mrb[0].mxu0 %v3306
        %v4079 = vpop.f32.mrb[0].mxu0
        %v4080 = vadd.f32 %v3156, %v4079
        %v4081 = vpop.f32.mrb[0].mxu0
        %v4082 = vadd.f32 %v3156, %v4081
        %v4083 = vpop.f32.mrb[0].mxu0
        %v4084 = vadd.f32 %v3160, %v4083
        %v4085 = vpop.f32.mrb[0].mxu0
        %v4086 = vadd.f32 %v3160, %v4085
        %4087 = vmatprep.mubr.bf16.mxu0 %v3309
        %4088 = vmatmul.mubr.bf16.gmra.mrb[0].mxu0 %v3308
        %v4089 = vpop.f32.mrb[0].mxu0
        %v4090 = vadd.f32 %v3164, %v4089
        %v4091 = vpop.f32.mrb[0].mxu0
        %v4092 = vadd.f32 %v3164, %v4091
        %v4093 = vpop.f32.mrb[0].mxu0
        %v4094 = vadd.f32 %v3168, %v4093
        %v4095 = vpop.f32.mrb[0].mxu0
        %v4096 = vadd.f32 %v3168, %v4095
        %4097 = vmatprep.mubr.bf16.mxu0 %v3311
        %4098 = vmatmul.mubr.bf16.gmra.mrb[0].mxu0 %v3310
        %v4099 = vpop.f32.mrb[0].mxu0
        %v4100 = vadd.f32 %v3172, %v4099
        %v4101 = vpop.f32.mrb[0].mxu0
        %v4102 = vadd.f32 %v3172, %v4101
        %v4103 = vpop.f32.mrb[0].mxu0
        %v4104 = vadd.f32 %v3176, %v4103
        %v4105 = vpop.f32.mrb[0].mxu0
        %v4106 = vadd.f32 %v3176, %v4105
        %4107 = vmatprep.mubr.bf16.mxu0 %v3313
        %4108 = vmatmul.mubr.bf16.gmra.mrb[0].mxu0 %v3312
        %v4109 = vpop.f32.mrb[0].mxu0
        %v4110 = vadd.f32 %v3180, %v4109
        %v4111 = vpop.f32.mrb[0].mxu0
        %v4112 = vadd.f32 %v3180, %v4111
        %v4113 = vpop.f32.mrb[0].mxu0
        %v4114 = vadd.f32 %v3184, %v4113
        %v4115 = vpop.f32.mrb[0].mxu0
        %v4116 = vadd.f32 %v3184, %v4115
        %4117 = vdwg.mxu0
        %4118 = vst [vmem:[%s230] sm:$0xff] %v3381
        %4119 = vst [vmem:[%s230 + $0x8] sm:$0xff] %v3383
        %4120 = vst [vmem:[%s230 + $0x10] sm:$0xff] %v3574
        %4121 = vst [vmem:[%s230 + $0x18] sm:$0xff] %v3576
        %4122 = vst [vmem:[%s230 + $0x20] sm:$0xff] %v3767
        %4123 = vst [vmem:[%s230 + $0x28] sm:$0xff] %v3769
        %4124 = vst [vmem:[%s230 + $0x30] sm:$0xff] %v3960
        %4125 = vst [vmem:[%s230 + $0x38] sm:$0xff] %v3962
        %4126 = vst [vmem:[%s230 + $0x40] sm:$0xff] %v3385
        %4127 = vst [vmem:[%s230 + $0x48] sm:$0xff] %v3387
        %4128 = vst [vmem:[%s230 + $0x50] sm:$0xff] %v3578
        %4129 = vst [vmem:[%s230 + $0x58] sm:$0xff] %v3580
        %4130 = vst [vmem:[%s230 + $0x60] sm:$0xff] %v3771
        %4131 = vst [vmem:[%s230 + $0x68] sm:$0xff] %v3773
        %4132 = vst [vmem:[%s230 + $0x70] sm:$0xff] %v3964
        %4133 = vst [vmem:[%s230 + $0x78] sm:$0xff] %v3966
        %4134 = vst [vmem:[%s230 + $0x80] sm:$0xff] %v3391
        %4135 = vst [vmem:[%s230 + $0x88] sm:$0xff] %v3393
        %4136 = vst [vmem:[%s230 + $0x90] sm:$0xff] %v3584
        %4137 = vst [vmem:[%s230 + $0x98] sm:$0xff] %v3586
        %4138 = vst [vmem:[%s230 + $0xa0] sm:$0xff] %v3777
        %4139 = vst [vmem:[%s230 + $0xa8] sm:$0xff] %v3779
        %4140 = vst [vmem:[%s230 + $0xb0] sm:$0xff] %v3970
        %4141 = vst [vmem:[%s230 + $0xb8] sm:$0xff] %v3972
        %4142 = vst [vmem:[%s230 + $0xc0] sm:$0xff] %v3395
        %4143 = vst [vmem:[%s230 + $0xc8] sm:$0xff] %v3397
        %4144 = vst [vmem:[%s230 + $0xd0] sm:$0xff] %v3588
        %4145 = vst [vmem:[%s230 + $0xd8] sm:$0xff] %v3590
        %4146 = vst [vmem:[%s230 + $0xe0] sm:$0xff] %v3781
        %4147 = vst [vmem:[%s230 + $0xe8] sm:$0xff] %v3783
        %4148 = vst [vmem:[%s230 + $0xf0] sm:$0xff] %v3974
        %4149 = vst [vmem:[%s230 + $0xf8] sm:$0xff] %v3976
        %4150 = vst [vmem:[%s230 + $0x100] sm:$0xff] %v3401
        %4151 = vst [vmem:[%s230 + $0x108] sm:$0xff] %v3403
        %4152 = vst [vmem:[%s230 + $0x110] sm:$0xff] %v3594
        %4153 = vst [vmem:[%s230 + $0x118] sm:$0xff] %v3596
        %4154 = vst [vmem:[%s230 + $0x120] sm:$0xff] %v3787
        %4155 = vst [vmem:[%s230 + $0x128] sm:$0xff] %v3789
        %4156 = vst [vmem:[%s230 + $0x130] sm:$0xff] %v3980
        %4157 = vst [vmem:[%s230 + $0x138] sm:$0xff] %v3982
        %4158 = vst [vmem:[%s230 + $0x140] sm:$0xff] %v3405
        %4159 = vst [vmem:[%s230 + $0x148] sm:$0xff] %v3407
        %4160 = vst [vmem:[%s230 + $0x150] sm:$0xff] %v3598
        %4161 = vst [vmem:[%s230 + $0x158] sm:$0xff] %v3600
        %4162 = vst [vmem:[%s230 + $0x160] sm:$0xff] %v3791
        %4163 = vst [vmem:[%s230 + $0x168] sm:$0xff] %v3793
        %4164 = vst [vmem:[%s230 + $0x170] sm:$0xff] %v3984
        %4165 = vst [vmem:[%s230 + $0x178] sm:$0xff] %v3986
        %4166 = vst [vmem:[%s230 + $0x180] sm:$0xff] %v3411
        %4167 = vst [vmem:[%s230 + $0x188] sm:$0xff] %v3413
        %4168 = vst [vmem:[%s230 + $0x190] sm:$0xff] %v3604
        %4169 = vst [vmem:[%s230 + $0x198] sm:$0xff] %v3606
        %4170 = vst [vmem:[%s230 + $0x1a0] sm:$0xff] %v3797
        %4171 = vst [vmem:[%s230 + $0x1a8] sm:$0xff] %v3799
        %4172 = vst [vmem:[%s230 + $0x1b0] sm:$0xff] %v3990
        %4173 = vst [vmem:[%s230 + $0x1b8] sm:$0xff] %v3992
        %4174 = vst [vmem:[%s230 + $0x1c0] sm:$0xff] %v3415
        %4175 = vst [vmem:[%s230 + $0x1c8] sm:$0xff] %v3417
        %4176 = vst [vmem:[%s230 + $0x1d0] sm:$0xff] %v3608
        %4177 = vst [vmem:[%s230 + $0x1d8] sm:$0xff] %v3610
        %4178 = vst [vmem:[%s230 + $0x1e0] sm:$0xff] %v3801
        %4179 = vst [vmem:[%s230 + $0x1e8] sm:$0xff] %v3803
        %4180 = vst [vmem:[%s230 + $0x1f0] sm:$0xff] %v3994
        %4181 = vst [vmem:[%s230 + $0x1f8] sm:$0xff] %v3996
        %4182 = vst [vmem:[%s230 + $0x200] sm:$0xff] %v3421
        %4183 = vst [vmem:[%s230 + $0x208] sm:$0xff] %v3423
        %4184 = vst [vmem:[%s230 + $0x210] sm:$0xff] %v3614
        %4185 = vst [vmem:[%s230 + $0x218] sm:$0xff] %v3616
        %4186 = vst [vmem:[%s230 + $0x220] sm:$0xff] %v3807
        %4187 = vst [vmem:[%s230 + $0x228] sm:$0xff] %v3809
        %4188 = vst [vmem:[%s230 + $0x230] sm:$0xff] %v4000
        %4189 = vst [vmem:[%s230 + $0x238] sm:$0xff] %v4002
        %4190 = vst [vmem:[%s230 + $0x240] sm:$0xff] %v3425
        %4191 = vst [vmem:[%s230 + $0x248] sm:$0xff] %v3427
        %4192 = vst [vmem:[%s230 + $0x250] sm:$0xff] %v3618
        %4193 = vst [vmem:[%s230 + $0x258] sm:$0xff] %v3620
        %4194 = vst [vmem:[%s230 + $0x260] sm:$0xff] %v3811
        %4195 = vst [vmem:[%s230 + $0x268] sm:$0xff] %v3813
        %4196 = vst [vmem:[%s230 + $0x270] sm:$0xff] %v4004
        %4197 = vst [vmem:[%s230 + $0x278] sm:$0xff] %v4006
        %4198 = vst [vmem:[%s230 + $0x280] sm:$0xff] %v3431
        %4199 = vst [vmem:[%s230 + $0x288] sm:$0xff] %v3433
        %4200 = vst [vmem:[%s230 + $0x290] sm:$0xff] %v3624
        %4201 = vst [vmem:[%s230 + $0x298] sm:$0xff] %v3626
        %4202 = vst [vmem:[%s230 + $0x2a0] sm:$0xff] %v3817
        %4203 = vst [vmem:[%s230 + $0x2a8] sm:$0xff] %v3819
        %4204 = vst [vmem:[%s230 + $0x2b0] sm:$0xff] %v4010
        %4205 = vst [vmem:[%s230 + $0x2b8] sm:$0xff] %v4012
        %4206 = vst [vmem:[%s230 + $0x2c0] sm:$0xff] %v3435
        %4207 = vst [vmem:[%s230 + $0x2c8] sm:$0xff] %v3437
        %4208 = vst [vmem:[%s230 + $0x2d0] sm:$0xff] %v3628
        %4209 = vst [vmem:[%s230 + $0x2d8] sm:$0xff] %v3630
        %4210 = vst [vmem:[%s230 + $0x2e0] sm:$0xff] %v3821
        %4211 = vst [vmem:[%s230 + $0x2e8] sm:$0xff] %v3823
        %4212 = vst [vmem:[%s230 + $0x2f0] sm:$0xff] %v4014
        %4213 = vst [vmem:[%s230 + $0x2f8] sm:$0xff] %v4016
        %4214 = vst [vmem:[%s230 + $0x300] sm:$0xff] %v3441
        %4215 = vst [vmem:[%s230 + $0x308] sm:$0xff] %v3443
        %4216 = vst [vmem:[%s230 + $0x310] sm:$0xff] %v3634
        %4217 = vst [vmem:[%s230 + $0x318] sm:$0xff] %v3636
        %4218 = vst [vmem:[%s230 + $0x320] sm:$0xff] %v3827
        %4219 = vst [vmem:[%s230 + $0x328] sm:$0xff] %v3829
        %4220 = vst [vmem:[%s230 + $0x330] sm:$0xff] %v4020
        %4221 = vst [vmem:[%s230 + $0x338] sm:$0xff] %v4022
        %4222 = vst [vmem:[%s230 + $0x340] sm:$0xff] %v3445
        %4223 = vst [vmem:[%s230 + $0x348] sm:$0xff] %v3447
        %4224 = vst [vmem:[%s230 + $0x350] sm:$0xff] %v3638
        %4225 = vst [vmem:[%s230 + $0x358] sm:$0xff] %v3640
        %4226 = vst [vmem:[%s230 + $0x360] sm:$0xff] %v3831
        %4227 = vst [vmem:[%s230 + $0x368] sm:$0xff] %v3833
        %4228 = vst [vmem:[%s230 + $0x370] sm:$0xff] %v4024
        %4229 = vst [vmem:[%s230 + $0x378] sm:$0xff] %v4026
        %4230 = vst [vmem:[%s230 + $0x380] sm:$0xff] %v3451
        %4231 = vst [vmem:[%s230 + $0x388] sm:$0xff] %v3453
        %4232 = vst [vmem:[%s230 + $0x390] sm:$0xff] %v3644
        %4233 = vst [vmem:[%s230 + $0x398] sm:$0xff] %v3646
        %4234 = vst [vmem:[%s230 + $0x3a0] sm:$0xff] %v3837
        %4235 = vst [vmem:[%s230 + $0x3a8] sm:$0xff] %v3839
        %4236 = vst [vmem:[%s230 + $0x3b0] sm:$0xff] %v4030
        %4237 = vst [vmem:[%s230 + $0x3b8] sm:$0xff] %v4032
        %4238 = vst [vmem:[%s230 + $0x3c0] sm:$0xff] %v3455
        %4239 = vst [vmem:[%s230 + $0x3c8] sm:$0xff] %v3457
        %4240 = vst [vmem:[%s230 + $0x3d0] sm:$0xff] %v3648
        %4241 = vst [vmem:[%s230 + $0x3d8] sm:$0xff] %v3650
        %4242 = vst [vmem:[%s230 + $0x3e0] sm:$0xff] %v3841
        %4243 = vst [vmem:[%s230 + $0x3e8] sm:$0xff] %v3843
        %4244 = vst [vmem:[%s230 + $0x3f0] sm:$0xff] %v4034
        %4245 = vst [vmem:[%s230 + $0x3f8] sm:$0xff] %v4036
        %4246 = vst [vmem:[%s230 + $0x400] sm:$0xff] %v3461
        %4247 = vst [vmem:[%s230 + $0x408] sm:$0xff] %v3463
        %4248 = vst [vmem:[%s230 + $0x410] sm:$0xff] %v3654
        %4249 = vst [vmem:[%s230 + $0x418] sm:$0xff] %v3656
        %4250 = vst [vmem:[%s230 + $0x420] sm:$0xff] %v3847
        %4251 = vst [vmem:[%s230 + $0x428] sm:$0xff] %v3849
        %4252 = vst [vmem:[%s230 + $0x430] sm:$0xff] %v4040
        %4253 = vst [vmem:[%s230 + $0x438] sm:$0xff] %v4042
        %4254 = vst [vmem:[%s230 + $0x440] sm:$0xff] %v3465
        %4255 = vst [vmem:[%s230 + $0x448] sm:$0xff] %v3467
        %4256 = vst [vmem:[%s230 + $0x450] sm:$0xff] %v3658
        %4257 = vst [vmem:[%s230 + $0x458] sm:$0xff] %v3660
        %4258 = vst [vmem:[%s230 + $0x460] sm:$0xff] %v3851
        %4259 = vst [vmem:[%s230 + $0x468] sm:$0xff] %v3853
        %4260 = vst [vmem:[%s230 + $0x470] sm:$0xff] %v4044
        %4261 = vst [vmem:[%s230 + $0x478] sm:$0xff] %v4046
        %4262 = vst [vmem:[%s230 + $0x480] sm:$0xff] %v3471
        %4263 = vst [vmem:[%s230 + $0x488] sm:$0xff] %v3473
        %4264 = vst [vmem:[%s230 + $0x490] sm:$0xff] %v3664
        %4265 = vst [vmem:[%s230 + $0x498] sm:$0xff] %v3666
        %4266 = vst [vmem:[%s230 + $0x4a0] sm:$0xff] %v3857
        %4267 = vst [vmem:[%s230 + $0x4a8] sm:$0xff] %v3859
        %4268 = vst [vmem:[%s230 + $0x4b0] sm:$0xff] %v4050
        %4269 = vst [vmem:[%s230 + $0x4b8] sm:$0xff] %v4052
        %4270 = vst [vmem:[%s230 + $0x4c0] sm:$0xff] %v3475
        %4271 = vst [vmem:[%s230 + $0x4c8] sm:$0xff] %v3477
        %4272 = vst [vmem:[%s230 + $0x4d0] sm:$0xff] %v3668
        %4273 = vst [vmem:[%s230 + $0x4d8] sm:$0xff] %v3670
        %4274 = vst [vmem:[%s230 + $0x4e0] sm:$0xff] %v3861
        %4275 = vst [vmem:[%s230 + $0x4e8] sm:$0xff] %v3863
        %4276 = vst [vmem:[%s230 + $0x4f0] sm:$0xff] %v4054
        %4277 = vst [vmem:[%s230 + $0x4f8] sm:$0xff] %v4056
        %4278 = vst [vmem:[%s230 + $0x500] sm:$0xff] %v3481
        %4279 = vst [vmem:[%s230 + $0x508] sm:$0xff] %v3483
        %4280 = vst [vmem:[%s230 + $0x510] sm:$0xff] %v3674
        %4281 = vst [vmem:[%s230 + $0x518] sm:$0xff] %v3676
        %4282 = vst [vmem:[%s230 + $0x520] sm:$0xff] %v3867
        %4283 = vst [vmem:[%s230 + $0x528] sm:$0xff] %v3869
        %4284 = vst [vmem:[%s230 + $0x530] sm:$0xff] %v4060
        %4285 = vst [vmem:[%s230 + $0x538] sm:$0xff] %v4062
        %4286 = vst [vmem:[%s230 + $0x540] sm:$0xff] %v3485
        %4287 = vst [vmem:[%s230 + $0x548] sm:$0xff] %v3487
        %4288 = vst [vmem:[%s230 + $0x550] sm:$0xff] %v3678
        %4289 = vst [vmem:[%s230 + $0x558] sm:$0xff] %v3680
        %4290 = vst [vmem:[%s230 + $0x560] sm:$0xff] %v3871
        %4291 = vst [vmem:[%s230 + $0x568] sm:$0xff] %v3873
        %4292 = vst [vmem:[%s230 + $0x570] sm:$0xff] %v4064
        %4293 = vst [vmem:[%s230 + $0x578] sm:$0xff] %v4066
        %4294 = vst [vmem:[%s230 + $0x580] sm:$0xff] %v3491
        %4295 = vst [vmem:[%s230 + $0x588] sm:$0xff] %v3493
        %4296 = vst [vmem:[%s230 + $0x590] sm:$0xff] %v3684
        %4297 = vst [vmem:[%s230 + $0x598] sm:$0xff] %v3686
        %4298 = vst [vmem:[%s230 + $0x5a0] sm:$0xff] %v3877
        %4299 = vst [vmem:[%s230 + $0x5a8] sm:$0xff] %v3879
        %4300 = vst [vmem:[%s230 + $0x5b0] sm:$0xff] %v4070
        %4301 = vst [vmem:[%s230 + $0x5b8] sm:$0xff] %v4072
        %4302 = vst [vmem:[%s230 + $0x5c0] sm:$0xff] %v3495
        %4303 = vst [vmem:[%s230 + $0x5c8] sm:$0xff] %v3497
        %4304 = vst [vmem:[%s230 + $0x5d0] sm:$0xff] %v3688
        %4305 = vst [vmem:[%s230 + $0x5d8] sm:$0xff] %v3690
        %4306 = vst [vmem:[%s230 + $0x5e0] sm:$0xff] %v3881
        %4307 = vst [vmem:[%s230 + $0x5e8] sm:$0xff] %v3883
        %4308 = vst [vmem:[%s230 + $0x5f0] sm:$0xff] %v4074
        %4309 = vst [vmem:[%s230 + $0x5f8] sm:$0xff] %v4076
        %4310 = vst [vmem:[%s230 + $0x600] sm:$0xff] %v3501
        %4311 = vst [vmem:[%s230 + $0x608] sm:$0xff] %v3503
        %4312 = vst [vmem:[%s230 + $0x610] sm:$0xff] %v3694
        %4313 = vst [vmem:[%s230 + $0x618] sm:$0xff] %v3696
        %4314 = vst [vmem:[%s230 + $0x620] sm:$0xff] %v3887
        %4315 = vst [vmem:[%s230 + $0x628] sm:$0xff] %v3889
        %4316 = vst [vmem:[%s230 + $0x630] sm:$0xff] %v4080
        %4317 = vst [vmem:[%s230 + $0x638] sm:$0xff] %v4082
        %4318 = vst [vmem:[%s230 + $0x640] sm:$0xff] %v3505
        %4319 = vst [vmem:[%s230 + $0x648] sm:$0xff] %v3507
        %4320 = vst [vmem:[%s230 + $0x650] sm:$0xff] %v3698
        %4321 = vst [vmem:[%s230 + $0x658] sm:$0xff] %v3700
        %4322 = vst [vmem:[%s230 + $0x660] sm:$0xff] %v3891
        %4323 = vst [vmem:[%s230 + $0x668] sm:$0xff] %v3893
        %4324 = vst [vmem:[%s230 + $0x670] sm:$0xff] %v4084
        %4325 = vst [vmem:[%s230 + $0x678] sm:$0xff] %v4086
        %4326 = vst [vmem:[%s230 + $0x680] sm:$0xff] %v3511
        %4327 = vst [vmem:[%s230 + $0x688] sm:$0xff] %v3513
        %4328 = vst [vmem:[%s230 + $0x690] sm:$0xff] %v3704
        %4329 = vst [vmem:[%s230 + $0x698] sm:$0xff] %v3706
        %4330 = vst [vmem:[%s230 + $0x6a0] sm:$0xff] %v3897
        %4331 = vst [vmem:[%s230 + $0x6a8] sm:$0xff] %v3899
        %4332 = vst [vmem:[%s230 + $0x6b0] sm:$0xff] %v4090
        %4333 = vst [vmem:[%s230 + $0x6b8] sm:$0xff] %v4092
        %4334 = vst [vmem:[%s230 + $0x6c0] sm:$0xff] %v3515
        %4335 = vst [vmem:[%s230 + $0x6c8] sm:$0xff] %v3517
        %4336 = vst [vmem:[%s230 + $0x6d0] sm:$0xff] %v3708
        %4337 = vst [vmem:[%s230 + $0x6d8] sm:$0xff] %v3710
        %4338 = vst [vmem:[%s230 + $0x6e0] sm:$0xff] %v3901
        %4339 = vst [vmem:[%s230 + $0x6e8] sm:$0xff] %v3903
        %4340 = vst [vmem:[%s230 + $0x6f0] sm:$0xff] %v4094
        %4341 = vst [vmem:[%s230 + $0x6f8] sm:$0xff] %v4096
        %4342 = vst [vmem:[%s230 + $0x700] sm:$0xff] %v3521
        %4343 = vst [vmem:[%s230 + $0x708] sm:$0xff] %v3523
        %4344 = vst [vmem:[%s230 + $0x710] sm:$0xff] %v3714
        %4345 = vst [vmem:[%s230 + $0x718] sm:$0xff] %v3716
        %4346 = vst [vmem:[%s230 + $0x720] sm:$0xff] %v3907
        %4347 = vst [vmem:[%s230 + $0x728] sm:$0xff] %v3909
        %4348 = vst [vmem:[%s230 + $0x730] sm:$0xff] %v4100
        %4349 = vst [vmem:[%s230 + $0x738] sm:$0xff] %v4102
        %4350 = vst [vmem:[%s230 + $0x740] sm:$0xff] %v3525
        %4351 = vst [vmem:[%s230 + $0x748] sm:$0xff] %v3527
        %4352 = vst [vmem:[%s230 + $0x750] sm:$0xff] %v3718
        %4353 = vst [vmem:[%s230 + $0x758] sm:$0xff] %v3720
        %4354 = vst [vmem:[%s230 + $0x760] sm:$0xff] %v3911
        %4355 = vst [vmem:[%s230 + $0x768] sm:$0xff] %v3913
        %4356 = vst [vmem:[%s230 + $0x770] sm:$0xff] %v4104
        %4357 = vst [vmem:[%s230 + $0x778] sm:$0xff] %v4106
        %4358 = vst [vmem:[%s230 + $0x780] sm:$0xff] %v3531
        %4359 = vst [vmem:[%s230 + $0x788] sm:$0xff] %v3533
        %4360 = vst [vmem:[%s230 + $0x790] sm:$0xff] %v3724
        %4361 = vst [vmem:[%s230 + $0x798] sm:$0xff] %v3726
        %4362 = vst [vmem:[%s230 + $0x7a0] sm:$0xff] %v3917
        %4363 = vst [vmem:[%s230 + $0x7a8] sm:$0xff] %v3919
        %4364 = vst [vmem:[%s230 + $0x7b0] sm:$0xff] %v4110
        %4365 = vst [vmem:[%s230 + $0x7b8] sm:$0xff] %v4112
        %4366 = vst [vmem:[%s230 + $0x7c0] sm:$0xff] %v3535
        %4367 = vst [vmem:[%s230 + $0x7c8] sm:$0xff] %v3537
        %4368 = vst [vmem:[%s230 + $0x7d0] sm:$0xff] %v3728
        %4369 = vst [vmem:[%s230 + $0x7d8] sm:$0xff] %v3730
        %4370 = vst [vmem:[%s230 + $0x7e0] sm:$0xff] %v3921
        %4371 = vst [vmem:[%s230 + $0x7e8] sm:$0xff] %v3923
        %4372 = vst [vmem:[%s230 + $0x7f0] sm:$0xff] %v4114
        %4373 = vst [vmem:[%s230 + $0x7f8] sm:$0xff] %v4116
        %s4374 = sand.u32 %s132, 1
        %s4375 = scalar_lea.sflag [#allocation4], %s4374
        %s4376 = sand.u32 %s132, 1
        %s4377 = smul.addr %s4376, 2048
        %s4378 = scalar_lea.vmem [#allocation5], %s4377
        // Predicated region
        $region41: #{tpu_custom_call.1} parent=35 // pred_check
          %p4379 = pneg %p142
        $region42: #{tpu_custom_call.1} parent=35 // pred_check_branch
          %4381 = sbr.rel (%p4379) target = $region44
        $region43: #{tpu_custom_call.1} parent=35 // pred_region
          %s4382 = smul.u32 8, %s24
          %s4384 = ssub.s32 32768, 32768
          %4385 = vsyncadd %s4375, %s4384
          %s4386 = smul.addr %s23, 256
          %s4387 = sadd.s32 %s4382, %s4386
          %s4388 = smul.addr %s4387, 128
          %s4389 = scalar_lea.hbm %s4, %s4388
          %s4390 = sshll.u32 %s4378, 4
          %s4391 = int_to_ptr.vmem [resolvable:$true] %s4390
          %4396 = dma.vmem_to_hbm [thread:$0]  %s4391, 32768, %s4389, %s4375, 1024, 1024, 64
        $region44: #{tpu_custom_call.1} parent=35 // pred_fallthru
          _
      $region36: #{tpu_custom_call.1} parent=5 // pred_fallthru
        _
      %p4397 = scmp.le.s32.totalorder 2, %s14
      // Predicated region
      $region45: #{tpu_custom_call.1} parent=5 // pred_check
        %p4398 = pneg %p4397
      $region46: #{tpu_custom_call.1} parent=5 // pred_check_branch
        %4400 = sbr.rel (%p4398) target = $region48
      $region47: #{tpu_custom_call.1} parent=5 // pred_region
        %s4401 = ssub.s32 %s14, 2
        // Predicated region
        $region49: #{tpu_custom_call.1} parent=47 // pred_check
          %p4402 = pneg %p148
        $region50: #{tpu_custom_call.1} parent=47 // pred_check_branch
          %4404 = sbr.rel (%p4402) target = $region52
        $region51: #{tpu_custom_call.1} parent=47 // pred_region
          %s4405 = sand.u32 %s133, 1
          %s4406 = scalar_lea.sflag [#allocation4], %s4405
          %s4407 = sand.u32 %s133, 1
          %s4408 = smul.addr %s4407, 2048
          %s4409 = scalar_lea.vmem [#allocation5], %s4408
          %4410 = dma.done %s4406, 32768
        $region52: #{tpu_custom_call.1} parent=47 // pred_fallthru
          _
      $region48: #{tpu_custom_call.1} parent=5 // pred_fallthru
        _
    $region6: #{tpu_custom_call.1} parent=1 // loop_footer
      %s18 = sadd.s32 1, %s14
    $region7: #{tpu_custom_call.1} parent=1 // loop_footer_branch
      %13 = sbr.rel target = $region3
    $region8: #{tpu_custom_call.1} parent=1 // loop_exit
      _
    %4411 = vsyncpa [#allocation3], 1
    %s4412 = scalar_lea.sflag [#allocation3], 1
    %4413 = vsyncpa %s4412, 1
    %4414 = vsyncpa [#allocation4], 1
    %s4415 = scalar_lea.sflag [#allocation4], 1
    %4416 = vsyncpa %s4415, 1

</llo_original>
